<compile_context>
chip_gen: v6e
topology: v6e:2x2x1
jax: 0.10.0
libtpu: 0.0.40
codegen_flags: <defaults>
</compile_context>

<pallas_src>
import functools
import math

import jax
import jax.numpy as jnp
from jax.experimental import pallas as pl
from jax.experimental.pallas import tpu as pltpu


# ----------------------------- fused kernel --------------------------------

def _mask_branch_kernel(x_ref, *refs, num_convs):
    # refs = [w0, b0, ..., w_{n-1}, b_{n-1}, proj_w_t, proj_b, o_ref, pad_ref]
    conv_w_refs = [refs[2 * i] for i in range(num_convs)]
    conv_b_refs = [refs[2 * i + 1] for i in range(num_convs)]
    proj_wt_ref = refs[2 * num_convs]          # (kernel_dim, dim)
    proj_b_ref = refs[2 * num_convs + 1]       # (kernel_dim, 1)
    o_ref = refs[2 * num_convs + 2]            # (1, kernel_dim, H*W)
    pad_ref = refs[2 * num_convs + 3]          # (H+2, W+2, Cmax) VMEM scratch

    H, W, cin0 = x_ref.shape[1], x_ref.shape[2], x_ref.shape[3]
    HW = H * W

    if num_convs == 0:
        act = x_ref[0].reshape(HW, cin0)
    else:
        # Zero the halo scratch every grid step (scratch persists across steps
        # and each core must initialize its own copy).
        pad_ref[...] = jnp.zeros_like(pad_ref)
        # Place the input into the interior of the padded scratch.
        pad_ref[1:H + 1, 1:W + 1, :cin0] = x_ref[0]

        act = None
        for i in range(num_convs):
            w_ref = conv_w_refs[i]             # (3, 3*cin, cout)
            b_ref = conv_b_refs[i]             # (1, cout)
            cin = w_ref.shape[1] // 3
            cout = w_ref.shape[2]

            acc = jnp.zeros((HW, cout), jnp.float32)
            for dy in range(3):
                # im2col slab for kernel row dy: (H*W, 3*cin), built from
                # Ref-sliced windows (only the needed data is loaded).
                slab = jnp.concatenate(
                    [pad_ref[dy:dy + H, dx:dx + W, :cin].reshape(HW, cin)
                     for dx in range(3)],
                    axis=1)
                acc = acc + jnp.dot(slab, w_ref[dy],
                                    preferred_element_type=jnp.float32)

            # bias + ReLU on the f32 accumulator.
            act = jnp.maximum(acc + b_ref[...], 0.0)
            if i + 1 < num_convs:
                # Write back into the halo scratch for the next layer.
                pad_ref[1:H + 1, 1:W + 1, :cout] = act.reshape(H, W, cout)

    # 1x1 projection, computed directly as (kernel_dim, H*W) = flattened NCHW:
    # y[k, p] = sum_d proj_w[d, k] * act[p, d]   (A @ B^T contraction)
    y = jax.lax.dot_general(
        proj_wt_ref[...], act,
        (((1,), (1,)), ((), ())),
        preferred_element_type=jnp.float32)            # (kernel_dim, H*W)
    o_ref[0] = (y + proj_b_ref[...]).astype(o_ref.dtype)


# ------------------------------ wrapper -------------------------------------

def mask_branch_forward(features_nchw, conv_ws, conv_bs, proj_w, proj_b):
    """features_nchw: (N, Cin, H, W). conv_ws[i]: (3, 3, cin_i, dim) (HWIO).
    proj_w: (dim, kernel_dim). Returns NCHW (N, kernel_dim, H, W)."""
    N, Cin, H, W = features_nchw.shape
    num_convs = len(conv_ws)
    kernel_dim = proj_w.shape[-1]
    HW = H * W
    cmax = max([Cin] + [w.shape[-1] for w in conv_ws])

    # NCHW -> NHWC once at the boundary (tiny: first-layer channels only).
    x = jnp.transpose(features_nchw, (0, 2, 3, 1)).astype(jnp.float32)

    # Pre-reshape 3x3 weights to (3, 3*cin, cout): contraction axis = (dx, cin).
    conv_ws_r = [w.astype(jnp.float32).reshape(3, 3 * w.shape[2], w.shape[3])
                 for w in conv_ws]
    conv_bs_r = [b.astype(jnp.float32).reshape(1, -1) for b in conv_bs]
    proj_wt = jnp.transpose(proj_w).astype(jnp.float32)          # (kdim, dim)
    proj_b2 = proj_b.astype(jnp.float32).reshape(kernel_dim, 1)  # (kdim, 1)

    inputs = [x]
    in_specs = [pl.BlockSpec((1, H, W, Cin), lambda n: (n, 0, 0, 0))]
    for w, b in zip(conv_ws_r, conv_bs_r):
        inputs.append(w)
        in_specs.append(pl.BlockSpec(w.shape, lambda n: (0, 0, 0)))
        inputs.append(b)
        in_specs.append(pl.BlockSpec(b.shape, lambda n: (0, 0)))
    inputs.append(proj_wt)
    in_specs.append(pl.BlockSpec(proj_wt.shape, lambda n: (0, 0)))
    inputs.append(proj_b2)
    in_specs.append(pl.BlockSpec(proj_b2.shape, lambda n: (0, 0)))

    kernel = functools.partial(_mask_branch_kernel, num_convs=num_convs)

    out = pl.pallas_call(
        kernel,
        out_shape=jax.ShapeDtypeStruct((N, kernel_dim, HW), jnp.float32),
        grid_spec=pltpu.PrefetchScalarGridSpec(
            num_scalar_prefetch=0,
            grid=(N,),
            in_specs=in_specs,
            out_specs=pl.BlockSpec((1, kernel_dim, HW), lambda n: (n, 0, 0)),
            scratch_shapes=[pltpu.VMEM((H + 2, W + 2, cmax), jnp.float32)],
        ),
        compiler_params=pltpu.CompilerParams(
            dimension_semantics=("parallel",)),
    )(*inputs)

    # (N, kernel_dim, H*W) is already flattened NCHW: reshape only, no transpose.
    return out.reshape(N, kernel_dim, H, W)


class MaskBranchPallas:
    """JAX/Pallas port of MaskBranch. Parameters init'ed with c2_msra_fill
    semantics (kaiming-normal fan_out, zero bias)."""

    def __init__(self, key, in_channels, dim, num_convs, kernel_dim):
        self.dim = dim
        self.kernel_dim = kernel_dim
        self.conv_ws = []
        self.conv_bs = []
        cin = in_channels
        keys = jax.random.split(key, num_convs + 1)
        for i in range(num_convs):
            fan_out = dim * 3 * 3
            std = math.sqrt(2.0 / fan_out)
            w = std * jax.random.normal(keys[i], (3, 3, cin, dim), jnp.float32)
            self.conv_ws.append(w)
            self.conv_bs.append(jnp.zeros((dim,), jnp.float32))
            cin = dim
        fan_out = kernel_dim * 1 * 1
        std = math.sqrt(2.0 / fan_out)
        self.proj_w = std * jax.random.normal(
            keys[-1], (dim, kernel_dim), jnp.float32)
        self.proj_b = jnp.zeros((kernel_dim,), jnp.float32)

    def __call__(self, features_nchw):
        return mask_branch_forward(features_nchw, self.conv_ws, self.conv_bs,
                                   self.proj_w, self.proj_b)


# ------------------------------ reference -----------------------------------

def _reference_forward(branch, features_nchw):
    x = jnp.transpose(features_nchw, (0, 2, 3, 1))
    for w, b in zip(branch.conv_ws, branch.conv_bs):
        x = jax.lax.conv_general_dilated(
            x, w, window_strides=(1, 1), padding="SAME",
            dimension_numbers=("NHWC", "HWIO", "NHWC"))
        x = jnp.maximum(x + b, 0.0)
    x = jax.lax.conv_general_dilated(
        x, branch.proj_w.reshape(1, 1, branch.dim, branch.kernel_dim),
        window_strides=(1, 1), padding="SAME",
        dimension_numbers=("NHWC", "HWIO", "NHWC"))
    x = x + branch.proj_b
    return jnp.transpose(x, (0, 3, 1, 2))


if __name__ == "__main__":
    # cfg stand-ins: MASK.DIM=32, MASK.CONVS=2, KERNEL_DIM=32, in_channels=4
    N, C_IN, H, W = 2, 4, 16, 16
    DIM, NUM_CONVS, KERNEL_DIM = 32, 2, 32

    key = jax.random.PRNGKey(0)
    k_param, k_x = jax.random.split(key)
    branch = MaskBranchPallas(k_param, C_IN, DIM, NUM_CONVS, KERNEL_DIM)

    features = jax.random.normal(k_x, (N, C_IN, H, W), jnp.float32)

    out = branch(features)
    out = jax.block_until_ready(out)

    ref = jax.block_until_ready(_reference_forward(branch, features))
    assert out.shape == (N, KERNEL_DIM, H, W), out.shape
    assert jnp.allclose(out, ref, atol=1e-4, rtol=1e-4), (
        float(jnp.max(jnp.abs(out - ref))))

    print("KERNEL_OK")
</pallas_src>

<mosaic_0001>
module attributes {stable_mosaic.version = 11 : i64} {
  func.func @_mask_branch_kernel(%arg0: i32, %arg1: memref<1x16x16x4xf32, #tpu.memory_space<vmem>>, %arg2: memref<3x12x32xf32, #tpu.memory_space<vmem>>, %arg3: memref<1x32xf32, #tpu.memory_space<vmem>>, %arg4: memref<3x96x32xf32, #tpu.memory_space<vmem>>, %arg5: memref<1x32xf32, #tpu.memory_space<vmem>>, %arg6: memref<32x32xf32, #tpu.memory_space<vmem>>, %arg7: memref<32x1xf32, #tpu.memory_space<vmem>>, %arg8: memref<1x32x256xf32, #tpu.memory_space<vmem>>, %arg9: memref<18x18x32xf32, #tpu.memory_space<vmem>>) attributes {dimension_semantics = [#tpu.dimension_semantics<parallel>], iteration_bounds = array<i64: 2>, scalar_prefetch = 0 : i64, scratch_operands = 1 : i64, tpu.core_type = #tpu.core_type<tc>, window_params = [{transform_indices = @transform_0, window_bounds = array<i64: 1, 16, 16, 4>}, {pipeline_mode = #tpu.pipeline_mode<synchronous>, transform_indices = @transform_1, window_bounds = array<i64: 3, 12, 32>}, {pipeline_mode = #tpu.pipeline_mode<synchronous>, transform_indices = @transform_2, window_bounds = array<i64: 1, 32>}, {pipeline_mode = #tpu.pipeline_mode<synchronous>, transform_indices = @transform_3, window_bounds = array<i64: 3, 96, 32>}, {pipeline_mode = #tpu.pipeline_mode<synchronous>, transform_indices = @transform_4, window_bounds = array<i64: 1, 32>}, {pipeline_mode = #tpu.pipeline_mode<synchronous>, transform_indices = @transform_5, window_bounds = array<i64: 32, 32>}, {pipeline_mode = #tpu.pipeline_mode<synchronous>, transform_indices = @transform_6, window_bounds = array<i64: 32, 1>}, {transform_indices = @transform_7, window_bounds = array<i64: 1, 32, 256>}]} {
    %cst = arith.constant 0.000000e+00 : f32
    %0 = vector.broadcast %cst : f32 to vector<18x18x32xf32>
    %c0 = arith.constant 0 : index
    %c0_0 = arith.constant 0 : index
    %c0_1 = arith.constant 0 : index
    %1 = vector.load %arg9[%c0, %c0_0, %c0_1] : memref<18x18x32xf32, #tpu.memory_space<vmem>>, vector<18x18x32xf32>
    tpu.vector_store %arg9[%c0, %c0_0, %c0_1], %0 {strides = array<i32>} : memref<18x18x32xf32, #tpu.memory_space<vmem>>, vector<18x18x32xf32>,
    %c0_2 = arith.constant 0 : index
    %c0_3 = arith.constant 0 : index
    %c0_4 = arith.constant 0 : index
    %c0_5 = arith.constant 0 : index
    %2 = vector.load %arg1[%c0_2, %c0_3, %c0_4, %c0_5] : memref<1x16x16x4xf32, #tpu.memory_space<vmem>>, vector<1x16x16x4xf32>
    %3 = vector.shape_cast %2 : vector<1x16x16x4xf32> to vector<16x16x4xf32>
    %c1 = arith.constant 1 : index
    %c1_6 = arith.constant 1 : index
    %c0_7 = arith.constant 0 : index
    %4 = vector.load %arg9[%c1, %c1_6, %c0_7] : memref<18x18x32xf32, #tpu.memory_space<vmem>>, vector<16x16x4xf32>
    tpu.vector_store %arg9[%c1, %c1_6, %c0_7], %3 {strides = array<i32>} : memref<18x18x32xf32, #tpu.memory_space<vmem>>, vector<16x16x4xf32>,
    %cst_8 = arith.constant 0.000000e+00 : f32
    %5 = vector.broadcast %cst_8 : f32 to vector<256x32xf32>
    %c0_9 = arith.constant 0 : index
    %c0_10 = arith.constant 0 : index
    %c0_11 = arith.constant 0 : index
    %6 = vector.load %arg9[%c0_9, %c0_10, %c0_11] : memref<18x18x32xf32, #tpu.memory_space<vmem>>, vector<16x16x4xf32>
    %7 = vector.shape_cast %6 : vector<16x16x4xf32> to vector<256x4xf32>
    %c0_12 = arith.constant 0 : index
    %c1_13 = arith.constant 1 : index
    %c0_14 = arith.constant 0 : index
    %8 = vector.load %arg9[%c0_12, %c1_13, %c0_14] : memref<18x18x32xf32, #tpu.memory_space<vmem>>, vector<16x16x4xf32>
    %9 = vector.shape_cast %8 : vector<16x16x4xf32> to vector<256x4xf32>
    %c0_15 = arith.constant 0 : index
    %c2 = arith.constant 2 : index
    %c0_16 = arith.constant 0 : index
    %10 = vector.load %arg9[%c0_15, %c2, %c0_16] : memref<18x18x32xf32, #tpu.memory_space<vmem>>, vector<16x16x4xf32>
    %11 = vector.shape_cast %10 : vector<16x16x4xf32> to vector<256x4xf32>
    %12 = tpu.concatenate %7, %9, %11 in 1 : vector<256x4xf32>, vector<256x4xf32>, vector<256x4xf32> -> vector<256x12xf32>
    %c0_17 = arith.constant 0 : index
    %c0_18 = arith.constant 0 : index
    %c0_19 = arith.constant 0 : index
    %13 = vector.load %arg2[%c0_17, %c0_18, %c0_19] : memref<3x12x32xf32, #tpu.memory_space<vmem>>, vector<1x12x32xf32>
    %14 = vector.shape_cast %13 : vector<1x12x32xf32> to vector<12x32xf32>
    %cst_20 = arith.constant dense<0.000000e+00> : vector<256x32xf32>
    %15 = tpu.matmul %12, %14, %cst_20 {dimension_numbers = #tpu.dot_dimension_numbers<[1], [0], [0], [1], [0, 0, 1, 1], [], []>} : vector<256x12xf32>, vector<12x32xf32>, vector<256x32xf32> -> vector<256x32xf32>
    %16 = arith.addf %5, %15 : vector<256x32xf32>
    %c1_21 = arith.constant 1 : index
    %c0_22 = arith.constant 0 : index
    %c0_23 = arith.constant 0 : index
    %17 = vector.load %arg9[%c1_21, %c0_22, %c0_23] : memref<18x18x32xf32, #tpu.memory_space<vmem>>, vector<16x16x4xf32>
    %18 = vector.shape_cast %17 : vector<16x16x4xf32> to vector<256x4xf32>
    %c1_24 = arith.constant 1 : index
    %c1_25 = arith.constant 1 : index
    %c0_26 = arith.constant 0 : index
    %19 = vector.load %arg9[%c1_24, %c1_25, %c0_26] : memref<18x18x32xf32, #tpu.memory_space<vmem>>, vector<16x16x4xf32>
    %20 = vector.shape_cast %19 : vector<16x16x4xf32> to vector<256x4xf32>
    %c1_27 = arith.constant 1 : index
    %c2_28 = arith.constant 2 : index
    %c0_29 = arith.constant 0 : index
    %21 = vector.load %arg9[%c1_27, %c2_28, %c0_29] : memref<18x18x32xf32, #tpu.memory_space<vmem>>, vector<16x16x4xf32>
    %22 = vector.shape_cast %21 : vector<16x16x4xf32> to vector<256x4xf32>
    %23 = tpu.concatenate %18, %20, %22 in 1 : vector<256x4xf32>, vector<256x4xf32>, vector<256x4xf32> -> vector<256x12xf32>
    %c1_30 = arith.constant 1 : index
    %c0_31 = arith.constant 0 : index
    %c0_32 = arith.constant 0 : index
    %24 = vector.load %arg2[%c1_30, %c0_31, %c0_32] : memref<3x12x32xf32, #tpu.memory_space<vmem>>, vector<1x12x32xf32>
    %25 = vector.shape_cast %24 : vector<1x12x32xf32> to vector<12x32xf32>
    %cst_33 = arith.constant dense<0.000000e+00> : vector<256x32xf32>
    %26 = tpu.matmul %23, %25, %cst_33 {dimension_numbers = #tpu.dot_dimension_numbers<[1], [0], [0], [1], [0, 0, 1, 1], [], []>} : vector<256x12xf32>, vector<12x32xf32>, vector<256x32xf32> -> vector<256x32xf32>
    %27 = arith.addf %16, %26 : vector<256x32xf32>
    %c2_34 = arith.constant 2 : index
    %c0_35 = arith.constant 0 : index
    %c0_36 = arith.constant 0 : index
    %28 = vector.load %arg9[%c2_34, %c0_35, %c0_36] : memref<18x18x32xf32, #tpu.memory_space<vmem>>, vector<16x16x4xf32>
    %29 = vector.shape_cast %28 : vector<16x16x4xf32> to vector<256x4xf32>
    %c2_37 = arith.constant 2 : index
    %c1_38 = arith.constant 1 : index
    %c0_39 = arith.constant 0 : index
    %30 = vector.load %arg9[%c2_37, %c1_38, %c0_39] : memref<18x18x32xf32, #tpu.memory_space<vmem>>, vector<16x16x4xf32>
    %31 = vector.shape_cast %30 : vector<16x16x4xf32> to vector<256x4xf32>
    %c2_40 = arith.constant 2 : index
    %c2_41 = arith.constant 2 : index
    %c0_42 = arith.constant 0 : index
    %32 = vector.load %arg9[%c2_40, %c2_41, %c0_42] : memref<18x18x32xf32, #tpu.memory_space<vmem>>, vector<16x16x4xf32>
    %33 = vector.shape_cast %32 : vector<16x16x4xf32> to vector<256x4xf32>
    %34 = tpu.concatenate %29, %31, %33 in 1 : vector<256x4xf32>, vector<256x4xf32>, vector<256x4xf32> -> vector<256x12xf32>
    %c2_43 = arith.constant 2 : index
    %c0_44 = arith.constant 0 : index
    %c0_45 = arith.constant 0 : index
    %35 = vector.load %arg2[%c2_43, %c0_44, %c0_45] : memref<3x12x32xf32, #tpu.memory_space<vmem>>, vector<1x12x32xf32>
    %36 = vector.shape_cast %35 : vector<1x12x32xf32> to vector<12x32xf32>
    %cst_46 = arith.constant dense<0.000000e+00> : vector<256x32xf32>
    %37 = tpu.matmul %34, %36, %cst_46 {dimension_numbers = #tpu.dot_dimension_numbers<[1], [0], [0], [1], [0, 0, 1, 1], [], []>} : vector<256x12xf32>, vector<12x32xf32>, vector<256x32xf32> -> vector<256x32xf32>
    %38 = arith.addf %27, %37 : vector<256x32xf32>
    %c0_47 = arith.constant 0 : index
    %c0_48 = arith.constant 0 : index
    %39 = vector.load %arg3[%c0_47, %c0_48] : memref<1x32xf32, #tpu.memory_space<vmem>>, vector<1x32xf32>
    %40 = vector.broadcast %39 : vector<1x32xf32> to vector<256x32xf32>
    %41 = arith.addf %38, %40 : vector<256x32xf32>
    %cst_49 = arith.constant 0.000000e+00 : f32
    %42 = vector.broadcast %cst_49 : f32 to vector<256x32xf32>
    %43 = arith.maximumf %41, %42 : vector<256x32xf32>
    %44 = vector.shape_cast %43 : vector<256x32xf32> to vector<16x16x32xf32>
    %c1_50 = arith.constant 1 : index
    %c1_51 = arith.constant 1 : index
    %c0_52 = arith.constant 0 : index
    %45 = vector.load %arg9[%c1_50, %c1_51, %c0_52] : memref<18x18x32xf32, #tpu.memory_space<vmem>>, vector<16x16x32xf32>
    tpu.vector_store %arg9[%c1_50, %c1_51, %c0_52], %44 {strides = array<i32>} : memref<18x18x32xf32, #tpu.memory_space<vmem>>, vector<16x16x32xf32>,
    %cst_53 = arith.constant 0.000000e+00 : f32
    %46 = vector.broadcast %cst_53 : f32 to vector<256x32xf32>
    %c0_54 = arith.constant 0 : index
    %c0_55 = arith.constant 0 : index
    %c0_56 = arith.constant 0 : index
    %47 = vector.load %arg9[%c0_54, %c0_55, %c0_56] : memref<18x18x32xf32, #tpu.memory_space<vmem>>, vector<16x16x32xf32>
    %48 = vector.shape_cast %47 : vector<16x16x32xf32> to vector<256x32xf32>
    %c0_57 = arith.constant 0 : index
    %c1_58 = arith.constant 1 : index
    %c0_59 = arith.constant 0 : index
    %49 = vector.load %arg9[%c0_57, %c1_58, %c0_59] : memref<18x18x32xf32, #tpu.memory_space<vmem>>, vector<16x16x32xf32>
    %50 = vector.shape_cast %49 : vector<16x16x32xf32> to vector<256x32xf32>
    %c0_60 = arith.constant 0 : index
    %c2_61 = arith.constant 2 : index
    %c0_62 = arith.constant 0 : index
    %51 = vector.load %arg9[%c0_60, %c2_61, %c0_62] : memref<18x18x32xf32, #tpu.memory_space<vmem>>, vector<16x16x32xf32>
    %52 = vector.shape_cast %51 : vector<16x16x32xf32> to vector<256x32xf32>
    %53 = tpu.concatenate %48, %50, %52 in 1 : vector<256x32xf32>, vector<256x32xf32>, vector<256x32xf32> -> vector<256x96xf32>
    %c0_63 = arith.constant 0 : index
    %c0_64 = arith.constant 0 : index
    %c0_65 = arith.constant 0 : index
    %54 = vector.load %arg4[%c0_63, %c0_64, %c0_65] : memref<3x96x32xf32, #tpu.memory_space<vmem>>, vector<1x96x32xf32>
    %55 = vector.shape_cast %54 : vector<1x96x32xf32> to vector<96x32xf32>
    %cst_66 = arith.constant dense<0.000000e+00> : vector<256x32xf32>
    %56 = tpu.matmul %53, %55, %cst_66 {dimension_numbers = #tpu.dot_dimension_numbers<[1], [0], [0], [1], [0, 0, 1, 1], [], []>} : vector<256x96xf32>, vector<96x32xf32>, vector<256x32xf32> -> vector<256x32xf32>
    %57 = arith.addf %46, %56 : vector<256x32xf32>
    %c1_67 = arith.constant 1 : index
    %c0_68 = arith.constant 0 : index
    %c0_69 = arith.constant 0 : index
    %58 = vector.load %arg9[%c1_67, %c0_68, %c0_69] : memref<18x18x32xf32, #tpu.memory_space<vmem>>, vector<16x16x32xf32>
    %59 = vector.shape_cast %58 : vector<16x16x32xf32> to vector<256x32xf32>
    %c1_70 = arith.constant 1 : index
    %c1_71 = arith.constant 1 : index
    %c0_72 = arith.constant 0 : index
    %60 = vector.load %arg9[%c1_70, %c1_71, %c0_72] : memref<18x18x32xf32, #tpu.memory_space<vmem>>, vector<16x16x32xf32>
    %61 = vector.shape_cast %60 : vector<16x16x32xf32> to vector<256x32xf32>
    %c1_73 = arith.constant 1 : index
    %c2_74 = arith.constant 2 : index
    %c0_75 = arith.constant 0 : index
    %62 = vector.load %arg9[%c1_73, %c2_74, %c0_75] : memref<18x18x32xf32, #tpu.memory_space<vmem>>, vector<16x16x32xf32>
    %63 = vector.shape_cast %62 : vector<16x16x32xf32> to vector<256x32xf32>
    %64 = tpu.concatenate %59, %61, %63 in 1 : vector<256x32xf32>, vector<256x32xf32>, vector<256x32xf32> -> vector<256x96xf32>
    %c1_76 = arith.constant 1 : index
    %c0_77 = arith.constant 0 : index
    %c0_78 = arith.constant 0 : index
    %65 = vector.load %arg4[%c1_76, %c0_77, %c0_78] : memref<3x96x32xf32, #tpu.memory_space<vmem>>, vector<1x96x32xf32>
    %66 = vector.shape_cast %65 : vector<1x96x32xf32> to vector<96x32xf32>
    %cst_79 = arith.constant dense<0.000000e+00> : vector<256x32xf32>
    %67 = tpu.matmul %64, %66, %cst_79 {dimension_numbers = #tpu.dot_dimension_numbers<[1], [0], [0], [1], [0, 0, 1, 1], [], []>} : vector<256x96xf32>, vector<96x32xf32>, vector<256x32xf32> -> vector<256x32xf32>
    %68 = arith.addf %57, %67 : vector<256x32xf32>
    %c2_80 = arith.constant 2 : index
    %c0_81 = arith.constant 0 : index
    %c0_82 = arith.constant 0 : index
    %69 = vector.load %arg9[%c2_80, %c0_81, %c0_82] : memref<18x18x32xf32, #tpu.memory_space<vmem>>, vector<16x16x32xf32>
    %70 = vector.shape_cast %69 : vector<16x16x32xf32> to vector<256x32xf32>
    %c2_83 = arith.constant 2 : index
    %c1_84 = arith.constant 1 : index
    %c0_85 = arith.constant 0 : index
    %71 = vector.load %arg9[%c2_83, %c1_84, %c0_85] : memref<18x18x32xf32, #tpu.memory_space<vmem>>, vector<16x16x32xf32>
    %72 = vector.shape_cast %71 : vector<16x16x32xf32> to vector<256x32xf32>
    %c2_86 = arith.constant 2 : index
    %c2_87 = arith.constant 2 : index
    %c0_88 = arith.constant 0 : index
    %73 = vector.load %arg9[%c2_86, %c2_87, %c0_88] : memref<18x18x32xf32, #tpu.memory_space<vmem>>, vector<16x16x32xf32>
    %74 = vector.shape_cast %73 : vector<16x16x32xf32> to vector<256x32xf32>
    %75 = tpu.concatenate %70, %72, %74 in 1 : vector<256x32xf32>, vector<256x32xf32>, vector<256x32xf32> -> vector<256x96xf32>
    %c2_89 = arith.constant 2 : index
    %c0_90 = arith.constant 0 : index
    %c0_91 = arith.constant 0 : index
    %76 = vector.load %arg4[%c2_89, %c0_90, %c0_91] : memref<3x96x32xf32, #tpu.memory_space<vmem>>, vector<1x96x32xf32>
    %77 = vector.shape_cast %76 : vector<1x96x32xf32> to vector<96x32xf32>
    %cst_92 = arith.constant dense<0.000000e+00> : vector<256x32xf32>
    %78 = tpu.matmul %75, %77, %cst_92 {dimension_numbers = #tpu.dot_dimension_numbers<[1], [0], [0], [1], [0, 0, 1, 1], [], []>} : vector<256x96xf32>, vector<96x32xf32>, vector<256x32xf32> -> vector<256x32xf32>
    %79 = arith.addf %68, %78 : vector<256x32xf32>
    %c0_93 = arith.constant 0 : index
    %c0_94 = arith.constant 0 : index
    %80 = vector.load %arg5[%c0_93, %c0_94] : memref<1x32xf32, #tpu.memory_space<vmem>>, vector<1x32xf32>
    %81 = vector.broadcast %80 : vector<1x32xf32> to vector<256x32xf32>
    %82 = arith.addf %79, %81 : vector<256x32xf32>
    %cst_95 = arith.constant 0.000000e+00 : f32
    %83 = vector.broadcast %cst_95 : f32 to vector<256x32xf32>
    %84 = arith.maximumf %82, %83 : vector<256x32xf32>
    %c0_96 = arith.constant 0 : index
    %c0_97 = arith.constant 0 : index
    %85 = vector.load %arg6[%c0_96, %c0_97] : memref<32x32xf32, #tpu.memory_space<vmem>>, vector<32x32xf32>
    %cst_98 = arith.constant dense<0.000000e+00> : vector<32x256xf32>
    %86 = tpu.matmul %85, %84, %cst_98 {dimension_numbers = #tpu.dot_dimension_numbers<[1], [1], [0], [0], [0, 0, 1, 0], [], []>} : vector<32x32xf32>, vector<256x32xf32>, vector<32x256xf32> -> vector<32x256xf32>
    %c0_99 = arith.constant 0 : index
    %c0_100 = arith.constant 0 : index
    %87 = vector.load %arg7[%c0_99, %c0_100] : memref<32x1xf32, #tpu.memory_space<vmem>>, vector<32x1xf32>
    %88 = vector.broadcast %87 : vector<32x1xf32> to vector<32x256xf32>
    %89 = arith.addf %86, %88 : vector<32x256xf32>
    %c0_101 = arith.constant 0 : index
    %c0_102 = arith.constant 0 : index
    %c0_103 = arith.constant 0 : index
    %90 = vector.load %arg8[%c0_101, %c0_102, %c0_103] : memref<1x32x256xf32, #tpu.memory_space<vmem>>, vector<1x32x256xf32>
    %91 = vector.shape_cast %90 : vector<1x32x256xf32> to vector<32x256xf32>
    %92 = vector.shape_cast %89 : vector<32x256xf32> to vector<1x32x256xf32>
    tpu.vector_store %arg8[%c0_101, %c0_102, %c0_103], %92 {strides = array<i32>} : memref<1x32x256xf32, #tpu.memory_space<vmem>>, vector<1x32x256xf32>,
    return
  }
  func.func @transform_0(%arg0: i32) -> (i32, i32, i32, i32) {
    %c0_i32 = arith.constant 0 : i32
    %c0_i32_0 = arith.constant 0 : i32
    %c0_i32_1 = arith.constant 0 : i32
    %c0_i32_2 = arith.constant 0 : i32
    return %arg0, %c0_i32, %c0_i32_0, %c0_i32_1 : i32, i32, i32, i32
  }
  func.func @transform_1(%arg0: i32) -> (i32, i32, i32) {
    %c0_i32 = arith.constant 0 : i32
    %c0_i32_0 = arith.constant 0 : i32
    %c0_i32_1 = arith.constant 0 : i32
    %c0_i32_2 = arith.constant 0 : i32
    return %c0_i32, %c0_i32_0, %c0_i32_1 : i32, i32, i32
  }
  func.func @transform_2(%arg0: i32) -> (i32, i32) {
    %c0_i32 = arith.constant 0 : i32
    %c0_i32_0 = arith.constant 0 : i32
    %c0_i32_1 = arith.constant 0 : i32
    return %c0_i32, %c0_i32_0 : i32, i32
  }
  func.func @transform_3(%arg0: i32) -> (i32, i32, i32) {
    %c0_i32 = arith.constant 0 : i32
    %c0_i32_0 = arith.constant 0 : i32
    %c0_i32_1 = arith.constant 0 : i32
    %c0_i32_2 = arith.constant 0 : i32
    return %c0_i32, %c0_i32_0, %c0_i32_1 : i32, i32, i32
  }
  func.func @transform_4(%arg0: i32) -> (i32, i32) {
    %c0_i32 = arith.constant 0 : i32
    %c0_i32_0 = arith.constant 0 : i32
    %c0_i32_1 = arith.constant 0 : i32
    return %c0_i32, %c0_i32_0 : i32, i32
  }
  func.func @transform_5(%arg0: i32) -> (i32, i32) {
    %c0_i32 = arith.constant 0 : i32
    %c0_i32_0 = arith.constant 0 : i32
    %c0_i32_1 = arith.constant 0 : i32
    return %c0_i32, %c0_i32_0 : i32, i32
  }
  func.func @transform_6(%arg0: i32) -> (i32, i32) {
    %c0_i32 = arith.constant 0 : i32
    %c0_i32_0 = arith.constant 0 : i32
    %c0_i32_1 = arith.constant 0 : i32
    return %c0_i32, %c0_i32_0 : i32, i32
  }
  func.func @transform_7(%arg0: i32) -> (i32, i32, i32) {
    %c0_i32 = arith.constant 0 : i32
    %c0_i32_0 = arith.constant 0 : i32
    %c0_i32_1 = arith.constant 0 : i32
    return %arg0, %c0_i32, %c0_i32_0 : i32, i32, i32
  }
}

</mosaic_0001>

<llo_original>
// kernel: tpu_custom_call.1
$region0: #{tpu_custom_call.1}
  #allocation0 [shape = 'u32[]', space=smem, size = 0x4, offset = 0x4, fixed_abs, tag = 'smem constant byte address 0x4 - core index']
  #allocation1 [shape = 'u32[144,128]{1,0:T(1,128)}', space=vmem, size = 0x12000, scoped, tag = 'internal scratch']
  #allocation2 [shape = 'f32[18,18,32]{2,1,0:T(8,128)}', space=vmem, size = 0x36000, scoped, tag = 'scratch operand']
  %s0 = inlined_call_operand.vmem [shape: f32[2,16,16,4], index: 0, kind: input, shape index: {}]
  %s1 = inlined_call_operand.vmem [shape: f32[3,12,32], index: 1, kind: input, shape index: {}]
  %s2 = inlined_call_operand.vmem [shape: f32[1,32], index: 2, kind: input, shape index: {}]
  %s3 = inlined_call_operand.vmem [shape: f32[3,96,32], index: 3, kind: input, shape index: {}]
  %s4 = inlined_call_operand.vmem [shape: f32[1,32], index: 4, kind: input, shape index: {}]
  %s5 = inlined_call_operand.vmem [shape: f32[32,32], index: 5, kind: input, shape index: {}]
  %s6 = inlined_call_operand.vmem [shape: f32[32,1], index: 6, kind: input, shape index: {}]
  %s7 = inlined_call_operand.hbm [shape: f32[2,32,256], index: 7, kind: output, shape index: {}]
  %s8 = sld [smem:[#allocation0]]
  $region61: #{tpu_custom_call.1} parent=0
    _
  %s10 = ssub.s32 1, %s8
  %s11 = scalar_select 0, %s10, %s8
  $region1: #{tpu_custom_call.1} parent=0
    #allocation3 [shape = 'u8[65536]{0}', space=vmem, size = 0x10000, scoped, tag = 'output window, operand 0']
    #allocation4 [shape = 's32[2]{0}', space=sflag, size = 0x8, scoped, tag = 'scoped memory for tpu_custom_call.1']
    %12 = vsyncpa [#allocation4], 0
    %s13 = scalar_lea.sflag [#allocation4], 1
    %14 = vsyncpa %s13, 0
    loop: start=0, step=1, limit=4
    $region2: #{tpu_custom_call.1} parent=1 // loop_pre_header
      _
    $region3: #{tpu_custom_call.1} parent=1 // loop_header
      %s16 = sphi 0, %s20
      %p17 = scmp.ge.s32.totalorder %s16, 4
      %s26 = sphi 0, %s28
      %s29 = sphi 0, %s26
      %s30 = sphi 0, %s29
      %s46 = sphi 0, %s30
      %s50 = sphi 0, %s50
      %s52 = sphi 0, %s50
      %s53 = sphi 0, %s52
      %s67 = sphi 0, %s53
      %s71 = sphi 0, %s71
      %s73 = sphi 0, %s71
      %s74 = sphi 0, %s73
      %s88 = sphi 0, %s74
      %s92 = sphi 0, %s92
      %s94 = sphi 0, %s92
      %s95 = sphi 0, %s94
      %s109 = sphi 0, %s95
      %s113 = sphi 0, %s113
      %s115 = sphi 0, %s113
      %s116 = sphi 0, %s115
      %s130 = sphi 0, %s116
      %s134 = sphi 0, %s134
      %s136 = sphi 0, %s134
      %s137 = sphi 0, %s136
      %s151 = sphi 0, %s137
      %s155 = sphi 0, %s155
      %s157 = sphi 0, %s155
      %s158 = sphi 0, %s157
      %s172 = sphi 0, %s158
      %s178 = sphi 0, %s180
      %s181 = sphi 0, %s178
      %s182 = sphi 0, %s181
      %s198 = sphi 0, %s182
    $region4: #{tpu_custom_call.1} parent=1 // loop_header_branch
      %19 = sbr.rel (%p17) target = $region8
    $region5: #{tpu_custom_call.1} parent=1 // loop_body
      %s21 = ssub.s32 %s16, 1
      %s22 = ssub.s32 %s16, 2
      %s23 = sadd.s32 %s16, 1
      %s24 = ssub.s32 %s16, %s23
      %p25 = scmp.eq.s32.totalorder %s24, 0
      %s27 = sadd.s32 %s26, 1
      %s28 = scalar_select %p25, %s26, %s27
      %p31 = pneg %p25
      %p32 = scmp.eq.s32.totalorder %s16, 1
      %p33 = por %p31, %p32
      %p34 = scmp.ne.s32.totalorder %s26, %s29
      %p35 = scmp.eq.s32.totalorder %s16, 0
      %p36 = por %p34, %p35
      %p37 = scmp.ne.s32.totalorder %s26, %s29
      %p38 = scmp.eq.s32.totalorder %s21, 1
      %p39 = por %p37, %p38
      %p40 = scmp.ne.s32.totalorder %s29, %s30
      %p41 = scmp.eq.s32.totalorder %s21, 0
      %p42 = por %p40, %p41
      %p43 = scmp.ne.s32.totalorder %s29, %s30
      %p44 = scmp.eq.s32.totalorder %s22, 1
      %p45 = por %p43, %p44
      %p47 = scmp.ne.s32.totalorder %s30, %s46
      %p48 = scmp.eq.s32.totalorder %s22, 0
      %p49 = por %p47, %p48
      %s51 = sadd.s32 %s50, 1
      %p54 = scmp.eq.s32.totalorder %s16, 1
      %p55 = scmp.ne.s32.totalorder %s50, %s52
      %p56 = scmp.eq.s32.totalorder %s16, 0
      %p57 = por %p55, %p56
      %p58 = scmp.ne.s32.totalorder %s50, %s52
      %p59 = scmp.eq.s32.totalorder %s21, 1
      %p60 = por %p58, %p59
      %p61 = scmp.ne.s32.totalorder %s52, %s53
      %p62 = scmp.eq.s32.totalorder %s21, 0
      %p63 = por %p61, %p62
      %p64 = scmp.ne.s32.totalorder %s52, %s53
      %p65 = scmp.eq.s32.totalorder %s22, 1
      %p66 = por %p64, %p65
      %p68 = scmp.ne.s32.totalorder %s53, %s67
      %p69 = scmp.eq.s32.totalorder %s22, 0
      %p70 = por %p68, %p69
      %s72 = sadd.s32 %s71, 1
      %p75 = scmp.eq.s32.totalorder %s16, 1
      %p76 = scmp.ne.s32.totalorder %s71, %s73
      %p77 = scmp.eq.s32.totalorder %s16, 0
      %p78 = por %p76, %p77
      %p79 = scmp.ne.s32.totalorder %s71, %s73
      %p80 = scmp.eq.s32.totalorder %s21, 1
      %p81 = por %p79, %p80
      %p82 = scmp.ne.s32.totalorder %s73, %s74
      %p83 = scmp.eq.s32.totalorder %s21, 0
      %p84 = por %p82, %p83
      %p85 = scmp.ne.s32.totalorder %s73, %s74
      %p86 = scmp.eq.s32.totalorder %s22, 1
      %p87 = por %p85, %p86
      %p89 = scmp.ne.s32.totalorder %s74, %s88
      %p90 = scmp.eq.s32.totalorder %s22, 0
      %p91 = por %p89, %p90
      %s93 = sadd.s32 %s92, 1
      %p96 = scmp.eq.s32.totalorder %s16, 1
      %p97 = scmp.ne.s32.totalorder %s92, %s94
      %p98 = scmp.eq.s32.totalorder %s16, 0
      %p99 = por %p97, %p98
      %p100 = scmp.ne.s32.totalorder %s92, %s94
      %p101 = scmp.eq.s32.totalorder %s21, 1
      %p102 = por %p100, %p101
      %p103 = scmp.ne.s32.totalorder %s94, %s95
      %p104 = scmp.eq.s32.totalorder %s21, 0
      %p105 = por %p103, %p104
      %p106 = scmp.ne.s32.totalorder %s94, %s95
      %p107 = scmp.eq.s32.totalorder %s22, 1
      %p108 = por %p106, %p107
      %p110 = scmp.ne.s32.totalorder %s95, %s109
      %p111 = scmp.eq.s32.totalorder %s22, 0
      %p112 = por %p110, %p111
      %s114 = sadd.s32 %s113, 1
      %p117 = scmp.eq.s32.totalorder %s16, 1
      %p118 = scmp.ne.s32.totalorder %s113, %s115
      %p119 = scmp.eq.s32.totalorder %s16, 0
      %p120 = por %p118, %p119
      %p121 = scmp.ne.s32.totalorder %s113, %s115
      %p122 = scmp.eq.s32.totalorder %s21, 1
      %p123 = por %p121, %p122
      %p124 = scmp.ne.s32.totalorder %s115, %s116
      %p125 = scmp.eq.s32.totalorder %s21, 0
      %p126 = por %p124, %p125
      %p127 = scmp.ne.s32.totalorder %s115, %s116
      %p128 = scmp.eq.s32.totalorder %s22, 1
      %p129 = por %p127, %p128
      %p131 = scmp.ne.s32.totalorder %s116, %s130
      %p132 = scmp.eq.s32.totalorder %s22, 0
      %p133 = por %p131, %p132
      %s135 = sadd.s32 %s134, 1
      %p138 = scmp.eq.s32.totalorder %s16, 1
      %p139 = scmp.ne.s32.totalorder %s134, %s136
      %p140 = scmp.eq.s32.totalorder %s16, 0
      %p141 = por %p139, %p140
      %p142 = scmp.ne.s32.totalorder %s134, %s136
      %p143 = scmp.eq.s32.totalorder %s21, 1
      %p144 = por %p142, %p143
      %p145 = scmp.ne.s32.totalorder %s136, %s137
      %p146 = scmp.eq.s32.totalorder %s21, 0
      %p147 = por %p145, %p146
      %p148 = scmp.ne.s32.totalorder %s136, %s137
      %p149 = scmp.eq.s32.totalorder %s22, 1
      %p150 = por %p148, %p149
      %p152 = scmp.ne.s32.totalorder %s137, %s151
      %p153 = scmp.eq.s32.totalorder %s22, 0
      %p154 = por %p152, %p153
      %s156 = sadd.s32 %s155, 1
      %p159 = scmp.eq.s32.totalorder %s16, 1
      %p160 = scmp.ne.s32.totalorder %s155, %s157
      %p161 = scmp.eq.s32.totalorder %s16, 0
      %p162 = por %p160, %p161
      %p163 = scmp.ne.s32.totalorder %s155, %s157
      %p164 = scmp.eq.s32.totalorder %s21, 1
      %p165 = por %p163, %p164
      %p166 = scmp.ne.s32.totalorder %s157, %s158
      %p167 = scmp.eq.s32.totalorder %s21, 0
      %p168 = por %p166, %p167
      %p169 = scmp.ne.s32.totalorder %s157, %s158
      %p170 = scmp.eq.s32.totalorder %s22, 1
      %p171 = por %p169, %p170
      %p173 = scmp.ne.s32.totalorder %s158, %s172
      %p174 = scmp.eq.s32.totalorder %s22, 0
      %p175 = por %p173, %p174
      %s176 = ssub.s32 %s16, %s23
      %p177 = scmp.eq.s32.totalorder %s176, 0
      %s179 = sadd.s32 %s178, 1
      %s180 = scalar_select %p177, %s178, %s179
      %p183 = pneg %p177
      %p184 = scmp.eq.s32.totalorder %s16, 1
      %p185 = por %p183, %p184
      %p186 = scmp.ne.s32.totalorder %s178, %s181
      %p187 = scmp.eq.s32.totalorder %s16, 0
      %p188 = por %p186, %p187
      %p189 = scmp.ne.s32.totalorder %s178, %s181
      %p190 = scmp.eq.s32.totalorder %s21, 1
      %p191 = por %p189, %p190
      %p192 = scmp.ne.s32.totalorder %s181, %s182
      %p193 = scmp.eq.s32.totalorder %s21, 0
      %p194 = por %p192, %p193
      %p195 = scmp.ne.s32.totalorder %s181, %s182
      %p196 = scmp.eq.s32.totalorder %s22, 1
      %p197 = por %p195, %p196
      %p199 = scmp.ne.s32.totalorder %s182, %s198
      %p200 = scmp.eq.s32.totalorder %s22, 0
      %p201 = por %p199, %p200
      %p202 = scmp.le.s32.totalorder 1, %s16
      %p203 = scmp.lt.s32.totalorder %s16, 3
      %p204 = pnand %p202, %p203
      %p205 = pneg %p204
      // Predicated region
      $region9: #{tpu_custom_call.1} parent=5 // pred_check
        _
      $region10: #{tpu_custom_call.1} parent=5 // pred_check_branch
        %207 = sbr.rel (%p204) target = $region12
      $region11: #{tpu_custom_call.1} parent=5 // pred_region
        %s208 = ssub.s32 %s16, 1
        // Predicated region
        $region13: #{tpu_custom_call.1} parent=11 // pred_check
          %p209 = pneg %p63
        $region14: #{tpu_custom_call.1} parent=11 // pred_check_branch
          %211 = sbr.rel (%p209) target = $region16
        $region15: #{tpu_custom_call.1} parent=11 // pred_region
          _
        $region16: #{tpu_custom_call.1} parent=11 // pred_fallthru
          _
        // Predicated region
        $region17: #{tpu_custom_call.1} parent=11 // pred_check
          %p212 = pneg %p84
        $region18: #{tpu_custom_call.1} parent=11 // pred_check_branch
          %214 = sbr.rel (%p212) target = $region20
        $region19: #{tpu_custom_call.1} parent=11 // pred_region
          _
        $region20: #{tpu_custom_call.1} parent=11 // pred_fallthru
          _
        // Predicated region
        $region21: #{tpu_custom_call.1} parent=11 // pred_check
          %p215 = pneg %p105
        $region22: #{tpu_custom_call.1} parent=11 // pred_check_branch
          %217 = sbr.rel (%p215) target = $region24
        $region23: #{tpu_custom_call.1} parent=11 // pred_region
          _
        $region24: #{tpu_custom_call.1} parent=11 // pred_fallthru
          _
        // Predicated region
        $region25: #{tpu_custom_call.1} parent=11 // pred_check
          %p218 = pneg %p126
        $region26: #{tpu_custom_call.1} parent=11 // pred_check_branch
          %220 = sbr.rel (%p218) target = $region28
        $region27: #{tpu_custom_call.1} parent=11 // pred_region
          _
        $region28: #{tpu_custom_call.1} parent=11 // pred_fallthru
          _
        // Predicated region
        $region29: #{tpu_custom_call.1} parent=11 // pred_check
          %p221 = pneg %p147
        $region30: #{tpu_custom_call.1} parent=11 // pred_check_branch
          %223 = sbr.rel (%p221) target = $region32
        $region31: #{tpu_custom_call.1} parent=11 // pred_region
          _
        $region32: #{tpu_custom_call.1} parent=11 // pred_fallthru
          _
        // Predicated region
        $region33: #{tpu_custom_call.1} parent=11 // pred_check
          %p224 = pneg %p168
        $region34: #{tpu_custom_call.1} parent=11 // pred_check_branch
          %226 = sbr.rel (%p224) target = $region36
        $region35: #{tpu_custom_call.1} parent=11 // pred_region
          _
        $region36: #{tpu_custom_call.1} parent=11 // pred_fallthru
          _
      $region12: #{tpu_custom_call.1} parent=5 // pred_fallthru
        _
      %p227 = scmp.lt.s32.totalorder %s16, 2
      // Predicated region
      $region37: #{tpu_custom_call.1} parent=5 // pred_check
        %p228 = pneg %p227
      $region38: #{tpu_custom_call.1} parent=5 // pred_check_branch
        %230 = sbr.rel (%p228) target = $region40
      $region39: #{tpu_custom_call.1} parent=5 // pred_region
        // Predicated region
        $region41: #{tpu_custom_call.1} parent=39 // pred_check
          %p231 = pneg %p36
        $region42: #{tpu_custom_call.1} parent=39 // pred_check_branch
          %233 = sbr.rel (%p231) target = $region44
        $region43: #{tpu_custom_call.1} parent=39 // pred_region
          %p234 = scmp.lt.s32.totalorder %s16, 1
          %s235 = scalar_select %p234, %s16, 1
          %s236 = smul.addr %s235, 32
          %s237 = smul.addr %s236, 8
          %s238 = scalar_lea.vmem %s0, %s237
        $region44: #{tpu_custom_call.1} parent=39 // pred_fallthru
          _
      $region40: #{tpu_custom_call.1} parent=5 // pred_fallthru
        _
      %p239 = scmp.le.s32.totalorder 1, %s16
      %p240 = scmp.lt.s32.totalorder %s16, 3
      %p241 = pnand %p239, %p240
      %p242 = pneg %p241
      // Predicated region
      $region45: #{tpu_custom_call.1} parent=5 // pred_check
        _
      $region46: #{tpu_custom_call.1} parent=5 // pred_check_branch
        %244 = sbr.rel (%p241) target = $region48
      $region47: #{tpu_custom_call.1} parent=5 // pred_region
        %s245 = ssub.s32 %s16, 1
        %p246 = scmp.lt.s32.totalorder %s21, 1
        %s247 = scalar_select %p246, %s21, 1
        %s248 = smul.addr %s247, 32
        %s249 = smul.addr %s248, 8
        %s250 = scalar_lea.vmem %s0, %s249
        %p251 = pneg %p42
        %p252 = pneg %p39
        %p253 = pneg %p63
        %p254 = pneg %p60
        %p255 = pneg %p84
        %p256 = pneg %p81
        %p257 = pneg %p105
        %p258 = pneg %p102
        %p259 = pneg %p126
        %p260 = pneg %p123
        %p261 = pneg %p147
        %p262 = pneg %p144
        %p263 = pneg %p168
        %p264 = pneg %p165
        %p265 = pneg %p194
        %p266 = pneg %p191
        %s267 = sand.u32 %s181, 1
        %s268 = scalar_lea.sflag [#allocation4], %s267
        %s269 = sand.u32 %s181, 1
        %s270 = smul.addr %s269, 64
        %s271 = scalar_lea.vmem [#allocation3], %s270
        %p272 = scmp.lt.s32.totalorder %s21, 1
        %s273 = scalar_select %p272, %s21, 1
        %s274 = smul.addr %s273, 32
        %s275 = smul.addr %s274, 8
        %s276 = scalar_lea.vmem %s0, %s275
        %vm277 = vcmask 261120
        %278 = vst.msk [vmem:[#allocation2] sm:$0xff] %vm277, 0.0
        %279 = vst.msk [vmem:[#allocation2 + $0x8] sm:$0xff] %vm277, 0.0
        %vm280 = vcmask 254976
        %281 = vst.msk [vmem:[#allocation2 + $0x10] sm:$0x3] %vm280, 0.0
        %282 = vst.msk [vmem:[#allocation2 + $0x18] sm:$0xff] %vm277, 0.0
        %283 = vst.msk [vmem:[#allocation2 + $0x20] sm:$0xff] %vm277, 0.0
        %284 = vst.msk [vmem:[#allocation2 + $0x28] sm:$0x3] %vm280, 0.0
        %285 = vst.msk [vmem:[#allocation2 + $0x30] sm:$0xff] %vm277, 0.0
        %286 = vst.msk [vmem:[#allocation2 + $0x38] sm:$0xff] %vm277, 0.0
        %287 = vst.msk [vmem:[#allocation2 + $0x40] sm:$0x3] %vm280, 0.0
        %288 = vst.msk [vmem:[#allocation2 + $0x48] sm:$0xff] %vm277, 0.0
        %289 = vst.msk [vmem:[#allocation2 + $0x50] sm:$0xff] %vm277, 0.0
        %290 = vst.msk [vmem:[#allocation2 + $0x58] sm:$0x3] %vm280, 0.0
        %291 = vst.msk [vmem:[#allocation2 + $0x60] sm:$0xff] %vm277, 0.0
        %292 = vst.msk [vmem:[#allocation2 + $0x68] sm:$0xff] %vm277, 0.0
        %293 = vst.msk [vmem:[#allocation2 + $0x70] sm:$0x3] %vm280, 0.0
        %294 = vst.msk [vmem:[#allocation2 + $0x78] sm:$0xff] %vm277, 0.0
        %295 = vst.msk [vmem:[#allocation2 + $0x80] sm:$0xff] %vm277, 0.0
        %296 = vst.msk [vmem:[#allocation2 + $0x88] sm:$0x3] %vm280, 0.0
        %297 = vst.msk [vmem:[#allocation2 + $0x90] sm:$0xff] %vm277, 0.0
        %298 = vst.msk [vmem:[#allocation2 + $0x98] sm:$0xff] %vm277, 0.0
        %299 = vst.msk [vmem:[#allocation2 + $0xa0] sm:$0x3] %vm280, 0.0
        %300 = vst.msk [vmem:[#allocation2 + $0xa8] sm:$0xff] %vm277, 0.0
        %301 = vst.msk [vmem:[#allocation2 + $0xb0] sm:$0xff] %vm277, 0.0
        %302 = vst.msk [vmem:[#allocation2 + $0xb8] sm:$0x3] %vm280, 0.0
        %303 = vst.msk [vmem:[#allocation2 + $0xc0] sm:$0xff] %vm277, 0.0
        %304 = vst.msk [vmem:[#allocation2 + $0xc8] sm:$0xff] %vm277, 0.0
        %305 = vst.msk [vmem:[#allocation2 + $0xd0] sm:$0x3] %vm280, 0.0
        %306 = vst.msk [vmem:[#allocation2 + $0xd8] sm:$0xff] %vm277, 0.0
        %307 = vst.msk [vmem:[#allocation2 + $0xe0] sm:$0xff] %vm277, 0.0
        %308 = vst.msk [vmem:[#allocation2 + $0xe8] sm:$0x3] %vm280, 0.0
        %309 = vst.msk [vmem:[#allocation2 + $0xf0] sm:$0xff] %vm277, 0.0
        %310 = vst.msk [vmem:[#allocation2 + $0xf8] sm:$0xff] %vm277, 0.0
        %311 = vst.msk [vmem:[#allocation2 + $0x100] sm:$0x3] %vm280, 0.0
        %312 = vst.msk [vmem:[#allocation2 + $0x108] sm:$0xff] %vm277, 0.0
        %313 = vst.msk [vmem:[#allocation2 + $0x110] sm:$0xff] %vm277, 0.0
        %314 = vst.msk [vmem:[#allocation2 + $0x118] sm:$0x3] %vm280, 0.0
        %315 = vst.msk [vmem:[#allocation2 + $0x120] sm:$0xff] %vm277, 0.0
        %316 = vst.msk [vmem:[#allocation2 + $0x128] sm:$0xff] %vm277, 0.0
        %317 = vst.msk [vmem:[#allocation2 + $0x130] sm:$0x3] %vm280, 0.0
        %318 = vst.msk [vmem:[#allocation2 + $0x138] sm:$0xff] %vm277, 0.0
        %319 = vst.msk [vmem:[#allocation2 + $0x140] sm:$0xff] %vm277, 0.0
        %320 = vst.msk [vmem:[#allocation2 + $0x148] sm:$0x3] %vm280, 0.0
        %321 = vst.msk [vmem:[#allocation2 + $0x150] sm:$0xff] %vm277, 0.0
        %322 = vst.msk [vmem:[#allocation2 + $0x158] sm:$0xff] %vm277, 0.0
        %323 = vst.msk [vmem:[#allocation2 + $0x160] sm:$0x3] %vm280, 0.0
        %324 = vst.msk [vmem:[#allocation2 + $0x168] sm:$0xff] %vm277, 0.0
        %325 = vst.msk [vmem:[#allocation2 + $0x170] sm:$0xff] %vm277, 0.0
        %326 = vst.msk [vmem:[#allocation2 + $0x178] sm:$0x3] %vm280, 0.0
        %327 = vst.msk [vmem:[#allocation2 + $0x180] sm:$0xff] %vm277, 0.0
        %328 = vst.msk [vmem:[#allocation2 + $0x188] sm:$0xff] %vm277, 0.0
        %329 = vst.msk [vmem:[#allocation2 + $0x190] sm:$0x3] %vm280, 0.0
        %330 = vst.msk [vmem:[#allocation2 + $0x198] sm:$0xff] %vm277, 0.0
        %331 = vst.msk [vmem:[#allocation2 + $0x1a0] sm:$0xff] %vm277, 0.0
        %332 = vst.msk [vmem:[#allocation2 + $0x1a8] sm:$0x3] %vm280, 0.0
        %v333 = vld [vmem:[%s276] sm:$0xff]
        %v334 = vld [vmem:[%s276 + $0x8] sm:$0xff]
        %v335 = vld [vmem:[%s276 + $0x10] sm:$0xff]
        %v336 = vld [vmem:[%s276 + $0x18] sm:$0xff]
        %v337 = vld [vmem:[%s276 + $0x20] sm:$0xff]
        %v338 = vld [vmem:[%s276 + $0x28] sm:$0xff]
        %v339 = vld [vmem:[%s276 + $0x30] sm:$0xff]
        %v340 = vld [vmem:[%s276 + $0x38] sm:$0xff]
        %v341 = vld [vmem:[%s276 + $0x40] sm:$0xff]
        %v342 = vld [vmem:[%s276 + $0x48] sm:$0xff]
        %v343 = vld [vmem:[%s276 + $0x50] sm:$0xff]
        %v344 = vld [vmem:[%s276 + $0x58] sm:$0xff]
        %v345 = vld [vmem:[%s276 + $0x60] sm:$0xff]
        %v346 = vld [vmem:[%s276 + $0x68] sm:$0xff]
        %v347 = vld [vmem:[%s276 + $0x70] sm:$0xff]
        %v348 = vld [vmem:[%s276 + $0x78] sm:$0xff]
        %v349 = vld [vmem:[%s276 + $0x80] sm:$0xff]
        %v350 = vld [vmem:[%s276 + $0x88] sm:$0xff]
        %v351 = vld [vmem:[%s276 + $0x90] sm:$0xff]
        %v352 = vld [vmem:[%s276 + $0x98] sm:$0xff]
        %v353 = vld [vmem:[%s276 + $0xa0] sm:$0xff]
        %v354 = vld [vmem:[%s276 + $0xa8] sm:$0xff]
        %v355 = vld [vmem:[%s276 + $0xb0] sm:$0xff]
        %v356 = vld [vmem:[%s276 + $0xb8] sm:$0xff]
        %v357 = vld [vmem:[%s276 + $0xc0] sm:$0xff]
        %v358 = vld [vmem:[%s276 + $0xc8] sm:$0xff]
        %v359 = vld [vmem:[%s276 + $0xd0] sm:$0xff]
        %v360 = vld [vmem:[%s276 + $0xd8] sm:$0xff]
        %v361 = vld [vmem:[%s276 + $0xe0] sm:$0xff]
        %v362 = vld [vmem:[%s276 + $0xe8] sm:$0xff]
        %v363 = vld [vmem:[%s276 + $0xf0] sm:$0xff]
        %v364 = vld [vmem:[%s276 + $0xf8] sm:$0xff]
        %s365 = scalar_lea.vmem [#allocation2], 24
        %vm366 = vcmask 31744
        %367 = vst.msk [vmem:[%s365 + $0x1] sm:$0xff] %vm366, %v333
        %368 = vst.msk [vmem:[%s365 + $0x9] sm:$0xff] %vm366, %v334
        %369 = vst.msk [vmem:[%s365 + $0x19] sm:$0xff] %vm366, %v335
        %370 = vst.msk [vmem:[%s365 + $0x21] sm:$0xff] %vm366, %v336
        %371 = vst.msk [vmem:[%s365 + $0x31] sm:$0xff] %vm366, %v337
        %372 = vst.msk [vmem:[%s365 + $0x39] sm:$0xff] %vm366, %v338
        %373 = vst.msk [vmem:[%s365 + $0x49] sm:$0xff] %vm366, %v339
        %374 = vst.msk [vmem:[%s365 + $0x51] sm:$0xff] %vm366, %v340
        %375 = vst.msk [vmem:[%s365 + $0x61] sm:$0xff] %vm366, %v341
        %376 = vst.msk [vmem:[%s365 + $0x69] sm:$0xff] %vm366, %v342
        %377 = vst.msk [vmem:[%s365 + $0x79] sm:$0xff] %vm366, %v343
        %378 = vst.msk [vmem:[%s365 + $0x81] sm:$0xff] %vm366, %v344
        %379 = vst.msk [vmem:[%s365 + $0x91] sm:$0xff] %vm366, %v345
        %380 = vst.msk [vmem:[%s365 + $0x99] sm:$0xff] %vm366, %v346
        %381 = vst.msk [vmem:[%s365 + $0xa9] sm:$0xff] %vm366, %v347
        %382 = vst.msk [vmem:[%s365 + $0xb1] sm:$0xff] %vm366, %v348
        %383 = vst.msk [vmem:[%s365 + $0xc1] sm:$0xff] %vm366, %v349
        %384 = vst.msk [vmem:[%s365 + $0xc9] sm:$0xff] %vm366, %v350
        %385 = vst.msk [vmem:[%s365 + $0xd9] sm:$0xff] %vm366, %v351
        %386 = vst.msk [vmem:[%s365 + $0xe1] sm:$0xff] %vm366, %v352
        %387 = vst.msk [vmem:[%s365 + $0xf1] sm:$0xff] %vm366, %v353
        %388 = vst.msk [vmem:[%s365 + $0xf9] sm:$0xff] %vm366, %v354
        %389 = vst.msk [vmem:[%s365 + $0x109] sm:$0xff] %vm366, %v355
        %390 = vst.msk [vmem:[%s365 + $0x111] sm:$0xff] %vm366, %v356
        %391 = vst.msk [vmem:[%s365 + $0x121] sm:$0xff] %vm366, %v357
        %392 = vst.msk [vmem:[%s365 + $0x129] sm:$0xff] %vm366, %v358
        %393 = vst.msk [vmem:[%s365 + $0x139] sm:$0xff] %vm366, %v359
        %394 = vst.msk [vmem:[%s365 + $0x141] sm:$0xff] %vm366, %v360
        %395 = vst.msk [vmem:[%s365 + $0x151] sm:$0xff] %vm366, %v361
        %396 = vst.msk [vmem:[%s365 + $0x159] sm:$0xff] %vm366, %v362
        %397 = vst.msk [vmem:[%s365 + $0x169] sm:$0xff] %vm366, %v363
        %398 = vst.msk [vmem:[%s365 + $0x171] sm:$0xff] %vm366, %v364
        %v399 = vld [vmem:[#allocation2] sm:$0xff]
        %v400 = vld [vmem:[#allocation2 + $0x8] sm:$0xff]
        %v401 = vld [vmem:[#allocation2 + $0x18] sm:$0xff]
        %v402 = vld [vmem:[#allocation2 + $0x20] sm:$0xff]
        %v403 = vld [vmem:[#allocation2 + $0x30] sm:$0xff]
        %v404 = vld [vmem:[#allocation2 + $0x38] sm:$0xff]
        %v405 = vld [vmem:[#allocation2 + $0x48] sm:$0xff]
        %v406 = vld [vmem:[#allocation2 + $0x50] sm:$0xff]
        %v407 = vld [vmem:[#allocation2 + $0x60] sm:$0xff]
        %v408 = vld [vmem:[#allocation2 + $0x68] sm:$0xff]
        %v409 = vld [vmem:[#allocation2 + $0x78] sm:$0xff]
        %v410 = vld [vmem:[#allocation2 + $0x80] sm:$0xff]
        %v411 = vld [vmem:[#allocation2 + $0x90] sm:$0xff]
        %v412 = vld [vmem:[#allocation2 + $0x98] sm:$0xff]
        %v413 = vld [vmem:[#allocation2 + $0xa8] sm:$0xff]
        %v414 = vld [vmem:[#allocation2 + $0xb0] sm:$0xff]
        %v415 = vld [vmem:[#allocation2 + $0xc0] sm:$0xff]
        %v416 = vld [vmem:[#allocation2 + $0xc8] sm:$0xff]
        %v417 = vld [vmem:[#allocation2 + $0xd8] sm:$0xff]
        %v418 = vld [vmem:[#allocation2 + $0xe0] sm:$0xff]
        %v419 = vld [vmem:[#allocation2 + $0xf0] sm:$0xff]
        %v420 = vld [vmem:[#allocation2 + $0xf8] sm:$0xff]
        %v421 = vld [vmem:[#allocation2 + $0x108] sm:$0xff]
        %v422 = vld [vmem:[#allocation2 + $0x110] sm:$0xff]
        %v423 = vld [vmem:[#allocation2 + $0x120] sm:$0xff]
        %v424 = vld [vmem:[#allocation2 + $0x128] sm:$0xff]
        %v425 = vld [vmem:[#allocation2 + $0x138] sm:$0xff]
        %v426 = vld [vmem:[#allocation2 + $0x140] sm:$0xff]
        %v427 = vld [vmem:[#allocation2 + $0x150] sm:$0xff]
        %v428 = vld [vmem:[#allocation2 + $0x158] sm:$0xff]
        %v429 = vld [vmem:[#allocation2 + $0x168] sm:$0xff]
        %v430 = vld [vmem:[#allocation2 + $0x170] sm:$0xff]
        %v431 = vld [vmem:[#allocation2 + $0x1] sm:$0xff]
        %v432 = vld [vmem:[#allocation2 + $0x9] sm:$0xff]
        %v433 = vld [vmem:[#allocation2 + $0x19] sm:$0xff]
        %v434 = vld [vmem:[#allocation2 + $0x21] sm:$0xff]
        %v435 = vld [vmem:[#allocation2 + $0x31] sm:$0xff]
        %v436 = vld [vmem:[#allocation2 + $0x39] sm:$0xff]
        %v437 = vld [vmem:[#allocation2 + $0x49] sm:$0xff]
        %v438 = vld [vmem:[#allocation2 + $0x51] sm:$0xff]
        %v439 = vld [vmem:[#allocation2 + $0x61] sm:$0xff]
        %v440 = vld [vmem:[#allocation2 + $0x69] sm:$0xff]
        %v441 = vld [vmem:[#allocation2 + $0x79] sm:$0xff]
        %v442 = vld [vmem:[#allocation2 + $0x81] sm:$0xff]
        %v443 = vld [vmem:[#allocation2 + $0x91] sm:$0xff]
        %v444 = vld [vmem:[#allocation2 + $0x99] sm:$0xff]
        %v445 = vld [vmem:[#allocation2 + $0xa9] sm:$0xff]
        %v446 = vld [vmem:[#allocation2 + $0xb1] sm:$0xff]
        %v447 = vld [vmem:[#allocation2 + $0xc1] sm:$0xff]
        %v448 = vld [vmem:[#allocation2 + $0xc9] sm:$0xff]
        %v449 = vld [vmem:[#allocation2 + $0xd9] sm:$0xff]
        %v450 = vld [vmem:[#allocation2 + $0xe1] sm:$0xff]
        %v451 = vld [vmem:[#allocation2 + $0xf1] sm:$0xff]
        %v452 = vld [vmem:[#allocation2 + $0xf9] sm:$0xff]
        %v453 = vld [vmem:[#allocation2 + $0x109] sm:$0xff]
        %v454 = vld [vmem:[#allocation2 + $0x111] sm:$0xff]
        %v455 = vld [vmem:[#allocation2 + $0x121] sm:$0xff]
        %v456 = vld [vmem:[#allocation2 + $0x129] sm:$0xff]
        %v457 = vld [vmem:[#allocation2 + $0x139] sm:$0xff]
        %v458 = vld [vmem:[#allocation2 + $0x141] sm:$0xff]
        %v459 = vld [vmem:[#allocation2 + $0x151] sm:$0xff]
        %v460 = vld [vmem:[#allocation2 + $0x159] sm:$0xff]
        %v461 = vld [vmem:[#allocation2 + $0x169] sm:$0xff]
        %v462 = vld [vmem:[#allocation2 + $0x171] sm:$0xff]
        %v463 = vld [vmem:[#allocation2 + $0x2] sm:$0xff]
        %v464 = vld [vmem:[#allocation2 + $0xa] sm:$0xff]
        %v465 = vld [vmem:[#allocation2 + $0x1a] sm:$0xff]
        %v466 = vld [vmem:[#allocation2 + $0x22] sm:$0xff]
        %v467 = vld [vmem:[#allocation2 + $0x32] sm:$0xff]
        %v468 = vld [vmem:[#allocation2 + $0x3a] sm:$0xff]
        %v469 = vld [vmem:[#allocation2 + $0x4a] sm:$0xff]
        %v470 = vld [vmem:[#allocation2 + $0x52] sm:$0xff]
        %v471 = vld [vmem:[#allocation2 + $0x62] sm:$0xff]
        %v472 = vld [vmem:[#allocation2 + $0x6a] sm:$0xff]
        %v473 = vld [vmem:[#allocation2 + $0x7a] sm:$0xff]
        %v474 = vld [vmem:[#allocation2 + $0x82] sm:$0xff]
        %v475 = vld [vmem:[#allocation2 + $0x92] sm:$0xff]
        %v476 = vld [vmem:[#allocation2 + $0x9a] sm:$0xff]
        %v477 = vld [vmem:[#allocation2 + $0xaa] sm:$0xff]
        %v478 = vld [vmem:[#allocation2 + $0xb2] sm:$0xff]
        %v479 = vld [vmem:[#allocation2 + $0xc2] sm:$0xff]
        %v480 = vld [vmem:[#allocation2 + $0xca] sm:$0xff]
        %v481 = vld [vmem:[#allocation2 + $0xda] sm:$0xff]
        %v482 = vld [vmem:[#allocation2 + $0xe2] sm:$0xff]
        %v483 = vld [vmem:[#allocation2 + $0xf2] sm:$0xff]
        %v484 = vld [vmem:[#allocation2 + $0xfa] sm:$0xff]
        %v485 = vld [vmem:[#allocation2 + $0x10a] sm:$0xff]
        %v486 = vld [vmem:[#allocation2 + $0x112] sm:$0xff]
        %v487 = vld [vmem:[#allocation2 + $0x122] sm:$0xff]
        %v488 = vld [vmem:[#allocation2 + $0x12a] sm:$0xff]
        %v489 = vld [vmem:[#allocation2 + $0x13a] sm:$0xff]
        %v490 = vld [vmem:[#allocation2 + $0x142] sm:$0xff]
        %v491 = vld [vmem:[#allocation2 + $0x152] sm:$0xff]
        %v492 = vld [vmem:[#allocation2 + $0x15a] sm:$0xff]
        %v493 = vld [vmem:[#allocation2 + $0x16a] sm:$0xff]
        %v494 = vld [vmem:[#allocation2 + $0x172] sm:$0xff]
        %527 = vrot.lane.b32.xlu0 %v431, 4
        %v528 = vpop.permute.xlu0 %527
        %529 = vrot.lane.b32.xlu0 %v432, 4
        %v530 = vpop.permute.xlu0 %529
        %531 = vrot.lane.b32.xlu0 %v433, 4
        %v532 = vpop.permute.xlu0 %531
        %533 = vrot.lane.b32.xlu0 %v434, 4
        %v534 = vpop.permute.xlu0 %533
        %535 = vrot.lane.b32.xlu0 %v435, 4
        %v536 = vpop.permute.xlu0 %535
        %537 = vrot.lane.b32.xlu0 %v436, 4
        %v538 = vpop.permute.xlu0 %537
        %539 = vrot.lane.b32.xlu0 %v437, 4
        %v540 = vpop.permute.xlu0 %539
        %541 = vrot.lane.b32.xlu0 %v438, 4
        %v542 = vpop.permute.xlu0 %541
        %543 = vrot.lane.b32.xlu0 %v439, 4
        %v544 = vpop.permute.xlu0 %543
        %545 = vrot.lane.b32.xlu0 %v440, 4
        %v546 = vpop.permute.xlu0 %545
        %547 = vrot.lane.b32.xlu0 %v441, 4
        %v548 = vpop.permute.xlu0 %547
        %549 = vrot.lane.b32.xlu0 %v442, 4
        %v550 = vpop.permute.xlu0 %549
        %551 = vrot.lane.b32.xlu0 %v443, 4
        %v552 = vpop.permute.xlu0 %551
        %553 = vrot.lane.b32.xlu0 %v444, 4
        %v554 = vpop.permute.xlu0 %553
        %555 = vrot.lane.b32.xlu0 %v445, 4
        %v556 = vpop.permute.xlu0 %555
        %557 = vrot.lane.b32.xlu0 %v446, 4
        %v558 = vpop.permute.xlu0 %557
        %559 = vrot.lane.b32.xlu0 %v447, 4
        %v560 = vpop.permute.xlu0 %559
        %561 = vrot.lane.b32.xlu0 %v448, 4
        %v562 = vpop.permute.xlu0 %561
        %563 = vrot.lane.b32.xlu0 %v449, 4
        %v564 = vpop.permute.xlu0 %563
        %565 = vrot.lane.b32.xlu0 %v450, 4
        %v566 = vpop.permute.xlu0 %565
        %567 = vrot.lane.b32.xlu0 %v451, 4
        %v568 = vpop.permute.xlu0 %567
        %569 = vrot.lane.b32.xlu0 %v452, 4
        %v570 = vpop.permute.xlu0 %569
        %571 = vrot.lane.b32.xlu0 %v453, 4
        %v572 = vpop.permute.xlu0 %571
        %573 = vrot.lane.b32.xlu0 %v454, 4
        %v574 = vpop.permute.xlu0 %573
        %575 = vrot.lane.b32.xlu0 %v455, 4
        %v576 = vpop.permute.xlu0 %575
        %577 = vrot.lane.b32.xlu0 %v456, 4
        %v578 = vpop.permute.xlu0 %577
        %579 = vrot.lane.b32.xlu0 %v457, 4
        %v580 = vpop.permute.xlu0 %579
        %581 = vrot.lane.b32.xlu0 %v458, 4
        %v582 = vpop.permute.xlu0 %581
        %583 = vrot.lane.b32.xlu0 %v459, 4
        %v584 = vpop.permute.xlu0 %583
        %585 = vrot.lane.b32.xlu0 %v460, 4
        %v586 = vpop.permute.xlu0 %585
        %587 = vrot.lane.b32.xlu0 %v461, 4
        %v588 = vpop.permute.xlu0 %587
        %589 = vrot.lane.b32.xlu0 %v462, 4
        %v590 = vpop.permute.xlu0 %589
        %655 = vrot.lane.b32.xlu0 %v463, 8
        %v656 = vpop.permute.xlu0 %655
        %657 = vrot.lane.b32.xlu0 %v464, 8
        %v658 = vpop.permute.xlu0 %657
        %659 = vrot.lane.b32.xlu0 %v465, 8
        %v660 = vpop.permute.xlu0 %659
        %661 = vrot.lane.b32.xlu0 %v466, 8
        %v662 = vpop.permute.xlu0 %661
        %663 = vrot.lane.b32.xlu0 %v467, 8
        %v664 = vpop.permute.xlu0 %663
        %665 = vrot.lane.b32.xlu0 %v468, 8
        %v666 = vpop.permute.xlu0 %665
        %667 = vrot.lane.b32.xlu0 %v469, 8
        %v668 = vpop.permute.xlu0 %667
        %669 = vrot.lane.b32.xlu0 %v470, 8
        %v670 = vpop.permute.xlu0 %669
        %671 = vrot.lane.b32.xlu0 %v471, 8
        %v672 = vpop.permute.xlu0 %671
        %673 = vrot.lane.b32.xlu0 %v472, 8
        %v674 = vpop.permute.xlu0 %673
        %675 = vrot.lane.b32.xlu0 %v473, 8
        %v676 = vpop.permute.xlu0 %675
        %677 = vrot.lane.b32.xlu0 %v474, 8
        %v678 = vpop.permute.xlu0 %677
        %679 = vrot.lane.b32.xlu0 %v475, 8
        %v680 = vpop.permute.xlu0 %679
        %681 = vrot.lane.b32.xlu0 %v476, 8
        %v682 = vpop.permute.xlu0 %681
        %683 = vrot.lane.b32.xlu0 %v477, 8
        %v684 = vpop.permute.xlu0 %683
        %685 = vrot.lane.b32.xlu0 %v478, 8
        %v686 = vpop.permute.xlu0 %685
        %687 = vrot.lane.b32.xlu0 %v479, 8
        %v688 = vpop.permute.xlu0 %687
        %689 = vrot.lane.b32.xlu0 %v480, 8
        %v690 = vpop.permute.xlu0 %689
        %691 = vrot.lane.b32.xlu0 %v481, 8
        %v692 = vpop.permute.xlu0 %691
        %693 = vrot.lane.b32.xlu0 %v482, 8
        %v694 = vpop.permute.xlu0 %693
        %695 = vrot.lane.b32.xlu0 %v483, 8
        %v696 = vpop.permute.xlu0 %695
        %697 = vrot.lane.b32.xlu0 %v484, 8
        %v698 = vpop.permute.xlu0 %697
        %699 = vrot.lane.b32.xlu0 %v485, 8
        %v700 = vpop.permute.xlu0 %699
        %701 = vrot.lane.b32.xlu0 %v486, 8
        %v702 = vpop.permute.xlu0 %701
        %703 = vrot.lane.b32.xlu0 %v487, 8
        %v704 = vpop.permute.xlu0 %703
        %705 = vrot.lane.b32.xlu0 %v488, 8
        %v706 = vpop.permute.xlu0 %705
        %707 = vrot.lane.b32.xlu0 %v489, 8
        %v708 = vpop.permute.xlu0 %707
        %709 = vrot.lane.b32.xlu0 %v490, 8
        %v710 = vpop.permute.xlu0 %709
        %711 = vrot.lane.b32.xlu0 %v491, 8
        %v712 = vpop.permute.xlu0 %711
        %713 = vrot.lane.b32.xlu0 %v492, 8
        %v714 = vpop.permute.xlu0 %713
        %715 = vrot.lane.b32.xlu0 %v493, 8
        %v716 = vpop.permute.xlu0 %715
        %717 = vrot.lane.b32.xlu0 %v494, 8
        %v718 = vpop.permute.xlu0 %717
        %v751 = vsel %vm366, %v399, %v528
        %v752 = vsel %vm366, %v400, %v530
        %v753 = vsel %vm366, %v401, %v532
        %v754 = vsel %vm366, %v402, %v534
        %v755 = vsel %vm366, %v403, %v536
        %v756 = vsel %vm366, %v404, %v538
        %v757 = vsel %vm366, %v405, %v540
        %v758 = vsel %vm366, %v406, %v542
        %v759 = vsel %vm366, %v407, %v544
        %v760 = vsel %vm366, %v408, %v546
        %v761 = vsel %vm366, %v409, %v548
        %v762 = vsel %vm366, %v410, %v550
        %v763 = vsel %vm366, %v411, %v552
        %v764 = vsel %vm366, %v412, %v554
        %v765 = vsel %vm366, %v413, %v556
        %v766 = vsel %vm366, %v414, %v558
        %v767 = vsel %vm366, %v415, %v560
        %v768 = vsel %vm366, %v416, %v562
        %v769 = vsel %vm366, %v417, %v564
        %v770 = vsel %vm366, %v418, %v566
        %v771 = vsel %vm366, %v419, %v568
        %v772 = vsel %vm366, %v420, %v570
        %v773 = vsel %vm366, %v421, %v572
        %v774 = vsel %vm366, %v422, %v574
        %v775 = vsel %vm366, %v423, %v576
        %v776 = vsel %vm366, %v424, %v578
        %v777 = vsel %vm366, %v425, %v580
        %v778 = vsel %vm366, %v426, %v582
        %v779 = vsel %vm366, %v427, %v584
        %v780 = vsel %vm366, %v428, %v586
        %v781 = vsel %vm366, %v429, %v588
        %v782 = vsel %vm366, %v430, %v590
        %vm783 = vcmask 64512
        %v784 = vsel %vm783, %v751, %v656
        %v785 = vsel %vm783, %v752, %v658
        %v786 = vsel %vm783, %v753, %v660
        %v787 = vsel %vm783, %v754, %v662
        %v788 = vsel %vm783, %v755, %v664
        %v789 = vsel %vm783, %v756, %v666
        %v790 = vsel %vm783, %v757, %v668
        %v791 = vsel %vm783, %v758, %v670
        %v792 = vsel %vm783, %v759, %v672
        %v793 = vsel %vm783, %v760, %v674
        %v794 = vsel %vm783, %v761, %v676
        %v795 = vsel %vm783, %v762, %v678
        %v796 = vsel %vm783, %v763, %v680
        %v797 = vsel %vm783, %v764, %v682
        %v798 = vsel %vm783, %v765, %v684
        %v799 = vsel %vm783, %v766, %v686
        %v800 = vsel %vm783, %v767, %v688
        %v801 = vsel %vm783, %v768, %v690
        %v802 = vsel %vm783, %v769, %v692
        %v803 = vsel %vm783, %v770, %v694
        %v804 = vsel %vm783, %v771, %v696
        %v805 = vsel %vm783, %v772, %v698
        %v806 = vsel %vm783, %v773, %v700
        %v807 = vsel %vm783, %v774, %v702
        %v808 = vsel %vm783, %v775, %v704
        %v809 = vsel %vm783, %v776, %v706
        %v810 = vsel %vm783, %v777, %v708
        %v811 = vsel %vm783, %v778, %v710
        %v812 = vsel %vm783, %v779, %v712
        %v813 = vsel %vm783, %v780, %v714
        %v814 = vsel %vm783, %v781, %v716
        %v815 = vsel %vm783, %v782, %v718
        %v816 = vld [vmem:[%s1] sm:$0xff]
        %v817 = vld [vmem:[%s1 + $0x8] sm:$0xf]
        %v818 = vld [vmem:[%s365] sm:$0xff]
        %v819 = vld [vmem:[%s365 + $0x8] sm:$0xff]
        %v820 = vld [vmem:[%s365 + $0x18] sm:$0xff]
        %v821 = vld [vmem:[%s365 + $0x20] sm:$0xff]
        %v822 = vld [vmem:[%s365 + $0x30] sm:$0xff]
        %v823 = vld [vmem:[%s365 + $0x38] sm:$0xff]
        %v824 = vld [vmem:[%s365 + $0x48] sm:$0xff]
        %v825 = vld [vmem:[%s365 + $0x50] sm:$0xff]
        %v826 = vld [vmem:[%s365 + $0x60] sm:$0xff]
        %v827 = vld [vmem:[%s365 + $0x68] sm:$0xff]
        %v828 = vld [vmem:[%s365 + $0x78] sm:$0xff]
        %v829 = vld [vmem:[%s365 + $0x80] sm:$0xff]
        %v830 = vld [vmem:[%s365 + $0x90] sm:$0xff]
        %v831 = vld [vmem:[%s365 + $0x98] sm:$0xff]
        %v832 = vld [vmem:[%s365 + $0xa8] sm:$0xff]
        %v833 = vld [vmem:[%s365 + $0xb0] sm:$0xff]
        %v834 = vld [vmem:[%s365 + $0xc0] sm:$0xff]
        %v835 = vld [vmem:[%s365 + $0xc8] sm:$0xff]
        %v836 = vld [vmem:[%s365 + $0xd8] sm:$0xff]
        %v837 = vld [vmem:[%s365 + $0xe0] sm:$0xff]
        %v838 = vld [vmem:[%s365 + $0xf0] sm:$0xff]
        %v839 = vld [vmem:[%s365 + $0xf8] sm:$0xff]
        %v840 = vld [vmem:[%s365 + $0x108] sm:$0xff]
        %v841 = vld [vmem:[%s365 + $0x110] sm:$0xff]
        %v842 = vld [vmem:[%s365 + $0x120] sm:$0xff]
        %v843 = vld [vmem:[%s365 + $0x128] sm:$0xff]
        %v844 = vld [vmem:[%s365 + $0x138] sm:$0xff]
        %v845 = vld [vmem:[%s365 + $0x140] sm:$0xff]
        %v846 = vld [vmem:[%s365 + $0x150] sm:$0xff]
        %v847 = vld [vmem:[%s365 + $0x158] sm:$0xff]
        %v848 = vld [vmem:[%s365 + $0x168] sm:$0xff]
        %v849 = vld [vmem:[%s365 + $0x170] sm:$0xff]
        %v850 = vld [vmem:[%s365 + $0x1] sm:$0xff]
        %v851 = vld [vmem:[%s365 + $0x9] sm:$0xff]
        %v852 = vld [vmem:[%s365 + $0x19] sm:$0xff]
        %v853 = vld [vmem:[%s365 + $0x21] sm:$0xff]
        %v854 = vld [vmem:[%s365 + $0x31] sm:$0xff]
        %v855 = vld [vmem:[%s365 + $0x39] sm:$0xff]
        %v856 = vld [vmem:[%s365 + $0x49] sm:$0xff]
        %v857 = vld [vmem:[%s365 + $0x51] sm:$0xff]
        %v858 = vld [vmem:[%s365 + $0x61] sm:$0xff]
        %v859 = vld [vmem:[%s365 + $0x69] sm:$0xff]
        %v860 = vld [vmem:[%s365 + $0x79] sm:$0xff]
        %v861 = vld [vmem:[%s365 + $0x81] sm:$0xff]
        %v862 = vld [vmem:[%s365 + $0x91] sm:$0xff]
        %v863 = vld [vmem:[%s365 + $0x99] sm:$0xff]
        %v864 = vld [vmem:[%s365 + $0xa9] sm:$0xff]
        %v865 = vld [vmem:[%s365 + $0xb1] sm:$0xff]
        %v866 = vld [vmem:[%s365 + $0xc1] sm:$0xff]
        %v867 = vld [vmem:[%s365 + $0xc9] sm:$0xff]
        %v868 = vld [vmem:[%s365 + $0xd9] sm:$0xff]
        %v869 = vld [vmem:[%s365 + $0xe1] sm:$0xff]
        %v870 = vld [vmem:[%s365 + $0xf1] sm:$0xff]
        %v871 = vld [vmem:[%s365 + $0xf9] sm:$0xff]
        %v872 = vld [vmem:[%s365 + $0x109] sm:$0xff]
        %v873 = vld [vmem:[%s365 + $0x111] sm:$0xff]
        %v874 = vld [vmem:[%s365 + $0x121] sm:$0xff]
        %v875 = vld [vmem:[%s365 + $0x129] sm:$0xff]
        %v876 = vld [vmem:[%s365 + $0x139] sm:$0xff]
        %v877 = vld [vmem:[%s365 + $0x141] sm:$0xff]
        %v878 = vld [vmem:[%s365 + $0x151] sm:$0xff]
        %v879 = vld [vmem:[%s365 + $0x159] sm:$0xff]
        %v880 = vld [vmem:[%s365 + $0x169] sm:$0xff]
        %v881 = vld [vmem:[%s365 + $0x171] sm:$0xff]
        %v882 = vld [vmem:[%s365 + $0x2] sm:$0xff]
        %v883 = vld [vmem:[%s365 + $0xa] sm:$0xff]
        %v884 = vld [vmem:[%s365 + $0x1a] sm:$0xff]
        %v885 = vld [vmem:[%s365 + $0x22] sm:$0xff]
        %v886 = vld [vmem:[%s365 + $0x32] sm:$0xff]
        %v887 = vld [vmem:[%s365 + $0x3a] sm:$0xff]
        %v888 = vld [vmem:[%s365 + $0x4a] sm:$0xff]
        %v889 = vld [vmem:[%s365 + $0x52] sm:$0xff]
        %v890 = vld [vmem:[%s365 + $0x62] sm:$0xff]
        %v891 = vld [vmem:[%s365 + $0x6a] sm:$0xff]
        %v892 = vld [vmem:[%s365 + $0x7a] sm:$0xff]
        %v893 = vld [vmem:[%s365 + $0x82] sm:$0xff]
        %v894 = vld [vmem:[%s365 + $0x92] sm:$0xff]
        %v895 = vld [vmem:[%s365 + $0x9a] sm:$0xff]
        %v896 = vld [vmem:[%s365 + $0xaa] sm:$0xff]
        %v897 = vld [vmem:[%s365 + $0xb2] sm:$0xff]
        %v898 = vld [vmem:[%s365 + $0xc2] sm:$0xff]
        %v899 = vld [vmem:[%s365 + $0xca] sm:$0xff]
        %v900 = vld [vmem:[%s365 + $0xda] sm:$0xff]
        %v901 = vld [vmem:[%s365 + $0xe2] sm:$0xff]
        %v902 = vld [vmem:[%s365 + $0xf2] sm:$0xff]
        %v903 = vld [vmem:[%s365 + $0xfa] sm:$0xff]
        %v904 = vld [vmem:[%s365 + $0x10a] sm:$0xff]
        %v905 = vld [vmem:[%s365 + $0x112] sm:$0xff]
        %v906 = vld [vmem:[%s365 + $0x122] sm:$0xff]
        %v907 = vld [vmem:[%s365 + $0x12a] sm:$0xff]
        %v908 = vld [vmem:[%s365 + $0x13a] sm:$0xff]
        %v909 = vld [vmem:[%s365 + $0x142] sm:$0xff]
        %v910 = vld [vmem:[%s365 + $0x152] sm:$0xff]
        %v911 = vld [vmem:[%s365 + $0x15a] sm:$0xff]
        %v912 = vld [vmem:[%s365 + $0x16a] sm:$0xff]
        %v913 = vld [vmem:[%s365 + $0x172] sm:$0xff]
        %946 = vrot.lane.b32.xlu0 %v850, 4
        %v947 = vpop.permute.xlu0 %946
        %948 = vrot.lane.b32.xlu0 %v851, 4
        %v949 = vpop.permute.xlu0 %948
        %950 = vrot.lane.b32.xlu0 %v852, 4
        %v951 = vpop.permute.xlu0 %950
        %952 = vrot.lane.b32.xlu0 %v853, 4
        %v953 = vpop.permute.xlu0 %952
        %954 = vrot.lane.b32.xlu0 %v854, 4
        %v955 = vpop.permute.xlu0 %954
        %956 = vrot.lane.b32.xlu0 %v855, 4
        %v957 = vpop.permute.xlu0 %956
        %958 = vrot.lane.b32.xlu0 %v856, 4
        %v959 = vpop.permute.xlu0 %958
        %960 = vrot.lane.b32.xlu0 %v857, 4
        %v961 = vpop.permute.xlu0 %960
        %962 = vrot.lane.b32.xlu0 %v858, 4
        %v963 = vpop.permute.xlu0 %962
        %964 = vrot.lane.b32.xlu0 %v859, 4
        %v965 = vpop.permute.xlu0 %964
        %966 = vrot.lane.b32.xlu0 %v860, 4
        %v967 = vpop.permute.xlu0 %966
        %968 = vrot.lane.b32.xlu0 %v861, 4
        %v969 = vpop.permute.xlu0 %968
        %970 = vrot.lane.b32.xlu0 %v862, 4
        %v971 = vpop.permute.xlu0 %970
        %972 = vrot.lane.b32.xlu0 %v863, 4
        %v973 = vpop.permute.xlu0 %972
        %974 = vrot.lane.b32.xlu0 %v864, 4
        %v975 = vpop.permute.xlu0 %974
        %976 = vrot.lane.b32.xlu0 %v865, 4
        %v977 = vpop.permute.xlu0 %976
        %978 = vrot.lane.b32.xlu0 %v866, 4
        %v979 = vpop.permute.xlu0 %978
        %980 = vrot.lane.b32.xlu0 %v867, 4
        %v981 = vpop.permute.xlu0 %980
        %982 = vrot.lane.b32.xlu0 %v868, 4
        %v983 = vpop.permute.xlu0 %982
        %984 = vrot.lane.b32.xlu0 %v869, 4
        %v985 = vpop.permute.xlu0 %984
        %986 = vrot.lane.b32.xlu0 %v870, 4
        %v987 = vpop.permute.xlu0 %986
        %988 = vrot.lane.b32.xlu0 %v871, 4
        %v989 = vpop.permute.xlu0 %988
        %990 = vrot.lane.b32.xlu0 %v872, 4
        %v991 = vpop.permute.xlu0 %990
        %992 = vrot.lane.b32.xlu0 %v873, 4
        %v993 = vpop.permute.xlu0 %992
        %994 = vrot.lane.b32.xlu0 %v874, 4
        %v995 = vpop.permute.xlu0 %994
        %996 = vrot.lane.b32.xlu0 %v875, 4
        %v997 = vpop.permute.xlu0 %996
        %998 = vrot.lane.b32.xlu0 %v876, 4
        %v999 = vpop.permute.xlu0 %998
        %1000 = vrot.lane.b32.xlu0 %v877, 4
        %v1001 = vpop.permute.xlu0 %1000
        %1002 = vrot.lane.b32.xlu0 %v878, 4
        %v1003 = vpop.permute.xlu0 %1002
        %1004 = vrot.lane.b32.xlu0 %v879, 4
        %v1005 = vpop.permute.xlu0 %1004
        %1006 = vrot.lane.b32.xlu0 %v880, 4
        %v1007 = vpop.permute.xlu0 %1006
        %1008 = vrot.lane.b32.xlu0 %v881, 4
        %v1009 = vpop.permute.xlu0 %1008
        %1074 = vrot.lane.b32.xlu0 %v882, 8
        %v1075 = vpop.permute.xlu0 %1074
        %1076 = vrot.lane.b32.xlu0 %v883, 8
        %v1077 = vpop.permute.xlu0 %1076
        %1078 = vrot.lane.b32.xlu0 %v884, 8
        %v1079 = vpop.permute.xlu0 %1078
        %1080 = vrot.lane.b32.xlu0 %v885, 8
        %v1081 = vpop.permute.xlu0 %1080
        %1082 = vrot.lane.b32.xlu0 %v886, 8
        %v1083 = vpop.permute.xlu0 %1082
        %1084 = vrot.lane.b32.xlu0 %v887, 8
        %v1085 = vpop.permute.xlu0 %1084
        %1086 = vrot.lane.b32.xlu0 %v888, 8
        %v1087 = vpop.permute.xlu0 %1086
        %1088 = vrot.lane.b32.xlu0 %v889, 8
        %v1089 = vpop.permute.xlu0 %1088
        %1090 = vrot.lane.b32.xlu0 %v890, 8
        %v1091 = vpop.permute.xlu0 %1090
        %1092 = vrot.lane.b32.xlu0 %v891, 8
        %v1093 = vpop.permute.xlu0 %1092
        %1094 = vrot.lane.b32.xlu0 %v892, 8
        %v1095 = vpop.permute.xlu0 %1094
        %1096 = vrot.lane.b32.xlu0 %v893, 8
        %v1097 = vpop.permute.xlu0 %1096
        %1098 = vrot.lane.b32.xlu0 %v894, 8
        %v1099 = vpop.permute.xlu0 %1098
        %1100 = vrot.lane.b32.xlu0 %v895, 8
        %v1101 = vpop.permute.xlu0 %1100
        %1102 = vrot.lane.b32.xlu0 %v896, 8
        %v1103 = vpop.permute.xlu0 %1102
        %1104 = vrot.lane.b32.xlu0 %v897, 8
        %v1105 = vpop.permute.xlu0 %1104
        %1106 = vrot.lane.b32.xlu0 %v898, 8
        %v1107 = vpop.permute.xlu0 %1106
        %1108 = vrot.lane.b32.xlu0 %v899, 8
        %v1109 = vpop.permute.xlu0 %1108
        %1110 = vrot.lane.b32.xlu0 %v900, 8
        %v1111 = vpop.permute.xlu0 %1110
        %1112 = vrot.lane.b32.xlu0 %v901, 8
        %v1113 = vpop.permute.xlu0 %1112
        %1114 = vrot.lane.b32.xlu0 %v902, 8
        %v1115 = vpop.permute.xlu0 %1114
        %1116 = vrot.lane.b32.xlu0 %v903, 8
        %v1117 = vpop.permute.xlu0 %1116
        %1118 = vrot.lane.b32.xlu0 %v904, 8
        %v1119 = vpop.permute.xlu0 %1118
        %1120 = vrot.lane.b32.xlu0 %v905, 8
        %v1121 = vpop.permute.xlu0 %1120
        %1122 = vrot.lane.b32.xlu0 %v906, 8
        %v1123 = vpop.permute.xlu0 %1122
        %1124 = vrot.lane.b32.xlu0 %v907, 8
        %v1125 = vpop.permute.xlu0 %1124
        %1126 = vrot.lane.b32.xlu0 %v908, 8
        %v1127 = vpop.permute.xlu0 %1126
        %1128 = vrot.lane.b32.xlu0 %v909, 8
        %v1129 = vpop.permute.xlu0 %1128
        %1130 = vrot.lane.b32.xlu0 %v910, 8
        %v1131 = vpop.permute.xlu0 %1130
        %1132 = vrot.lane.b32.xlu0 %v911, 8
        %v1133 = vpop.permute.xlu0 %1132
        %1134 = vrot.lane.b32.xlu0 %v912, 8
        %v1135 = vpop.permute.xlu0 %1134
        %1136 = vrot.lane.b32.xlu0 %v913, 8
        %v1137 = vpop.permute.xlu0 %1136
        %v1170 = vsel %vm366, %v818, %v947
        %v1171 = vsel %vm366, %v819, %v949
        %v1172 = vsel %vm366, %v820, %v951
        %v1173 = vsel %vm366, %v821, %v953
        %v1174 = vsel %vm366, %v822, %v955
        %v1175 = vsel %vm366, %v823, %v957
        %v1176 = vsel %vm366, %v824, %v959
        %v1177 = vsel %vm366, %v825, %v961
        %v1178 = vsel %vm366, %v826, %v963
        %v1179 = vsel %vm366, %v827, %v965
        %v1180 = vsel %vm366, %v828, %v967
        %v1181 = vsel %vm366, %v829, %v969
        %v1182 = vsel %vm366, %v830, %v971
        %v1183 = vsel %vm366, %v831, %v973
        %v1184 = vsel %vm366, %v832, %v975
        %v1185 = vsel %vm366, %v833, %v977
        %v1186 = vsel %vm366, %v834, %v979
        %v1187 = vsel %vm366, %v835, %v981
        %v1188 = vsel %vm366, %v836, %v983
        %v1189 = vsel %vm366, %v837, %v985
        %v1190 = vsel %vm366, %v838, %v987
        %v1191 = vsel %vm366, %v839, %v989
        %v1192 = vsel %vm366, %v840, %v991
        %v1193 = vsel %vm366, %v841, %v993
        %v1194 = vsel %vm366, %v842, %v995
        %v1195 = vsel %vm366, %v843, %v997
        %v1196 = vsel %vm366, %v844, %v999
        %v1197 = vsel %vm366, %v845, %v1001
        %v1198 = vsel %vm366, %v846, %v1003
        %v1199 = vsel %vm366, %v847, %v1005
        %v1200 = vsel %vm366, %v848, %v1007
        %v1201 = vsel %vm366, %v849, %v1009
        %v1202 = vsel %vm783, %v1170, %v1075
        %v1203 = vsel %vm783, %v1171, %v1077
        %v1204 = vsel %vm783, %v1172, %v1079
        %v1205 = vsel %vm783, %v1173, %v1081
        %v1206 = vsel %vm783, %v1174, %v1083
        %v1207 = vsel %vm783, %v1175, %v1085
        %v1208 = vsel %vm783, %v1176, %v1087
        %v1209 = vsel %vm783, %v1177, %v1089
        %v1210 = vsel %vm783, %v1178, %v1091
        %v1211 = vsel %vm783, %v1179, %v1093
        %v1212 = vsel %vm783, %v1180, %v1095
        %v1213 = vsel %vm783, %v1181, %v1097
        %v1214 = vsel %vm783, %v1182, %v1099
        %v1215 = vsel %vm783, %v1183, %v1101
        %v1216 = vsel %vm783, %v1184, %v1103
        %v1217 = vsel %vm783, %v1185, %v1105
        %v1218 = vsel %vm783, %v1186, %v1107
        %v1219 = vsel %vm783, %v1187, %v1109
        %v1220 = vsel %vm783, %v1188, %v1111
        %v1221 = vsel %vm783, %v1189, %v1113
        %v1222 = vsel %vm783, %v1190, %v1115
        %v1223 = vsel %vm783, %v1191, %v1117
        %v1224 = vsel %vm783, %v1192, %v1119
        %v1225 = vsel %vm783, %v1193, %v1121
        %v1226 = vsel %vm783, %v1194, %v1123
        %v1227 = vsel %vm783, %v1195, %v1125
        %v1228 = vsel %vm783, %v1196, %v1127
        %v1229 = vsel %vm783, %v1197, %v1129
        %v1230 = vsel %vm783, %v1198, %v1131
        %v1231 = vsel %vm783, %v1199, %v1133
        %v1232 = vsel %vm783, %v1200, %v1135
        %v1233 = vsel %vm783, %v1201, %v1137
        %s1234 = scalar_lea.vmem %s1, 16
        %v1235 = vld [vmem:[%s1234] sm:$0xff]
        %v1236 = vld [vmem:[%s1234 + $0x8] sm:$0xf]
        %vm1237 = vcmask 97280
        %v1239 = vsel %vm1237, %v1202, 0
        %v1242 = vsel %vm1237, %v1203, 0
        %v1245 = vsel %vm1237, %v1204, 0
        %v1248 = vsel %vm1237, %v1205, 0
        %v1251 = vsel %vm1237, %v1206, 0
        %v1254 = vsel %vm1237, %v1207, 0
        %v1257 = vsel %vm1237, %v1208, 0
        %v1260 = vsel %vm1237, %v1209, 0
        %v1263 = vsel %vm1237, %v1210, 0
        %v1266 = vsel %vm1237, %v1211, 0
        %v1269 = vsel %vm1237, %v1212, 0
        %v1272 = vsel %vm1237, %v1213, 0
        %v1275 = vsel %vm1237, %v1214, 0
        %v1278 = vsel %vm1237, %v1215, 0
        %v1281 = vsel %vm1237, %v1216, 0
        %v1284 = vsel %vm1237, %v1217, 0
        %v1287 = vsel %vm1237, %v1218, 0
        %v1290 = vsel %vm1237, %v1219, 0
        %v1293 = vsel %vm1237, %v1220, 0
        %v1296 = vsel %vm1237, %v1221, 0
        %v1299 = vsel %vm1237, %v1222, 0
        %v1302 = vsel %vm1237, %v1223, 0
        %v1305 = vsel %vm1237, %v1224, 0
        %v1308 = vsel %vm1237, %v1225, 0
        %v1311 = vsel %vm1237, %v1226, 0
        %v1314 = vsel %vm1237, %v1227, 0
        %v1317 = vsel %vm1237, %v1228, 0
        %v1320 = vsel %vm1237, %v1229, 0
        %v1323 = vsel %vm1237, %v1230, 0
        %v1326 = vsel %vm1237, %v1231, 0
        %v1329 = vsel %vm1237, %v1232, 0
        %v1332 = vsel %vm1237, %v1233, 0
        %vm1334 = vcmask 1043456
        %v1336 = vsel %vm1334, %v1236, 0
        %1338 = vmatprep.subr.mxu0 0.0
        %1339 = vmatpush1.msra.mxu0 0.0
        %1340 = vmatprep.subr.mxu0 0.0
        %1341 = vmatpush1.msra.mxu0 0.0
        %1342 = vmatprep.subr.mxu0 0.0
        %1343 = vmatpush1.msra.mxu0 0.0
        %1344 = vmatprep.subr.mxu0 0.0
        %1345 = vmatpush1.msra.mxu0 0.0
        %1346 = vmatprep.subr.mxu0 0.0
        %1347 = vmatpush1.msra.mxu0 0.0
        %1348 = vmatprep.subr.mxu0 0.0
        %1349 = vmatpush1.msra.mxu0 0.0
        %1350 = vmatprep.subr.mxu0 0.0
        %1351 = vmatpush1.msra.mxu0 0.0
        %1352 = vmatprep.subr.mxu0 0.0
        %1353 = vmatpush1.msra.mxu0 0.0
        %1354 = vmatprep.subr.mxu0 0.0
        %1355 = vmatpush1.msra.mxu0 0.0
        %1356 = vmatprep.subr.mxu0 0.0
        %1357 = vmatpush1.msra.mxu0 0.0
        %1358 = vmatprep.subr.mxu0 0.0
        %1359 = vmatpush1.msra.mxu0 0.0
        %1360 = vmatprep.subr.mxu0 0.0
        %1361 = vmatpush1.msra.mxu0 0.0
        %1362 = vmatprep.subr.mxu0 0.0
        %1363 = vmatpush1.msra.mxu0 0.0
        %1364 = vmatprep.subr.mxu0 0.0
        %1365 = vmatpush1.msra.mxu0 0.0
        %1366 = vmatprep.subr.mxu0 0.0
        %1367 = vmatpush1.msra.mxu0 %v1336
        %1368 = vmatprep.subr.mxu0 0.0
        %1369 = vmatpush1.msra.mxu0 %v1235
        %1370 = vmatprep.subr.mxu0 0.0
        %1371 = vmatpush2.msra.mxu0 0.0
        %1372 = vmatprep.subr.mxu0 0.0
        %1373 = vmatpush2.msra.mxu0 0.0
        %1374 = vmatprep.subr.mxu0 0.0
        %1375 = vmatpush2.msra.mxu0 0.0
        %1376 = vmatprep.subr.mxu0 0.0
        %1377 = vmatpush2.msra.mxu0 0.0
        %1378 = vmatprep.subr.mxu0 0.0
        %1379 = vmatpush2.msra.mxu0 0.0
        %1380 = vmatprep.subr.mxu0 0.0
        %1381 = vmatpush2.msra.mxu0 0.0
        %1382 = vmatprep.subr.mxu0 0.0
        %1383 = vmatpush2.msra.mxu0 0.0
        %1384 = vmatprep.subr.mxu0 0.0
        %1385 = vmatpush2.msra.mxu0 0.0
        %1386 = vmatprep.subr.mxu0 0.0
        %1387 = vmatpush2.msra.mxu0 0.0
        %1388 = vmatprep.subr.mxu0 0.0
        %1389 = vmatpush2.msra.mxu0 0.0
        %1390 = vmatprep.subr.mxu0 0.0
        %1391 = vmatpush2.msra.mxu0 0.0
        %1392 = vmatprep.subr.mxu0 0.0
        %1393 = vmatpush2.msra.mxu0 0.0
        %1394 = vmatprep.subr.mxu0 0.0
        %1395 = vmatpush2.msra.mxu0 0.0
        %1396 = vmatprep.subr.mxu0 0.0
        %1397 = vmatpush2.msra.mxu0 0.0
        %1398 = vmatprep.subr.mxu0 0.0
        %1399 = vmatpush2.msra.mxu0 0.0
        %1400 = vmatprep.subr.mxu0 0.0
        %1401 = vmatpush2.msra.mxu0 0.0
        %1402 = vmatprep.mubr.f32.mxu0 0.0
        %1403 = vmatmul.mubr.f32.gmra.mxu0 %v1239
        %v1404 = vpop.f32.mrf.mxu0
        %v1405 = vadd.f32 0.0, %v1404
        %v1406 = vpop.f32.mrf.mxu0
        %1407 = vmatprep.mubr.f32.mxu0 0.0
        %1408 = vmatmul.mubr.f32.gmra.mxu0 %v1242
        %v1409 = vpop.f32.mrf.mxu0
        %v1410 = vadd.f32 0.0, %v1409
        %v1411 = vpop.f32.mrf.mxu0
        %1412 = vmatprep.mubr.f32.mxu0 0.0
        %1413 = vmatmul.mubr.f32.gmra.mxu0 %v1245
        %v1414 = vpop.f32.mrf.mxu0
        %v1415 = vadd.f32 0.0, %v1414
        %v1416 = vpop.f32.mrf.mxu0
        %1417 = vmatprep.mubr.f32.mxu0 0.0
        %1418 = vmatmul.mubr.f32.gmra.mxu0 %v1248
        %v1419 = vpop.f32.mrf.mxu0
        %v1420 = vadd.f32 0.0, %v1419
        %v1421 = vpop.f32.mrf.mxu0
        %1422 = vmatprep.mubr.f32.mxu0 0.0
        %1423 = vmatmul.mubr.f32.gmra.mxu0 %v1251
        %v1424 = vpop.f32.mrf.mxu0
        %v1425 = vadd.f32 0.0, %v1424
        %v1426 = vpop.f32.mrf.mxu0
        %1427 = vmatprep.mubr.f32.mxu0 0.0
        %1428 = vmatmul.mubr.f32.gmra.mxu0 %v1254
        %v1429 = vpop.f32.mrf.mxu0
        %v1430 = vadd.f32 0.0, %v1429
        %v1431 = vpop.f32.mrf.mxu0
        %1432 = vmatprep.mubr.f32.mxu0 0.0
        %1433 = vmatmul.mubr.f32.gmra.mxu0 %v1257
        %v1434 = vpop.f32.mrf.mxu0
        %v1435 = vadd.f32 0.0, %v1434
        %v1436 = vpop.f32.mrf.mxu0
        %1437 = vmatprep.mubr.f32.mxu0 0.0
        %1438 = vmatmul.mubr.f32.gmra.mxu0 %v1260
        %v1439 = vpop.f32.mrf.mxu0
        %v1440 = vadd.f32 0.0, %v1439
        %v1441 = vpop.f32.mrf.mxu0
        %1442 = vmatprep.mubr.f32.mxu0 0.0
        %1443 = vmatmul.mubr.f32.gmra.mxu0 %v1263
        %v1444 = vpop.f32.mrf.mxu0
        %v1445 = vadd.f32 0.0, %v1444
        %v1446 = vpop.f32.mrf.mxu0
        %1447 = vmatprep.mubr.f32.mxu0 0.0
        %1448 = vmatmul.mubr.f32.gmra.mxu0 %v1266
        %v1449 = vpop.f32.mrf.mxu0
        %v1450 = vadd.f32 0.0, %v1449
        %v1451 = vpop.f32.mrf.mxu0
        %1452 = vmatprep.mubr.f32.mxu0 0.0
        %1453 = vmatmul.mubr.f32.gmra.mxu0 %v1269
        %v1454 = vpop.f32.mrf.mxu0
        %v1455 = vadd.f32 0.0, %v1454
        %v1456 = vpop.f32.mrf.mxu0
        %1457 = vmatprep.mubr.f32.mxu0 0.0
        %1458 = vmatmul.mubr.f32.gmra.mxu0 %v1272
        %v1459 = vpop.f32.mrf.mxu0
        %v1460 = vadd.f32 0.0, %v1459
        %v1461 = vpop.f32.mrf.mxu0
        %1462 = vmatprep.mubr.f32.mxu0 0.0
        %1463 = vmatmul.mubr.f32.gmra.mxu0 %v1275
        %v1464 = vpop.f32.mrf.mxu0
        %v1465 = vadd.f32 0.0, %v1464
        %v1466 = vpop.f32.mrf.mxu0
        %1467 = vmatprep.mubr.f32.mxu0 0.0
        %1468 = vmatmul.mubr.f32.gmra.mxu0 %v1278
        %v1469 = vpop.f32.mrf.mxu0
        %v1470 = vadd.f32 0.0, %v1469
        %v1471 = vpop.f32.mrf.mxu0
        %1472 = vmatprep.mubr.f32.mxu0 0.0
        %1473 = vmatmul.mubr.f32.gmra.mxu0 %v1281
        %v1474 = vpop.f32.mrf.mxu0
        %v1475 = vadd.f32 0.0, %v1474
        %v1476 = vpop.f32.mrf.mxu0
        %1477 = vmatprep.mubr.f32.mxu0 0.0
        %1478 = vmatmul.mubr.f32.gmra.mxu0 %v1284
        %v1479 = vpop.f32.mrf.mxu0
        %v1480 = vadd.f32 0.0, %v1479
        %v1481 = vpop.f32.mrf.mxu0
        %1482 = vmatprep.mubr.f32.mxu0 0.0
        %1483 = vmatmul.mubr.f32.gmra.mxu0 %v1287
        %v1484 = vpop.f32.mrf.mxu0
        %v1485 = vadd.f32 0.0, %v1484
        %v1486 = vpop.f32.mrf.mxu0
        %1487 = vmatprep.mubr.f32.mxu0 0.0
        %1488 = vmatmul.mubr.f32.gmra.mxu0 %v1290
        %v1489 = vpop.f32.mrf.mxu0
        %v1490 = vadd.f32 0.0, %v1489
        %v1491 = vpop.f32.mrf.mxu0
        %1492 = vmatprep.mubr.f32.mxu0 0.0
        %1493 = vmatmul.mubr.f32.gmra.mxu0 %v1293
        %v1494 = vpop.f32.mrf.mxu0
        %v1495 = vadd.f32 0.0, %v1494
        %v1496 = vpop.f32.mrf.mxu0
        %1497 = vmatprep.mubr.f32.mxu0 0.0
        %1498 = vmatmul.mubr.f32.gmra.mxu0 %v1296
        %v1499 = vpop.f32.mrf.mxu0
        %v1500 = vadd.f32 0.0, %v1499
        %v1501 = vpop.f32.mrf.mxu0
        %1502 = vmatprep.mubr.f32.mxu0 0.0
        %1503 = vmatmul.mubr.f32.gmra.mxu0 %v1299
        %v1504 = vpop.f32.mrf.mxu0
        %v1505 = vadd.f32 0.0, %v1504
        %v1506 = vpop.f32.mrf.mxu0
        %1507 = vmatprep.mubr.f32.mxu0 0.0
        %1508 = vmatmul.mubr.f32.gmra.mxu0 %v1302
        %v1509 = vpop.f32.mrf.mxu0
        %v1510 = vadd.f32 0.0, %v1509
        %v1511 = vpop.f32.mrf.mxu0
        %1512 = vmatprep.mubr.f32.mxu0 0.0
        %1513 = vmatmul.mubr.f32.gmra.mxu0 %v1305
        %v1514 = vpop.f32.mrf.mxu0
        %v1515 = vadd.f32 0.0, %v1514
        %v1516 = vpop.f32.mrf.mxu0
        %1517 = vmatprep.mubr.f32.mxu0 0.0
        %1518 = vmatmul.mubr.f32.gmra.mxu0 %v1308
        %v1519 = vpop.f32.mrf.mxu0
        %v1520 = vadd.f32 0.0, %v1519
        %v1521 = vpop.f32.mrf.mxu0
        %1522 = vmatprep.mubr.f32.mxu0 0.0
        %1523 = vmatmul.mubr.f32.gmra.mxu0 %v1311
        %v1524 = vpop.f32.mrf.mxu0
        %v1525 = vadd.f32 0.0, %v1524
        %v1526 = vpop.f32.mrf.mxu0
        %1527 = vmatprep.mubr.f32.mxu0 0.0
        %1528 = vmatmul.mubr.f32.gmra.mxu0 %v1314
        %v1529 = vpop.f32.mrf.mxu0
        %v1530 = vadd.f32 0.0, %v1529
        %v1531 = vpop.f32.mrf.mxu0
        %1532 = vmatprep.mubr.f32.mxu0 0.0
        %1533 = vmatmul.mubr.f32.gmra.mxu0 %v1317
        %v1534 = vpop.f32.mrf.mxu0
        %v1535 = vadd.f32 0.0, %v1534
        %v1536 = vpop.f32.mrf.mxu0
        %1537 = vmatprep.mubr.f32.mxu0 0.0
        %1538 = vmatmul.mubr.f32.gmra.mxu0 %v1320
        %v1539 = vpop.f32.mrf.mxu0
        %v1540 = vadd.f32 0.0, %v1539
        %v1541 = vpop.f32.mrf.mxu0
        %1542 = vmatprep.mubr.f32.mxu0 0.0
        %1543 = vmatmul.mubr.f32.gmra.mxu0 %v1323
        %v1544 = vpop.f32.mrf.mxu0
        %v1545 = vadd.f32 0.0, %v1544
        %v1546 = vpop.f32.mrf.mxu0
        %1547 = vmatprep.mubr.f32.mxu0 0.0
        %1548 = vmatmul.mubr.f32.gmra.mxu0 %v1326
        %v1549 = vpop.f32.mrf.mxu0
        %v1550 = vadd.f32 0.0, %v1549
        %v1551 = vpop.f32.mrf.mxu0
        %1552 = vmatprep.mubr.f32.mxu0 0.0
        %1553 = vmatmul.mubr.f32.gmra.mxu0 %v1329
        %v1554 = vpop.f32.mrf.mxu0
        %v1555 = vadd.f32 0.0, %v1554
        %v1556 = vpop.f32.mrf.mxu0
        %1557 = vmatprep.mubr.f32.mxu0 0.0
        %1558 = vmatmul.mubr.f32.gmra.mxu0 %v1332
        %v1559 = vpop.f32.mrf.mxu0
        %v1560 = vadd.f32 0.0, %v1559
        %v1561 = vpop.f32.mrf.mxu0
        %1562 = vdwg.mxu0
        %v1564 = vsel %vm1237, %v784, 0
        %v1567 = vsel %vm1237, %v785, 0
        %v1570 = vsel %vm1237, %v786, 0
        %v1573 = vsel %vm1237, %v787, 0
        %v1576 = vsel %vm1237, %v788, 0
        %v1579 = vsel %vm1237, %v789, 0
        %v1582 = vsel %vm1237, %v790, 0
        %v1585 = vsel %vm1237, %v791, 0
        %v1588 = vsel %vm1237, %v792, 0
        %v1591 = vsel %vm1237, %v793, 0
        %v1594 = vsel %vm1237, %v794, 0
        %v1597 = vsel %vm1237, %v795, 0
        %v1600 = vsel %vm1237, %v796, 0
        %v1603 = vsel %vm1237, %v797, 0
        %v1606 = vsel %vm1237, %v798, 0
        %v1609 = vsel %vm1237, %v799, 0
        %v1612 = vsel %vm1237, %v800, 0
        %v1615 = vsel %vm1237, %v801, 0
        %v1618 = vsel %vm1237, %v802, 0
        %v1621 = vsel %vm1237, %v803, 0
        %v1624 = vsel %vm1237, %v804, 0
        %v1627 = vsel %vm1237, %v805, 0
        %v1630 = vsel %vm1237, %v806, 0
        %v1633 = vsel %vm1237, %v807, 0
        %v1636 = vsel %vm1237, %v808, 0
        %v1639 = vsel %vm1237, %v809, 0
        %v1642 = vsel %vm1237, %v810, 0
        %v1645 = vsel %vm1237, %v811, 0
        %v1648 = vsel %vm1237, %v812, 0
        %v1651 = vsel %vm1237, %v813, 0
        %v1654 = vsel %vm1237, %v814, 0
        %v1657 = vsel %vm1237, %v815, 0
        %v1660 = vsel %vm1334, %v817, 0
        %1662 = vmatprep.subr.mxu0 0.0
        %1663 = vmatpush1.msra.mxu0 0.0
        %1664 = vmatprep.subr.mxu0 0.0
        %1665 = vmatpush1.msra.mxu0 0.0
        %1666 = vmatprep.subr.mxu0 0.0
        %1667 = vmatpush1.msra.mxu0 0.0
        %1668 = vmatprep.subr.mxu0 0.0
        %1669 = vmatpush1.msra.mxu0 0.0
        %1670 = vmatprep.subr.mxu0 0.0
        %1671 = vmatpush1.msra.mxu0 0.0
        %1672 = vmatprep.subr.mxu0 0.0
        %1673 = vmatpush1.msra.mxu0 0.0
        %1674 = vmatprep.subr.mxu0 0.0
        %1675 = vmatpush1.msra.mxu0 0.0
        %1676 = vmatprep.subr.mxu0 0.0
        %1677 = vmatpush1.msra.mxu0 0.0
        %1678 = vmatprep.subr.mxu0 0.0
        %1679 = vmatpush1.msra.mxu0 0.0
        %1680 = vmatprep.subr.mxu0 0.0
        %1681 = vmatpush1.msra.mxu0 0.0
        %1682 = vmatprep.subr.mxu0 0.0
        %1683 = vmatpush1.msra.mxu0 0.0
        %1684 = vmatprep.subr.mxu0 0.0
        %1685 = vmatpush1.msra.mxu0 0.0
        %1686 = vmatprep.subr.mxu0 0.0
        %1687 = vmatpush1.msra.mxu0 0.0
        %1688 = vmatprep.subr.mxu0 0.0
        %1689 = vmatpush1.msra.mxu0 0.0
        %1690 = vmatprep.subr.mxu0 0.0
        %1691 = vmatpush1.msra.mxu0 %v1660
        %1692 = vmatprep.subr.mxu0 0.0
        %1693 = vmatpush1.msra.mxu0 %v816
        %1694 = vmatprep.subr.mxu0 0.0
        %1695 = vmatpush2.msra.mxu0 0.0
        %1696 = vmatprep.subr.mxu0 0.0
        %1697 = vmatpush2.msra.mxu0 0.0
        %1698 = vmatprep.subr.mxu0 0.0
        %1699 = vmatpush2.msra.mxu0 0.0
        %1700 = vmatprep.subr.mxu0 0.0
        %1701 = vmatpush2.msra.mxu0 0.0
        %1702 = vmatprep.subr.mxu0 0.0
        %1703 = vmatpush2.msra.mxu0 0.0
        %1704 = vmatprep.subr.mxu0 0.0
        %1705 = vmatpush2.msra.mxu0 0.0
        %1706 = vmatprep.subr.mxu0 0.0
        %1707 = vmatpush2.msra.mxu0 0.0
        %1708 = vmatprep.subr.mxu0 0.0
        %1709 = vmatpush2.msra.mxu0 0.0
        %1710 = vmatprep.subr.mxu0 0.0
        %1711 = vmatpush2.msra.mxu0 0.0
        %1712 = vmatprep.subr.mxu0 0.0
        %1713 = vmatpush2.msra.mxu0 0.0
        %1714 = vmatprep.subr.mxu0 0.0
        %1715 = vmatpush2.msra.mxu0 0.0
        %1716 = vmatprep.subr.mxu0 0.0
        %1717 = vmatpush2.msra.mxu0 0.0
        %1718 = vmatprep.subr.mxu0 0.0
        %1719 = vmatpush2.msra.mxu0 0.0
        %1720 = vmatprep.subr.mxu0 0.0
        %1721 = vmatpush2.msra.mxu0 0.0
        %1722 = vmatprep.subr.mxu0 0.0
        %1723 = vmatpush2.msra.mxu0 0.0
        %1724 = vmatprep.subr.mxu0 0.0
        %1725 = vmatpush2.msra.mxu0 0.0
        %1726 = vmatprep.mubr.f32.mxu0 0.0
        %1727 = vmatmul.mubr.f32.gmra.mxu0 %v1564
        %v1728 = vpop.f32.mrf.mxu0
        %v1729 = vadd.f32 %v1405, %v1728
        %v1730 = vpop.f32.mrf.mxu0
        %1731 = vmatprep.mubr.f32.mxu0 0.0
        %1732 = vmatmul.mubr.f32.gmra.mxu0 %v1567
        %v1733 = vpop.f32.mrf.mxu0
        %v1734 = vadd.f32 %v1410, %v1733
        %v1735 = vpop.f32.mrf.mxu0
        %1736 = vmatprep.mubr.f32.mxu0 0.0
        %1737 = vmatmul.mubr.f32.gmra.mxu0 %v1570
        %v1738 = vpop.f32.mrf.mxu0
        %v1739 = vadd.f32 %v1415, %v1738
        %v1740 = vpop.f32.mrf.mxu0
        %1741 = vmatprep.mubr.f32.mxu0 0.0
        %1742 = vmatmul.mubr.f32.gmra.mxu0 %v1573
        %v1743 = vpop.f32.mrf.mxu0
        %v1744 = vadd.f32 %v1420, %v1743
        %v1745 = vpop.f32.mrf.mxu0
        %1746 = vmatprep.mubr.f32.mxu0 0.0
        %1747 = vmatmul.mubr.f32.gmra.mxu0 %v1576
        %v1748 = vpop.f32.mrf.mxu0
        %v1749 = vadd.f32 %v1425, %v1748
        %v1750 = vpop.f32.mrf.mxu0
        %1751 = vmatprep.mubr.f32.mxu0 0.0
        %1752 = vmatmul.mubr.f32.gmra.mxu0 %v1579
        %v1753 = vpop.f32.mrf.mxu0
        %v1754 = vadd.f32 %v1430, %v1753
        %v1755 = vpop.f32.mrf.mxu0
        %1756 = vmatprep.mubr.f32.mxu0 0.0
        %1757 = vmatmul.mubr.f32.gmra.mxu0 %v1582
        %v1758 = vpop.f32.mrf.mxu0
        %v1759 = vadd.f32 %v1435, %v1758
        %v1760 = vpop.f32.mrf.mxu0
        %1761 = vmatprep.mubr.f32.mxu0 0.0
        %1762 = vmatmul.mubr.f32.gmra.mxu0 %v1585
        %v1763 = vpop.f32.mrf.mxu0
        %v1764 = vadd.f32 %v1440, %v1763
        %v1765 = vpop.f32.mrf.mxu0
        %1766 = vmatprep.mubr.f32.mxu0 0.0
        %1767 = vmatmul.mubr.f32.gmra.mxu0 %v1588
        %v1768 = vpop.f32.mrf.mxu0
        %v1769 = vadd.f32 %v1445, %v1768
        %v1770 = vpop.f32.mrf.mxu0
        %1771 = vmatprep.mubr.f32.mxu0 0.0
        %1772 = vmatmul.mubr.f32.gmra.mxu0 %v1591
        %v1773 = vpop.f32.mrf.mxu0
        %v1774 = vadd.f32 %v1450, %v1773
        %v1775 = vpop.f32.mrf.mxu0
        %1776 = vmatprep.mubr.f32.mxu0 0.0
        %1777 = vmatmul.mubr.f32.gmra.mxu0 %v1594
        %v1778 = vpop.f32.mrf.mxu0
        %v1779 = vadd.f32 %v1455, %v1778
        %v1780 = vpop.f32.mrf.mxu0
        %1781 = vmatprep.mubr.f32.mxu0 0.0
        %1782 = vmatmul.mubr.f32.gmra.mxu0 %v1597
        %v1783 = vpop.f32.mrf.mxu0
        %v1784 = vadd.f32 %v1460, %v1783
        %v1785 = vpop.f32.mrf.mxu0
        %1786 = vmatprep.mubr.f32.mxu0 0.0
        %1787 = vmatmul.mubr.f32.gmra.mxu0 %v1600
        %v1788 = vpop.f32.mrf.mxu0
        %v1789 = vadd.f32 %v1465, %v1788
        %v1790 = vpop.f32.mrf.mxu0
        %1791 = vmatprep.mubr.f32.mxu0 0.0
        %1792 = vmatmul.mubr.f32.gmra.mxu0 %v1603
        %v1793 = vpop.f32.mrf.mxu0
        %v1794 = vadd.f32 %v1470, %v1793
        %v1795 = vpop.f32.mrf.mxu0
        %1796 = vmatprep.mubr.f32.mxu0 0.0
        %1797 = vmatmul.mubr.f32.gmra.mxu0 %v1606
        %v1798 = vpop.f32.mrf.mxu0
        %v1799 = vadd.f32 %v1475, %v1798
        %v1800 = vpop.f32.mrf.mxu0
        %1801 = vmatprep.mubr.f32.mxu0 0.0
        %1802 = vmatmul.mubr.f32.gmra.mxu0 %v1609
        %v1803 = vpop.f32.mrf.mxu0
        %v1804 = vadd.f32 %v1480, %v1803
        %v1805 = vpop.f32.mrf.mxu0
        %1806 = vmatprep.mubr.f32.mxu0 0.0
        %1807 = vmatmul.mubr.f32.gmra.mxu0 %v1612
        %v1808 = vpop.f32.mrf.mxu0
        %v1809 = vadd.f32 %v1485, %v1808
        %v1810 = vpop.f32.mrf.mxu0
        %1811 = vmatprep.mubr.f32.mxu0 0.0
        %1812 = vmatmul.mubr.f32.gmra.mxu0 %v1615
        %v1813 = vpop.f32.mrf.mxu0
        %v1814 = vadd.f32 %v1490, %v1813
        %v1815 = vpop.f32.mrf.mxu0
        %1816 = vmatprep.mubr.f32.mxu0 0.0
        %1817 = vmatmul.mubr.f32.gmra.mxu0 %v1618
        %v1818 = vpop.f32.mrf.mxu0
        %v1819 = vadd.f32 %v1495, %v1818
        %v1820 = vpop.f32.mrf.mxu0
        %1821 = vmatprep.mubr.f32.mxu0 0.0
        %1822 = vmatmul.mubr.f32.gmra.mxu0 %v1621
        %v1823 = vpop.f32.mrf.mxu0
        %v1824 = vadd.f32 %v1500, %v1823
        %v1825 = vpop.f32.mrf.mxu0
        %1826 = vmatprep.mubr.f32.mxu0 0.0
        %1827 = vmatmul.mubr.f32.gmra.mxu0 %v1624
        %v1828 = vpop.f32.mrf.mxu0
        %v1829 = vadd.f32 %v1505, %v1828
        %v1830 = vpop.f32.mrf.mxu0
        %1831 = vmatprep.mubr.f32.mxu0 0.0
        %1832 = vmatmul.mubr.f32.gmra.mxu0 %v1627
        %v1833 = vpop.f32.mrf.mxu0
        %v1834 = vadd.f32 %v1510, %v1833
        %v1835 = vpop.f32.mrf.mxu0
        %1836 = vmatprep.mubr.f32.mxu0 0.0
        %1837 = vmatmul.mubr.f32.gmra.mxu0 %v1630
        %v1838 = vpop.f32.mrf.mxu0
        %v1839 = vadd.f32 %v1515, %v1838
        %v1840 = vpop.f32.mrf.mxu0
        %1841 = vmatprep.mubr.f32.mxu0 0.0
        %1842 = vmatmul.mubr.f32.gmra.mxu0 %v1633
        %v1843 = vpop.f32.mrf.mxu0
        %v1844 = vadd.f32 %v1520, %v1843
        %v1845 = vpop.f32.mrf.mxu0
        %1846 = vmatprep.mubr.f32.mxu0 0.0
        %1847 = vmatmul.mubr.f32.gmra.mxu0 %v1636
        %v1848 = vpop.f32.mrf.mxu0
        %v1849 = vadd.f32 %v1525, %v1848
        %v1850 = vpop.f32.mrf.mxu0
        %1851 = vmatprep.mubr.f32.mxu0 0.0
        %1852 = vmatmul.mubr.f32.gmra.mxu0 %v1639
        %v1853 = vpop.f32.mrf.mxu0
        %v1854 = vadd.f32 %v1530, %v1853
        %v1855 = vpop.f32.mrf.mxu0
        %1856 = vmatprep.mubr.f32.mxu0 0.0
        %1857 = vmatmul.mubr.f32.gmra.mxu0 %v1642
        %v1858 = vpop.f32.mrf.mxu0
        %v1859 = vadd.f32 %v1535, %v1858
        %v1860 = vpop.f32.mrf.mxu0
        %1861 = vmatprep.mubr.f32.mxu0 0.0
        %1862 = vmatmul.mubr.f32.gmra.mxu0 %v1645
        %v1863 = vpop.f32.mrf.mxu0
        %v1864 = vadd.f32 %v1540, %v1863
        %v1865 = vpop.f32.mrf.mxu0
        %1866 = vmatprep.mubr.f32.mxu0 0.0
        %1867 = vmatmul.mubr.f32.gmra.mxu0 %v1648
        %v1868 = vpop.f32.mrf.mxu0
        %v1869 = vadd.f32 %v1545, %v1868
        %v1870 = vpop.f32.mrf.mxu0
        %1871 = vmatprep.mubr.f32.mxu0 0.0
        %1872 = vmatmul.mubr.f32.gmra.mxu0 %v1651
        %v1873 = vpop.f32.mrf.mxu0
        %v1874 = vadd.f32 %v1550, %v1873
        %v1875 = vpop.f32.mrf.mxu0
        %1876 = vmatprep.mubr.f32.mxu0 0.0
        %1877 = vmatmul.mubr.f32.gmra.mxu0 %v1654
        %v1878 = vpop.f32.mrf.mxu0
        %v1879 = vadd.f32 %v1555, %v1878
        %v1880 = vpop.f32.mrf.mxu0
        %1881 = vmatprep.mubr.f32.mxu0 0.0
        %1882 = vmatmul.mubr.f32.gmra.mxu0 %v1657
        %v1883 = vpop.f32.mrf.mxu0
        %v1884 = vadd.f32 %v1560, %v1883
        %v1885 = vpop.f32.mrf.mxu0
        %1886 = vdwg.mxu0
        %s1887 = scalar_lea.vmem [#allocation2], 48
        %v1888 = vld [vmem:[%s1887] sm:$0xff]
        %v1889 = vld [vmem:[%s1887 + $0x8] sm:$0xff]
        %v1890 = vld [vmem:[%s1887 + $0x18] sm:$0xff]
        %v1891 = vld [vmem:[%s1887 + $0x20] sm:$0xff]
        %v1892 = vld [vmem:[%s1887 + $0x30] sm:$0xff]
        %v1893 = vld [vmem:[%s1887 + $0x38] sm:$0xff]
        %v1894 = vld [vmem:[%s1887 + $0x48] sm:$0xff]
        %v1895 = vld [vmem:[%s1887 + $0x50] sm:$0xff]
        %v1896 = vld [vmem:[%s1887 + $0x60] sm:$0xff]
        %v1897 = vld [vmem:[%s1887 + $0x68] sm:$0xff]
        %v1898 = vld [vmem:[%s1887 + $0x78] sm:$0xff]
        %v1899 = vld [vmem:[%s1887 + $0x80] sm:$0xff]
        %v1900 = vld [vmem:[%s1887 + $0x90] sm:$0xff]
        %v1901 = vld [vmem:[%s1887 + $0x98] sm:$0xff]
        %v1902 = vld [vmem:[%s1887 + $0xa8] sm:$0xff]
        %v1903 = vld [vmem:[%s1887 + $0xb0] sm:$0xff]
        %v1904 = vld [vmem:[%s1887 + $0xc0] sm:$0xff]
        %v1905 = vld [vmem:[%s1887 + $0xc8] sm:$0xff]
        %v1906 = vld [vmem:[%s1887 + $0xd8] sm:$0xff]
        %v1907 = vld [vmem:[%s1887 + $0xe0] sm:$0xff]
        %v1908 = vld [vmem:[%s1887 + $0xf0] sm:$0xff]
        %v1909 = vld [vmem:[%s1887 + $0xf8] sm:$0xff]
        %v1910 = vld [vmem:[%s1887 + $0x108] sm:$0xff]
        %v1911 = vld [vmem:[%s1887 + $0x110] sm:$0xff]
        %v1912 = vld [vmem:[%s1887 + $0x120] sm:$0xff]
        %v1913 = vld [vmem:[%s1887 + $0x128] sm:$0xff]
        %v1914 = vld [vmem:[%s1887 + $0x138] sm:$0xff]
        %v1915 = vld [vmem:[%s1887 + $0x140] sm:$0xff]
        %v1916 = vld [vmem:[%s1887 + $0x150] sm:$0xff]
        %v1917 = vld [vmem:[%s1887 + $0x158] sm:$0xff]
        %v1918 = vld [vmem:[%s1887 + $0x168] sm:$0xff]
        %v1919 = vld [vmem:[%s1887 + $0x170] sm:$0xff]
        %v1920 = vld [vmem:[%s1887 + $0x1] sm:$0xff]
        %v1921 = vld [vmem:[%s1887 + $0x9] sm:$0xff]
        %v1922 = vld [vmem:[%s1887 + $0x19] sm:$0xff]
        %v1923 = vld [vmem:[%s1887 + $0x21] sm:$0xff]
        %v1924 = vld [vmem:[%s1887 + $0x31] sm:$0xff]
        %v1925 = vld [vmem:[%s1887 + $0x39] sm:$0xff]
        %v1926 = vld [vmem:[%s1887 + $0x49] sm:$0xff]
        %v1927 = vld [vmem:[%s1887 + $0x51] sm:$0xff]
        %v1928 = vld [vmem:[%s1887 + $0x61] sm:$0xff]
        %v1929 = vld [vmem:[%s1887 + $0x69] sm:$0xff]
        %v1930 = vld [vmem:[%s1887 + $0x79] sm:$0xff]
        %v1931 = vld [vmem:[%s1887 + $0x81] sm:$0xff]
        %v1932 = vld [vmem:[%s1887 + $0x91] sm:$0xff]
        %v1933 = vld [vmem:[%s1887 + $0x99] sm:$0xff]
        %v1934 = vld [vmem:[%s1887 + $0xa9] sm:$0xff]
        %v1935 = vld [vmem:[%s1887 + $0xb1] sm:$0xff]
        %v1936 = vld [vmem:[%s1887 + $0xc1] sm:$0xff]
        %v1937 = vld [vmem:[%s1887 + $0xc9] sm:$0xff]
        %v1938 = vld [vmem:[%s1887 + $0xd9] sm:$0xff]
        %v1939 = vld [vmem:[%s1887 + $0xe1] sm:$0xff]
        %v1940 = vld [vmem:[%s1887 + $0xf1] sm:$0xff]
        %v1941 = vld [vmem:[%s1887 + $0xf9] sm:$0xff]
        %v1942 = vld [vmem:[%s1887 + $0x109] sm:$0xff]
        %v1943 = vld [vmem:[%s1887 + $0x111] sm:$0xff]
        %v1944 = vld [vmem:[%s1887 + $0x121] sm:$0xff]
        %v1945 = vld [vmem:[%s1887 + $0x129] sm:$0xff]
        %v1946 = vld [vmem:[%s1887 + $0x139] sm:$0xff]
        %v1947 = vld [vmem:[%s1887 + $0x141] sm:$0xff]
        %v1948 = vld [vmem:[%s1887 + $0x151] sm:$0xff]
        %v1949 = vld [vmem:[%s1887 + $0x159] sm:$0xff]
        %v1950 = vld [vmem:[%s1887 + $0x169] sm:$0xff]
        %v1951 = vld [vmem:[%s1887 + $0x171] sm:$0xff]
        %v1952 = vld [vmem:[%s1887 + $0x2] sm:$0xff]
        %v1953 = vld [vmem:[%s1887 + $0xa] sm:$0xff]
        %v1954 = vld [vmem:[%s1887 + $0x1a] sm:$0xff]
        %v1955 = vld [vmem:[%s1887 + $0x22] sm:$0xff]
        %v1956 = vld [vmem:[%s1887 + $0x32] sm:$0xff]
        %v1957 = vld [vmem:[%s1887 + $0x3a] sm:$0xff]
        %v1958 = vld [vmem:[%s1887 + $0x4a] sm:$0xff]
        %v1959 = vld [vmem:[%s1887 + $0x52] sm:$0xff]
        %v1960 = vld [vmem:[%s1887 + $0x62] sm:$0xff]
        %v1961 = vld [vmem:[%s1887 + $0x6a] sm:$0xff]
        %v1962 = vld [vmem:[%s1887 + $0x7a] sm:$0xff]
        %v1963 = vld [vmem:[%s1887 + $0x82] sm:$0xff]
        %v1964 = vld [vmem:[%s1887 + $0x92] sm:$0xff]
        %v1965 = vld [vmem:[%s1887 + $0x9a] sm:$0xff]
        %v1966 = vld [vmem:[%s1887 + $0xaa] sm:$0xff]
        %v1967 = vld [vmem:[%s1887 + $0xb2] sm:$0xff]
        %v1968 = vld [vmem:[%s1887 + $0xc2] sm:$0xff]
        %v1969 = vld [vmem:[%s1887 + $0xca] sm:$0xff]
        %v1970 = vld [vmem:[%s1887 + $0xda] sm:$0xff]
        %v1971 = vld [vmem:[%s1887 + $0xe2] sm:$0xff]
        %v1972 = vld [vmem:[%s1887 + $0xf2] sm:$0xff]
        %v1973 = vld [vmem:[%s1887 + $0xfa] sm:$0xff]
        %v1974 = vld [vmem:[%s1887 + $0x10a] sm:$0xff]
        %v1975 = vld [vmem:[%s1887 + $0x112] sm:$0xff]
        %v1976 = vld [vmem:[%s1887 + $0x122] sm:$0xff]
        %v1977 = vld [vmem:[%s1887 + $0x12a] sm:$0xff]
        %v1978 = vld [vmem:[%s1887 + $0x13a] sm:$0xff]
        %v1979 = vld [vmem:[%s1887 + $0x142] sm:$0xff]
        %v1980 = vld [vmem:[%s1887 + $0x152] sm:$0xff]
        %v1981 = vld [vmem:[%s1887 + $0x15a] sm:$0xff]
        %v1982 = vld [vmem:[%s1887 + $0x16a] sm:$0xff]
        %v1983 = vld [vmem:[%s1887 + $0x172] sm:$0xff]
        %2016 = vrot.lane.b32.xlu0 %v1920, 4
        %v2017 = vpop.permute.xlu0 %2016
        %2018 = vrot.lane.b32.xlu0 %v1921, 4
        %v2019 = vpop.permute.xlu0 %2018
        %2020 = vrot.lane.b32.xlu0 %v1922, 4
        %v2021 = vpop.permute.xlu0 %2020
        %2022 = vrot.lane.b32.xlu0 %v1923, 4
        %v2023 = vpop.permute.xlu0 %2022
        %2024 = vrot.lane.b32.xlu0 %v1924, 4
        %v2025 = vpop.permute.xlu0 %2024
        %2026 = vrot.lane.b32.xlu0 %v1925, 4
        %v2027 = vpop.permute.xlu0 %2026
        %2028 = vrot.lane.b32.xlu0 %v1926, 4
        %v2029 = vpop.permute.xlu0 %2028
        %2030 = vrot.lane.b32.xlu0 %v1927, 4
        %v2031 = vpop.permute.xlu0 %2030
        %2032 = vrot.lane.b32.xlu0 %v1928, 4
        %v2033 = vpop.permute.xlu0 %2032
        %2034 = vrot.lane.b32.xlu0 %v1929, 4
        %v2035 = vpop.permute.xlu0 %2034
        %2036 = vrot.lane.b32.xlu0 %v1930, 4
        %v2037 = vpop.permute.xlu0 %2036
        %2038 = vrot.lane.b32.xlu0 %v1931, 4
        %v2039 = vpop.permute.xlu0 %2038
        %2040 = vrot.lane.b32.xlu0 %v1932, 4
        %v2041 = vpop.permute.xlu0 %2040
        %2042 = vrot.lane.b32.xlu0 %v1933, 4
        %v2043 = vpop.permute.xlu0 %2042
        %2044 = vrot.lane.b32.xlu0 %v1934, 4
        %v2045 = vpop.permute.xlu0 %2044
        %2046 = vrot.lane.b32.xlu0 %v1935, 4
        %v2047 = vpop.permute.xlu0 %2046
        %2048 = vrot.lane.b32.xlu0 %v1936, 4
        %v2049 = vpop.permute.xlu0 %2048
        %2050 = vrot.lane.b32.xlu0 %v1937, 4
        %v2051 = vpop.permute.xlu0 %2050
        %2052 = vrot.lane.b32.xlu0 %v1938, 4
        %v2053 = vpop.permute.xlu0 %2052
        %2054 = vrot.lane.b32.xlu0 %v1939, 4
        %v2055 = vpop.permute.xlu0 %2054
        %2056 = vrot.lane.b32.xlu0 %v1940, 4
        %v2057 = vpop.permute.xlu0 %2056
        %2058 = vrot.lane.b32.xlu0 %v1941, 4
        %v2059 = vpop.permute.xlu0 %2058
        %2060 = vrot.lane.b32.xlu0 %v1942, 4
        %v2061 = vpop.permute.xlu0 %2060
        %2062 = vrot.lane.b32.xlu0 %v1943, 4
        %v2063 = vpop.permute.xlu0 %2062
        %2064 = vrot.lane.b32.xlu0 %v1944, 4
        %v2065 = vpop.permute.xlu0 %2064
        %2066 = vrot.lane.b32.xlu0 %v1945, 4
        %v2067 = vpop.permute.xlu0 %2066
        %2068 = vrot.lane.b32.xlu0 %v1946, 4
        %v2069 = vpop.permute.xlu0 %2068
        %2070 = vrot.lane.b32.xlu0 %v1947, 4
        %v2071 = vpop.permute.xlu0 %2070
        %2072 = vrot.lane.b32.xlu0 %v1948, 4
        %v2073 = vpop.permute.xlu0 %2072
        %2074 = vrot.lane.b32.xlu0 %v1949, 4
        %v2075 = vpop.permute.xlu0 %2074
        %2076 = vrot.lane.b32.xlu0 %v1950, 4
        %v2077 = vpop.permute.xlu0 %2076
        %2078 = vrot.lane.b32.xlu0 %v1951, 4
        %v2079 = vpop.permute.xlu0 %2078
        %2144 = vrot.lane.b32.xlu0 %v1952, 8
        %v2145 = vpop.permute.xlu0 %2144
        %2146 = vrot.lane.b32.xlu0 %v1953, 8
        %v2147 = vpop.permute.xlu0 %2146
        %2148 = vrot.lane.b32.xlu0 %v1954, 8
        %v2149 = vpop.permute.xlu0 %2148
        %2150 = vrot.lane.b32.xlu0 %v1955, 8
        %v2151 = vpop.permute.xlu0 %2150
        %2152 = vrot.lane.b32.xlu0 %v1956, 8
        %v2153 = vpop.permute.xlu0 %2152
        %2154 = vrot.lane.b32.xlu0 %v1957, 8
        %v2155 = vpop.permute.xlu0 %2154
        %2156 = vrot.lane.b32.xlu0 %v1958, 8
        %v2157 = vpop.permute.xlu0 %2156
        %2158 = vrot.lane.b32.xlu0 %v1959, 8
        %v2159 = vpop.permute.xlu0 %2158
        %2160 = vrot.lane.b32.xlu0 %v1960, 8
        %v2161 = vpop.permute.xlu0 %2160
        %2162 = vrot.lane.b32.xlu0 %v1961, 8
        %v2163 = vpop.permute.xlu0 %2162
        %2164 = vrot.lane.b32.xlu0 %v1962, 8
        %v2165 = vpop.permute.xlu0 %2164
        %2166 = vrot.lane.b32.xlu0 %v1963, 8
        %v2167 = vpop.permute.xlu0 %2166
        %2168 = vrot.lane.b32.xlu0 %v1964, 8
        %v2169 = vpop.permute.xlu0 %2168
        %2170 = vrot.lane.b32.xlu0 %v1965, 8
        %v2171 = vpop.permute.xlu0 %2170
        %2172 = vrot.lane.b32.xlu0 %v1966, 8
        %v2173 = vpop.permute.xlu0 %2172
        %2174 = vrot.lane.b32.xlu0 %v1967, 8
        %v2175 = vpop.permute.xlu0 %2174
        %2176 = vrot.lane.b32.xlu0 %v1968, 8
        %v2177 = vpop.permute.xlu0 %2176
        %2178 = vrot.lane.b32.xlu0 %v1969, 8
        %v2179 = vpop.permute.xlu0 %2178
        %2180 = vrot.lane.b32.xlu0 %v1970, 8
        %v2181 = vpop.permute.xlu0 %2180
        %2182 = vrot.lane.b32.xlu0 %v1971, 8
        %v2183 = vpop.permute.xlu0 %2182
        %2184 = vrot.lane.b32.xlu0 %v1972, 8
        %v2185 = vpop.permute.xlu0 %2184
        %2186 = vrot.lane.b32.xlu0 %v1973, 8
        %v2187 = vpop.permute.xlu0 %2186
        %2188 = vrot.lane.b32.xlu0 %v1974, 8
        %v2189 = vpop.permute.xlu0 %2188
        %2190 = vrot.lane.b32.xlu0 %v1975, 8
        %v2191 = vpop.permute.xlu0 %2190
        %2192 = vrot.lane.b32.xlu0 %v1976, 8
        %v2193 = vpop.permute.xlu0 %2192
        %2194 = vrot.lane.b32.xlu0 %v1977, 8
        %v2195 = vpop.permute.xlu0 %2194
        %2196 = vrot.lane.b32.xlu0 %v1978, 8
        %v2197 = vpop.permute.xlu0 %2196
        %2198 = vrot.lane.b32.xlu0 %v1979, 8
        %v2199 = vpop.permute.xlu0 %2198
        %2200 = vrot.lane.b32.xlu0 %v1980, 8
        %v2201 = vpop.permute.xlu0 %2200
        %2202 = vrot.lane.b32.xlu0 %v1981, 8
        %v2203 = vpop.permute.xlu0 %2202
        %2204 = vrot.lane.b32.xlu0 %v1982, 8
        %v2205 = vpop.permute.xlu0 %2204
        %2206 = vrot.lane.b32.xlu0 %v1983, 8
        %v2207 = vpop.permute.xlu0 %2206
        %v2240 = vsel %vm366, %v1888, %v2017
        %v2241 = vsel %vm366, %v1889, %v2019
        %v2242 = vsel %vm366, %v1890, %v2021
        %v2243 = vsel %vm366, %v1891, %v2023
        %v2244 = vsel %vm366, %v1892, %v2025
        %v2245 = vsel %vm366, %v1893, %v2027
        %v2246 = vsel %vm366, %v1894, %v2029
        %v2247 = vsel %vm366, %v1895, %v2031
        %v2248 = vsel %vm366, %v1896, %v2033
        %v2249 = vsel %vm366, %v1897, %v2035
        %v2250 = vsel %vm366, %v1898, %v2037
        %v2251 = vsel %vm366, %v1899, %v2039
        %v2252 = vsel %vm366, %v1900, %v2041
        %v2253 = vsel %vm366, %v1901, %v2043
        %v2254 = vsel %vm366, %v1902, %v2045
        %v2255 = vsel %vm366, %v1903, %v2047
        %v2256 = vsel %vm366, %v1904, %v2049
        %v2257 = vsel %vm366, %v1905, %v2051
        %v2258 = vsel %vm366, %v1906, %v2053
        %v2259 = vsel %vm366, %v1907, %v2055
        %v2260 = vsel %vm366, %v1908, %v2057
        %v2261 = vsel %vm366, %v1909, %v2059
        %v2262 = vsel %vm366, %v1910, %v2061
        %v2263 = vsel %vm366, %v1911, %v2063
        %v2264 = vsel %vm366, %v1912, %v2065
        %v2265 = vsel %vm366, %v1913, %v2067
        %v2266 = vsel %vm366, %v1914, %v2069
        %v2267 = vsel %vm366, %v1915, %v2071
        %v2268 = vsel %vm366, %v1916, %v2073
        %v2269 = vsel %vm366, %v1917, %v2075
        %v2270 = vsel %vm366, %v1918, %v2077
        %v2271 = vsel %vm366, %v1919, %v2079
        %v2272 = vsel %vm783, %v2240, %v2145
        %v2273 = vsel %vm783, %v2241, %v2147
        %v2274 = vsel %vm783, %v2242, %v2149
        %v2275 = vsel %vm783, %v2243, %v2151
        %v2276 = vsel %vm783, %v2244, %v2153
        %v2277 = vsel %vm783, %v2245, %v2155
        %v2278 = vsel %vm783, %v2246, %v2157
        %v2279 = vsel %vm783, %v2247, %v2159
        %v2280 = vsel %vm783, %v2248, %v2161
        %v2281 = vsel %vm783, %v2249, %v2163
        %v2282 = vsel %vm783, %v2250, %v2165
        %v2283 = vsel %vm783, %v2251, %v2167
        %v2284 = vsel %vm783, %v2252, %v2169
        %v2285 = vsel %vm783, %v2253, %v2171
        %v2286 = vsel %vm783, %v2254, %v2173
        %v2287 = vsel %vm783, %v2255, %v2175
        %v2288 = vsel %vm783, %v2256, %v2177
        %v2289 = vsel %vm783, %v2257, %v2179
        %v2290 = vsel %vm783, %v2258, %v2181
        %v2291 = vsel %vm783, %v2259, %v2183
        %v2292 = vsel %vm783, %v2260, %v2185
        %v2293 = vsel %vm783, %v2261, %v2187
        %v2294 = vsel %vm783, %v2262, %v2189
        %v2295 = vsel %vm783, %v2263, %v2191
        %v2296 = vsel %vm783, %v2264, %v2193
        %v2297 = vsel %vm783, %v2265, %v2195
        %v2298 = vsel %vm783, %v2266, %v2197
        %v2299 = vsel %vm783, %v2267, %v2199
        %v2300 = vsel %vm783, %v2268, %v2201
        %v2301 = vsel %vm783, %v2269, %v2203
        %v2302 = vsel %vm783, %v2270, %v2205
        %v2303 = vsel %vm783, %v2271, %v2207
        %s2304 = scalar_lea.vmem %s1, 32
        %v2305 = vld [vmem:[%s2304] sm:$0xff]
        %v2306 = vld [vmem:[%s2304 + $0x8] sm:$0xf]
        %v2308 = vsel %vm1237, %v2272, 0
        %v2311 = vsel %vm1237, %v2273, 0
        %v2314 = vsel %vm1237, %v2274, 0
        %v2317 = vsel %vm1237, %v2275, 0
        %v2320 = vsel %vm1237, %v2276, 0
        %v2323 = vsel %vm1237, %v2277, 0
        %v2326 = vsel %vm1237, %v2278, 0
        %v2329 = vsel %vm1237, %v2279, 0
        %v2332 = vsel %vm1237, %v2280, 0
        %v2335 = vsel %vm1237, %v2281, 0
        %v2338 = vsel %vm1237, %v2282, 0
        %v2341 = vsel %vm1237, %v2283, 0
        %v2344 = vsel %vm1237, %v2284, 0
        %v2347 = vsel %vm1237, %v2285, 0
        %v2350 = vsel %vm1237, %v2286, 0
        %v2353 = vsel %vm1237, %v2287, 0
        %v2356 = vsel %vm1237, %v2288, 0
        %v2359 = vsel %vm1237, %v2289, 0
        %v2362 = vsel %vm1237, %v2290, 0
        %v2365 = vsel %vm1237, %v2291, 0
        %v2368 = vsel %vm1237, %v2292, 0
        %v2371 = vsel %vm1237, %v2293, 0
        %v2374 = vsel %vm1237, %v2294, 0
        %v2377 = vsel %vm1237, %v2295, 0
        %v2380 = vsel %vm1237, %v2296, 0
        %v2383 = vsel %vm1237, %v2297, 0
        %v2386 = vsel %vm1237, %v2298, 0
        %v2389 = vsel %vm1237, %v2299, 0
        %v2392 = vsel %vm1237, %v2300, 0
        %v2395 = vsel %vm1237, %v2301, 0
        %v2398 = vsel %vm1237, %v2302, 0
        %v2401 = vsel %vm1237, %v2303, 0
        %v2404 = vsel %vm1334, %v2306, 0
        %2406 = vmatprep.subr.mxu0 0.0
        %2407 = vmatpush1.msra.mxu0 0.0
        %2408 = vmatprep.subr.mxu0 0.0
        %2409 = vmatpush1.msra.mxu0 0.0
        %2410 = vmatprep.subr.mxu0 0.0
        %2411 = vmatpush1.msra.mxu0 0.0
        %2412 = vmatprep.subr.mxu0 0.0
        %2413 = vmatpush1.msra.mxu0 0.0
        %2414 = vmatprep.subr.mxu0 0.0
        %2415 = vmatpush1.msra.mxu0 0.0
        %2416 = vmatprep.subr.mxu0 0.0
        %2417 = vmatpush1.msra.mxu0 0.0
        %2418 = vmatprep.subr.mxu0 0.0
        %2419 = vmatpush1.msra.mxu0 0.0
        %2420 = vmatprep.subr.mxu0 0.0
        %2421 = vmatpush1.msra.mxu0 0.0
        %2422 = vmatprep.subr.mxu0 0.0
        %2423 = vmatpush1.msra.mxu0 0.0
        %2424 = vmatprep.subr.mxu0 0.0
        %2425 = vmatpush1.msra.mxu0 0.0
        %2426 = vmatprep.subr.mxu0 0.0
        %2427 = vmatpush1.msra.mxu0 0.0
        %2428 = vmatprep.subr.mxu0 0.0
        %2429 = vmatpush1.msra.mxu0 0.0
        %2430 = vmatprep.subr.mxu0 0.0
        %2431 = vmatpush1.msra.mxu0 0.0
        %2432 = vmatprep.subr.mxu0 0.0
        %2433 = vmatpush1.msra.mxu0 0.0
        %2434 = vmatprep.subr.mxu0 0.0
        %2435 = vmatpush1.msra.mxu0 %v2404
        %2436 = vmatprep.subr.mxu0 0.0
        %2437 = vmatpush1.msra.mxu0 %v2305
        %2438 = vmatprep.subr.mxu0 0.0
        %2439 = vmatpush2.msra.mxu0 0.0
        %2440 = vmatprep.subr.mxu0 0.0
        %2441 = vmatpush2.msra.mxu0 0.0
        %2442 = vmatprep.subr.mxu0 0.0
        %2443 = vmatpush2.msra.mxu0 0.0
        %2444 = vmatprep.subr.mxu0 0.0
        %2445 = vmatpush2.msra.mxu0 0.0
        %2446 = vmatprep.subr.mxu0 0.0
        %2447 = vmatpush2.msra.mxu0 0.0
        %2448 = vmatprep.subr.mxu0 0.0
        %2449 = vmatpush2.msra.mxu0 0.0
        %2450 = vmatprep.subr.mxu0 0.0
        %2451 = vmatpush2.msra.mxu0 0.0
        %2452 = vmatprep.subr.mxu0 0.0
        %2453 = vmatpush2.msra.mxu0 0.0
        %2454 = vmatprep.subr.mxu0 0.0
        %2455 = vmatpush2.msra.mxu0 0.0
        %2456 = vmatprep.subr.mxu0 0.0
        %2457 = vmatpush2.msra.mxu0 0.0
        %2458 = vmatprep.subr.mxu0 0.0
        %2459 = vmatpush2.msra.mxu0 0.0
        %2460 = vmatprep.subr.mxu0 0.0
        %2461 = vmatpush2.msra.mxu0 0.0
        %2462 = vmatprep.subr.mxu0 0.0
        %2463 = vmatpush2.msra.mxu0 0.0
        %2464 = vmatprep.subr.mxu0 0.0
        %2465 = vmatpush2.msra.mxu0 0.0
        %2466 = vmatprep.subr.mxu0 0.0
        %2467 = vmatpush2.msra.mxu0 0.0
        %2468 = vmatprep.subr.mxu0 0.0
        %2469 = vmatpush2.msra.mxu0 0.0
        %2470 = vmatprep.mubr.f32.mxu0 0.0
        %2471 = vmatmul.mubr.f32.gmra.mxu0 %v2308
        %v2472 = vpop.f32.mrf.mxu0
        %v2473 = vadd.f32 0.0, %v2472
        %v2474 = vpop.f32.mrf.mxu0
        %2475 = vmatprep.mubr.f32.mxu0 0.0
        %2476 = vmatmul.mubr.f32.gmra.mxu0 %v2311
        %v2477 = vpop.f32.mrf.mxu0
        %v2478 = vadd.f32 0.0, %v2477
        %v2479 = vpop.f32.mrf.mxu0
        %2480 = vmatprep.mubr.f32.mxu0 0.0
        %2481 = vmatmul.mubr.f32.gmra.mxu0 %v2314
        %v2482 = vpop.f32.mrf.mxu0
        %v2483 = vadd.f32 0.0, %v2482
        %v2484 = vpop.f32.mrf.mxu0
        %2485 = vmatprep.mubr.f32.mxu0 0.0
        %2486 = vmatmul.mubr.f32.gmra.mxu0 %v2317
        %v2487 = vpop.f32.mrf.mxu0
        %v2488 = vadd.f32 0.0, %v2487
        %v2489 = vpop.f32.mrf.mxu0
        %2490 = vmatprep.mubr.f32.mxu0 0.0
        %2491 = vmatmul.mubr.f32.gmra.mxu0 %v2320
        %v2492 = vpop.f32.mrf.mxu0
        %v2493 = vadd.f32 0.0, %v2492
        %v2494 = vpop.f32.mrf.mxu0
        %2495 = vmatprep.mubr.f32.mxu0 0.0
        %2496 = vmatmul.mubr.f32.gmra.mxu0 %v2323
        %v2497 = vpop.f32.mrf.mxu0
        %v2498 = vadd.f32 0.0, %v2497
        %v2499 = vpop.f32.mrf.mxu0
        %2500 = vmatprep.mubr.f32.mxu0 0.0
        %2501 = vmatmul.mubr.f32.gmra.mxu0 %v2326
        %v2502 = vpop.f32.mrf.mxu0
        %v2503 = vadd.f32 0.0, %v2502
        %v2504 = vpop.f32.mrf.mxu0
        %2505 = vmatprep.mubr.f32.mxu0 0.0
        %2506 = vmatmul.mubr.f32.gmra.mxu0 %v2329
        %v2507 = vpop.f32.mrf.mxu0
        %v2508 = vadd.f32 0.0, %v2507
        %v2509 = vpop.f32.mrf.mxu0
        %2510 = vmatprep.mubr.f32.mxu0 0.0
        %2511 = vmatmul.mubr.f32.gmra.mxu0 %v2332
        %v2512 = vpop.f32.mrf.mxu0
        %v2513 = vadd.f32 0.0, %v2512
        %v2514 = vpop.f32.mrf.mxu0
        %2515 = vmatprep.mubr.f32.mxu0 0.0
        %2516 = vmatmul.mubr.f32.gmra.mxu0 %v2335
        %v2517 = vpop.f32.mrf.mxu0
        %v2518 = vadd.f32 0.0, %v2517
        %v2519 = vpop.f32.mrf.mxu0
        %2520 = vmatprep.mubr.f32.mxu0 0.0
        %2521 = vmatmul.mubr.f32.gmra.mxu0 %v2338
        %v2522 = vpop.f32.mrf.mxu0
        %v2523 = vadd.f32 0.0, %v2522
        %v2524 = vpop.f32.mrf.mxu0
        %2525 = vmatprep.mubr.f32.mxu0 0.0
        %2526 = vmatmul.mubr.f32.gmra.mxu0 %v2341
        %v2527 = vpop.f32.mrf.mxu0
        %v2528 = vadd.f32 0.0, %v2527
        %v2529 = vpop.f32.mrf.mxu0
        %2530 = vmatprep.mubr.f32.mxu0 0.0
        %2531 = vmatmul.mubr.f32.gmra.mxu0 %v2344
        %v2532 = vpop.f32.mrf.mxu0
        %v2533 = vadd.f32 0.0, %v2532
        %v2534 = vpop.f32.mrf.mxu0
        %2535 = vmatprep.mubr.f32.mxu0 0.0
        %2536 = vmatmul.mubr.f32.gmra.mxu0 %v2347
        %v2537 = vpop.f32.mrf.mxu0
        %v2538 = vadd.f32 0.0, %v2537
        %v2539 = vpop.f32.mrf.mxu0
        %2540 = vmatprep.mubr.f32.mxu0 0.0
        %2541 = vmatmul.mubr.f32.gmra.mxu0 %v2350
        %v2542 = vpop.f32.mrf.mxu0
        %v2543 = vadd.f32 0.0, %v2542
        %v2544 = vpop.f32.mrf.mxu0
        %2545 = vmatprep.mubr.f32.mxu0 0.0
        %2546 = vmatmul.mubr.f32.gmra.mxu0 %v2353
        %v2547 = vpop.f32.mrf.mxu0
        %v2548 = vadd.f32 0.0, %v2547
        %v2549 = vpop.f32.mrf.mxu0
        %2550 = vmatprep.mubr.f32.mxu0 0.0
        %2551 = vmatmul.mubr.f32.gmra.mxu0 %v2356
        %v2552 = vpop.f32.mrf.mxu0
        %v2553 = vadd.f32 0.0, %v2552
        %v2554 = vpop.f32.mrf.mxu0
        %2555 = vmatprep.mubr.f32.mxu0 0.0
        %2556 = vmatmul.mubr.f32.gmra.mxu0 %v2359
        %v2557 = vpop.f32.mrf.mxu0
        %v2558 = vadd.f32 0.0, %v2557
        %v2559 = vpop.f32.mrf.mxu0
        %2560 = vmatprep.mubr.f32.mxu0 0.0
        %2561 = vmatmul.mubr.f32.gmra.mxu0 %v2362
        %v2562 = vpop.f32.mrf.mxu0
        %v2563 = vadd.f32 0.0, %v2562
        %v2564 = vpop.f32.mrf.mxu0
        %2565 = vmatprep.mubr.f32.mxu0 0.0
        %2566 = vmatmul.mubr.f32.gmra.mxu0 %v2365
        %v2567 = vpop.f32.mrf.mxu0
        %v2568 = vadd.f32 0.0, %v2567
        %v2569 = vpop.f32.mrf.mxu0
        %2570 = vmatprep.mubr.f32.mxu0 0.0
        %2571 = vmatmul.mubr.f32.gmra.mxu0 %v2368
        %v2572 = vpop.f32.mrf.mxu0
        %v2573 = vadd.f32 0.0, %v2572
        %v2574 = vpop.f32.mrf.mxu0
        %2575 = vmatprep.mubr.f32.mxu0 0.0
        %2576 = vmatmul.mubr.f32.gmra.mxu0 %v2371
        %v2577 = vpop.f32.mrf.mxu0
        %v2578 = vadd.f32 0.0, %v2577
        %v2579 = vpop.f32.mrf.mxu0
        %2580 = vmatprep.mubr.f32.mxu0 0.0
        %2581 = vmatmul.mubr.f32.gmra.mxu0 %v2374
        %v2582 = vpop.f32.mrf.mxu0
        %v2583 = vadd.f32 0.0, %v2582
        %v2584 = vpop.f32.mrf.mxu0
        %2585 = vmatprep.mubr.f32.mxu0 0.0
        %2586 = vmatmul.mubr.f32.gmra.mxu0 %v2377
        %v2587 = vpop.f32.mrf.mxu0
        %v2588 = vadd.f32 0.0, %v2587
        %v2589 = vpop.f32.mrf.mxu0
        %2590 = vmatprep.mubr.f32.mxu0 0.0
        %2591 = vmatmul.mubr.f32.gmra.mxu0 %v2380
        %v2592 = vpop.f32.mrf.mxu0
        %v2593 = vadd.f32 0.0, %v2592
        %v2594 = vpop.f32.mrf.mxu0
        %2595 = vmatprep.mubr.f32.mxu0 0.0
        %2596 = vmatmul.mubr.f32.gmra.mxu0 %v2383
        %v2597 = vpop.f32.mrf.mxu0
        %v2598 = vadd.f32 0.0, %v2597
        %v2599 = vpop.f32.mrf.mxu0
        %2600 = vmatprep.mubr.f32.mxu0 0.0
        %2601 = vmatmul.mubr.f32.gmra.mxu0 %v2386
        %v2602 = vpop.f32.mrf.mxu0
        %v2603 = vadd.f32 0.0, %v2602
        %v2604 = vpop.f32.mrf.mxu0
        %2605 = vmatprep.mubr.f32.mxu0 0.0
        %2606 = vmatmul.mubr.f32.gmra.mxu0 %v2389
        %v2607 = vpop.f32.mrf.mxu0
        %v2608 = vadd.f32 0.0, %v2607
        %v2609 = vpop.f32.mrf.mxu0
        %2610 = vmatprep.mubr.f32.mxu0 0.0
        %2611 = vmatmul.mubr.f32.gmra.mxu0 %v2392
        %v2612 = vpop.f32.mrf.mxu0
        %v2613 = vadd.f32 0.0, %v2612
        %v2614 = vpop.f32.mrf.mxu0
        %2615 = vmatprep.mubr.f32.mxu0 0.0
        %2616 = vmatmul.mubr.f32.gmra.mxu0 %v2395
        %v2617 = vpop.f32.mrf.mxu0
        %v2618 = vadd.f32 0.0, %v2617
        %v2619 = vpop.f32.mrf.mxu0
        %2620 = vmatprep.mubr.f32.mxu0 0.0
        %2621 = vmatmul.mubr.f32.gmra.mxu0 %v2398
        %v2622 = vpop.f32.mrf.mxu0
        %v2623 = vadd.f32 0.0, %v2622
        %v2624 = vpop.f32.mrf.mxu0
        %2625 = vmatprep.mubr.f32.mxu0 0.0
        %2626 = vmatmul.mubr.f32.gmra.mxu0 %v2401
        %v2627 = vpop.f32.mrf.mxu0
        %v2628 = vadd.f32 0.0, %v2627
        %v2629 = vpop.f32.mrf.mxu0
        %2630 = vdwg.mxu0
        %v2631 = vadd.f32 %v1729, %v2473
        %v2632 = vadd.f32 %v1734, %v2478
        %v2633 = vadd.f32 %v1739, %v2483
        %v2634 = vadd.f32 %v1744, %v2488
        %v2635 = vadd.f32 %v1749, %v2493
        %v2636 = vadd.f32 %v1754, %v2498
        %v2637 = vadd.f32 %v1759, %v2503
        %v2638 = vadd.f32 %v1764, %v2508
        %v2639 = vadd.f32 %v1769, %v2513
        %v2640 = vadd.f32 %v1774, %v2518
        %v2641 = vadd.f32 %v1779, %v2523
        %v2642 = vadd.f32 %v1784, %v2528
        %v2643 = vadd.f32 %v1789, %v2533
        %v2644 = vadd.f32 %v1794, %v2538
        %v2645 = vadd.f32 %v1799, %v2543
        %v2646 = vadd.f32 %v1804, %v2548
        %v2647 = vadd.f32 %v1809, %v2553
        %v2648 = vadd.f32 %v1814, %v2558
        %v2649 = vadd.f32 %v1819, %v2563
        %v2650 = vadd.f32 %v1824, %v2568
        %v2651 = vadd.f32 %v1829, %v2573
        %v2652 = vadd.f32 %v1834, %v2578
        %v2653 = vadd.f32 %v1839, %v2583
        %v2654 = vadd.f32 %v1844, %v2588
        %v2655 = vadd.f32 %v1849, %v2593
        %v2656 = vadd.f32 %v1854, %v2598
        %v2657 = vadd.f32 %v1859, %v2603
        %v2658 = vadd.f32 %v1864, %v2608
        %v2659 = vadd.f32 %v1869, %v2613
        %v2660 = vadd.f32 %v1874, %v2618
        %v2661 = vadd.f32 %v1879, %v2623
        %v2662 = vadd.f32 %v1884, %v2628
        %v2663 = vld [vmem:[%s2] sm:$0x1]
        %v2665 = vlaneseq
        %v2666 = vshrl.u32 %v2665, 7
        %v2667 = vsub.s32 0, %v2666
        %v2668 = vrot.slane %v2663, %v2667
        %v2670 = vadd.f32 %v2631, %v2668
        %v2671 = vadd.f32 %v2632, %v2668
        %v2672 = vadd.f32 %v2633, %v2668
        %v2673 = vadd.f32 %v2634, %v2668
        %v2674 = vadd.f32 %v2635, %v2668
        %v2675 = vadd.f32 %v2636, %v2668
        %v2676 = vadd.f32 %v2637, %v2668
        %v2677 = vadd.f32 %v2638, %v2668
        %v2678 = vadd.f32 %v2639, %v2668
        %v2679 = vadd.f32 %v2640, %v2668
        %v2680 = vadd.f32 %v2641, %v2668
        %v2681 = vadd.f32 %v2642, %v2668
        %v2682 = vadd.f32 %v2643, %v2668
        %v2683 = vadd.f32 %v2644, %v2668
        %v2684 = vadd.f32 %v2645, %v2668
        %v2685 = vadd.f32 %v2646, %v2668
        %v2686 = vadd.f32 %v2647, %v2668
        %v2687 = vadd.f32 %v2648, %v2668
        %v2688 = vadd.f32 %v2649, %v2668
        %v2689 = vadd.f32 %v2650, %v2668
        %v2690 = vadd.f32 %v2651, %v2668
        %v2691 = vadd.f32 %v2652, %v2668
        %v2692 = vadd.f32 %v2653, %v2668
        %v2693 = vadd.f32 %v2654, %v2668
        %v2694 = vadd.f32 %v2655, %v2668
        %v2695 = vadd.f32 %v2656, %v2668
        %v2696 = vadd.f32 %v2657, %v2668
        %v2697 = vadd.f32 %v2658, %v2668
        %v2698 = vadd.f32 %v2659, %v2668
        %v2699 = vadd.f32 %v2660, %v2668
        %v2700 = vadd.f32 %v2661, %v2668
        %v2701 = vadd.f32 %v2662, %v2668
        %v2702 = vmax.f32 %v2670, 0.0
        %v2703 = vmax.f32 %v2671, 0.0
        %v2704 = vmax.f32 %v2672, 0.0
        %v2705 = vmax.f32 %v2673, 0.0
        %v2706 = vmax.f32 %v2674, 0.0
        %v2707 = vmax.f32 %v2675, 0.0
        %v2708 = vmax.f32 %v2676, 0.0
        %v2709 = vmax.f32 %v2677, 0.0
        %v2710 = vmax.f32 %v2678, 0.0
        %v2711 = vmax.f32 %v2679, 0.0
        %v2712 = vmax.f32 %v2680, 0.0
        %v2713 = vmax.f32 %v2681, 0.0
        %v2714 = vmax.f32 %v2682, 0.0
        %v2715 = vmax.f32 %v2683, 0.0
        %v2716 = vmax.f32 %v2684, 0.0
        %v2717 = vmax.f32 %v2685, 0.0
        %v2718 = vmax.f32 %v2686, 0.0
        %v2719 = vmax.f32 %v2687, 0.0
        %v2720 = vmax.f32 %v2688, 0.0
        %v2721 = vmax.f32 %v2689, 0.0
        %v2722 = vmax.f32 %v2690, 0.0
        %v2723 = vmax.f32 %v2691, 0.0
        %v2724 = vmax.f32 %v2692, 0.0
        %v2725 = vmax.f32 %v2693, 0.0
        %v2726 = vmax.f32 %v2694, 0.0
        %v2727 = vmax.f32 %v2695, 0.0
        %v2728 = vmax.f32 %v2696, 0.0
        %v2729 = vmax.f32 %v2697, 0.0
        %v2730 = vmax.f32 %v2698, 0.0
        %v2731 = vmax.f32 %v2699, 0.0
        %v2732 = vmax.f32 %v2700, 0.0
        %v2733 = vmax.f32 %v2701, 0.0
        %2734 = vst.msk [vmem:[%s365 + $0x1] sm:$0xff] %vm277, %v2702
        %2735 = vst.msk [vmem:[%s365 + $0x9] sm:$0xff] %vm277, %v2703
        %2736 = vst.msk [vmem:[%s365 + $0x19] sm:$0xff] %vm277, %v2704
        %2737 = vst.msk [vmem:[%s365 + $0x21] sm:$0xff] %vm277, %v2705
        %2738 = vst.msk [vmem:[%s365 + $0x31] sm:$0xff] %vm277, %v2706
        %2739 = vst.msk [vmem:[%s365 + $0x39] sm:$0xff] %vm277, %v2707
        %2740 = vst.msk [vmem:[%s365 + $0x49] sm:$0xff] %vm277, %v2708
        %2741 = vst.msk [vmem:[%s365 + $0x51] sm:$0xff] %vm277, %v2709
        %2742 = vst.msk [vmem:[%s365 + $0x61] sm:$0xff] %vm277, %v2710
        %2743 = vst.msk [vmem:[%s365 + $0x69] sm:$0xff] %vm277, %v2711
        %2744 = vst.msk [vmem:[%s365 + $0x79] sm:$0xff] %vm277, %v2712
        %2745 = vst.msk [vmem:[%s365 + $0x81] sm:$0xff] %vm277, %v2713
        %2746 = vst.msk [vmem:[%s365 + $0x91] sm:$0xff] %vm277, %v2714
        %2747 = vst.msk [vmem:[%s365 + $0x99] sm:$0xff] %vm277, %v2715
        %2748 = vst.msk [vmem:[%s365 + $0xa9] sm:$0xff] %vm277, %v2716
        %2749 = vst.msk [vmem:[%s365 + $0xb1] sm:$0xff] %vm277, %v2717
        %2750 = vst.msk [vmem:[%s365 + $0xc1] sm:$0xff] %vm277, %v2718
        %2751 = vst.msk [vmem:[%s365 + $0xc9] sm:$0xff] %vm277, %v2719
        %2752 = vst.msk [vmem:[%s365 + $0xd9] sm:$0xff] %vm277, %v2720
        %2753 = vst.msk [vmem:[%s365 + $0xe1] sm:$0xff] %vm277, %v2721
        %2754 = vst.msk [vmem:[%s365 + $0xf1] sm:$0xff] %vm277, %v2722
        %2755 = vst.msk [vmem:[%s365 + $0xf9] sm:$0xff] %vm277, %v2723
        %2756 = vst.msk [vmem:[%s365 + $0x109] sm:$0xff] %vm277, %v2724
        %2757 = vst.msk [vmem:[%s365 + $0x111] sm:$0xff] %vm277, %v2725
        %2758 = vst.msk [vmem:[%s365 + $0x121] sm:$0xff] %vm277, %v2726
        %2759 = vst.msk [vmem:[%s365 + $0x129] sm:$0xff] %vm277, %v2727
        %2760 = vst.msk [vmem:[%s365 + $0x139] sm:$0xff] %vm277, %v2728
        %2761 = vst.msk [vmem:[%s365 + $0x141] sm:$0xff] %vm277, %v2729
        %2762 = vst.msk [vmem:[%s365 + $0x151] sm:$0xff] %vm277, %v2730
        %2763 = vst.msk [vmem:[%s365 + $0x159] sm:$0xff] %vm277, %v2731
        %2764 = vst.msk [vmem:[%s365 + $0x169] sm:$0xff] %vm277, %v2732
        %2765 = vst.msk [vmem:[%s365 + $0x171] sm:$0xff] %vm277, %v2733
        %v2766 = vld [vmem:[#allocation2] sm:$0xff]
        %v2767 = vld [vmem:[#allocation2 + $0x8] sm:$0xff]
        %v2768 = vld [vmem:[#allocation2 + $0x18] sm:$0xff]
        %v2769 = vld [vmem:[#allocation2 + $0x20] sm:$0xff]
        %v2770 = vld [vmem:[#allocation2 + $0x30] sm:$0xff]
        %v2771 = vld [vmem:[#allocation2 + $0x38] sm:$0xff]
        %v2772 = vld [vmem:[#allocation2 + $0x48] sm:$0xff]
        %v2773 = vld [vmem:[#allocation2 + $0x50] sm:$0xff]
        %v2774 = vld [vmem:[#allocation2 + $0x60] sm:$0xff]
        %v2775 = vld [vmem:[#allocation2 + $0x68] sm:$0xff]
        %v2776 = vld [vmem:[#allocation2 + $0x78] sm:$0xff]
        %v2777 = vld [vmem:[#allocation2 + $0x80] sm:$0xff]
        %v2778 = vld [vmem:[#allocation2 + $0x90] sm:$0xff]
        %v2779 = vld [vmem:[#allocation2 + $0x98] sm:$0xff]
        %v2780 = vld [vmem:[#allocation2 + $0xa8] sm:$0xff]
        %v2781 = vld [vmem:[#allocation2 + $0xb0] sm:$0xff]
        %v2782 = vld [vmem:[#allocation2 + $0xc0] sm:$0xff]
        %v2783 = vld [vmem:[#allocation2 + $0xc8] sm:$0xff]
        %v2784 = vld [vmem:[#allocation2 + $0xd8] sm:$0xff]
        %v2785 = vld [vmem:[#allocation2 + $0xe0] sm:$0xff]
        %v2786 = vld [vmem:[#allocation2 + $0xf0] sm:$0xff]
        %v2787 = vld [vmem:[#allocation2 + $0xf8] sm:$0xff]
        %v2788 = vld [vmem:[#allocation2 + $0x108] sm:$0xff]
        %v2789 = vld [vmem:[#allocation2 + $0x110] sm:$0xff]
        %v2790 = vld [vmem:[#allocation2 + $0x120] sm:$0xff]
        %v2791 = vld [vmem:[#allocation2 + $0x128] sm:$0xff]
        %v2792 = vld [vmem:[#allocation2 + $0x138] sm:$0xff]
        %v2793 = vld [vmem:[#allocation2 + $0x140] sm:$0xff]
        %v2794 = vld [vmem:[#allocation2 + $0x150] sm:$0xff]
        %v2795 = vld [vmem:[#allocation2 + $0x158] sm:$0xff]
        %v2796 = vld [vmem:[#allocation2 + $0x168] sm:$0xff]
        %v2797 = vld [vmem:[#allocation2 + $0x170] sm:$0xff]
        %v2798 = vld [vmem:[#allocation2 + $0x1] sm:$0xff]
        %v2799 = vld [vmem:[#allocation2 + $0x9] sm:$0xff]
        %v2800 = vld [vmem:[#allocation2 + $0x19] sm:$0xff]
        %v2801 = vld [vmem:[#allocation2 + $0x21] sm:$0xff]
        %v2802 = vld [vmem:[#allocation2 + $0x31] sm:$0xff]
        %v2803 = vld [vmem:[#allocation2 + $0x39] sm:$0xff]
        %v2804 = vld [vmem:[#allocation2 + $0x49] sm:$0xff]
        %v2805 = vld [vmem:[#allocation2 + $0x51] sm:$0xff]
        %v2806 = vld [vmem:[#allocation2 + $0x61] sm:$0xff]
        %v2807 = vld [vmem:[#allocation2 + $0x69] sm:$0xff]
        %v2808 = vld [vmem:[#allocation2 + $0x79] sm:$0xff]
        %v2809 = vld [vmem:[#allocation2 + $0x81] sm:$0xff]
        %v2810 = vld [vmem:[#allocation2 + $0x91] sm:$0xff]
        %v2811 = vld [vmem:[#allocation2 + $0x99] sm:$0xff]
        %v2812 = vld [vmem:[#allocation2 + $0xa9] sm:$0xff]
        %v2813 = vld [vmem:[#allocation2 + $0xb1] sm:$0xff]
        %v2814 = vld [vmem:[#allocation2 + $0xc1] sm:$0xff]
        %v2815 = vld [vmem:[#allocation2 + $0xc9] sm:$0xff]
        %v2816 = vld [vmem:[#allocation2 + $0xd9] sm:$0xff]
        %v2817 = vld [vmem:[#allocation2 + $0xe1] sm:$0xff]
        %v2818 = vld [vmem:[#allocation2 + $0xf1] sm:$0xff]
        %v2819 = vld [vmem:[#allocation2 + $0xf9] sm:$0xff]
        %v2820 = vld [vmem:[#allocation2 + $0x109] sm:$0xff]
        %v2821 = vld [vmem:[#allocation2 + $0x111] sm:$0xff]
        %v2822 = vld [vmem:[#allocation2 + $0x121] sm:$0xff]
        %v2823 = vld [vmem:[#allocation2 + $0x129] sm:$0xff]
        %v2824 = vld [vmem:[#allocation2 + $0x139] sm:$0xff]
        %v2825 = vld [vmem:[#allocation2 + $0x141] sm:$0xff]
        %v2826 = vld [vmem:[#allocation2 + $0x151] sm:$0xff]
        %v2827 = vld [vmem:[#allocation2 + $0x159] sm:$0xff]
        %v2828 = vld [vmem:[#allocation2 + $0x169] sm:$0xff]
        %v2829 = vld [vmem:[#allocation2 + $0x171] sm:$0xff]
        %v2830 = vld [vmem:[#allocation2 + $0x2] sm:$0xff]
        %v2831 = vld [vmem:[#allocation2 + $0xa] sm:$0xff]
        %v2832 = vld [vmem:[#allocation2 + $0x1a] sm:$0xff]
        %v2833 = vld [vmem:[#allocation2 + $0x22] sm:$0xff]
        %v2834 = vld [vmem:[#allocation2 + $0x32] sm:$0xff]
        %v2835 = vld [vmem:[#allocation2 + $0x3a] sm:$0xff]
        %v2836 = vld [vmem:[#allocation2 + $0x4a] sm:$0xff]
        %v2837 = vld [vmem:[#allocation2 + $0x52] sm:$0xff]
        %v2838 = vld [vmem:[#allocation2 + $0x62] sm:$0xff]
        %v2839 = vld [vmem:[#allocation2 + $0x6a] sm:$0xff]
        %v2840 = vld [vmem:[#allocation2 + $0x7a] sm:$0xff]
        %v2841 = vld [vmem:[#allocation2 + $0x82] sm:$0xff]
        %v2842 = vld [vmem:[#allocation2 + $0x92] sm:$0xff]
        %v2843 = vld [vmem:[#allocation2 + $0x9a] sm:$0xff]
        %v2844 = vld [vmem:[#allocation2 + $0xaa] sm:$0xff]
        %v2845 = vld [vmem:[#allocation2 + $0xb2] sm:$0xff]
        %v2846 = vld [vmem:[#allocation2 + $0xc2] sm:$0xff]
        %v2847 = vld [vmem:[#allocation2 + $0xca] sm:$0xff]
        %v2848 = vld [vmem:[#allocation2 + $0xda] sm:$0xff]
        %v2849 = vld [vmem:[#allocation2 + $0xe2] sm:$0xff]
        %v2850 = vld [vmem:[#allocation2 + $0xf2] sm:$0xff]
        %v2851 = vld [vmem:[#allocation2 + $0xfa] sm:$0xff]
        %v2852 = vld [vmem:[#allocation2 + $0x10a] sm:$0xff]
        %v2853 = vld [vmem:[#allocation2 + $0x112] sm:$0xff]
        %v2854 = vld [vmem:[#allocation2 + $0x122] sm:$0xff]
        %v2855 = vld [vmem:[#allocation2 + $0x12a] sm:$0xff]
        %v2856 = vld [vmem:[#allocation2 + $0x13a] sm:$0xff]
        %v2857 = vld [vmem:[#allocation2 + $0x142] sm:$0xff]
        %v2858 = vld [vmem:[#allocation2 + $0x152] sm:$0xff]
        %v2859 = vld [vmem:[#allocation2 + $0x15a] sm:$0xff]
        %v2860 = vld [vmem:[#allocation2 + $0x16a] sm:$0xff]
        %v2861 = vld [vmem:[#allocation2 + $0x172] sm:$0xff]
        %2894 = vrot.lane.b32.xlu0 %v2798, 32
        %v2895 = vpop.permute.xlu0 %2894
        %2896 = vrot.lane.b32.xlu0 %v2799, 32
        %v2897 = vpop.permute.xlu0 %2896
        %2898 = vrot.lane.b32.xlu0 %v2800, 32
        %v2899 = vpop.permute.xlu0 %2898
        %2900 = vrot.lane.b32.xlu0 %v2801, 32
        %v2901 = vpop.permute.xlu0 %2900
        %2902 = vrot.lane.b32.xlu0 %v2802, 32
        %v2903 = vpop.permute.xlu0 %2902
        %2904 = vrot.lane.b32.xlu0 %v2803, 32
        %v2905 = vpop.permute.xlu0 %2904
        %2906 = vrot.lane.b32.xlu0 %v2804, 32
        %v2907 = vpop.permute.xlu0 %2906
        %2908 = vrot.lane.b32.xlu0 %v2805, 32
        %v2909 = vpop.permute.xlu0 %2908
        %2910 = vrot.lane.b32.xlu0 %v2806, 32
        %v2911 = vpop.permute.xlu0 %2910
        %2912 = vrot.lane.b32.xlu0 %v2807, 32
        %v2913 = vpop.permute.xlu0 %2912
        %2914 = vrot.lane.b32.xlu0 %v2808, 32
        %v2915 = vpop.permute.xlu0 %2914
        %2916 = vrot.lane.b32.xlu0 %v2809, 32
        %v2917 = vpop.permute.xlu0 %2916
        %2918 = vrot.lane.b32.xlu0 %v2810, 32
        %v2919 = vpop.permute.xlu0 %2918
        %2920 = vrot.lane.b32.xlu0 %v2811, 32
        %v2921 = vpop.permute.xlu0 %2920
        %2922 = vrot.lane.b32.xlu0 %v2812, 32
        %v2923 = vpop.permute.xlu0 %2922
        %2924 = vrot.lane.b32.xlu0 %v2813, 32
        %v2925 = vpop.permute.xlu0 %2924
        %2926 = vrot.lane.b32.xlu0 %v2814, 32
        %v2927 = vpop.permute.xlu0 %2926
        %2928 = vrot.lane.b32.xlu0 %v2815, 32
        %v2929 = vpop.permute.xlu0 %2928
        %2930 = vrot.lane.b32.xlu0 %v2816, 32
        %v2931 = vpop.permute.xlu0 %2930
        %2932 = vrot.lane.b32.xlu0 %v2817, 32
        %v2933 = vpop.permute.xlu0 %2932
        %2934 = vrot.lane.b32.xlu0 %v2818, 32
        %v2935 = vpop.permute.xlu0 %2934
        %2936 = vrot.lane.b32.xlu0 %v2819, 32
        %v2937 = vpop.permute.xlu0 %2936
        %2938 = vrot.lane.b32.xlu0 %v2820, 32
        %v2939 = vpop.permute.xlu0 %2938
        %2940 = vrot.lane.b32.xlu0 %v2821, 32
        %v2941 = vpop.permute.xlu0 %2940
        %2942 = vrot.lane.b32.xlu0 %v2822, 32
        %v2943 = vpop.permute.xlu0 %2942
        %2944 = vrot.lane.b32.xlu0 %v2823, 32
        %v2945 = vpop.permute.xlu0 %2944
        %2946 = vrot.lane.b32.xlu0 %v2824, 32
        %v2947 = vpop.permute.xlu0 %2946
        %2948 = vrot.lane.b32.xlu0 %v2825, 32
        %v2949 = vpop.permute.xlu0 %2948
        %2950 = vrot.lane.b32.xlu0 %v2826, 32
        %v2951 = vpop.permute.xlu0 %2950
        %2952 = vrot.lane.b32.xlu0 %v2827, 32
        %v2953 = vpop.permute.xlu0 %2952
        %2954 = vrot.lane.b32.xlu0 %v2828, 32
        %v2955 = vpop.permute.xlu0 %2954
        %2956 = vrot.lane.b32.xlu0 %v2829, 32
        %v2957 = vpop.permute.xlu0 %2956
        %3022 = vrot.lane.b32.xlu0 %v2830, 64
        %v3023 = vpop.permute.xlu0 %3022
        %3024 = vrot.lane.b32.xlu0 %v2831, 64
        %v3025 = vpop.permute.xlu0 %3024
        %3026 = vrot.lane.b32.xlu0 %v2832, 64
        %v3027 = vpop.permute.xlu0 %3026
        %3028 = vrot.lane.b32.xlu0 %v2833, 64
        %v3029 = vpop.permute.xlu0 %3028
        %3030 = vrot.lane.b32.xlu0 %v2834, 64
        %v3031 = vpop.permute.xlu0 %3030
        %3032 = vrot.lane.b32.xlu0 %v2835, 64
        %v3033 = vpop.permute.xlu0 %3032
        %3034 = vrot.lane.b32.xlu0 %v2836, 64
        %v3035 = vpop.permute.xlu0 %3034
        %3036 = vrot.lane.b32.xlu0 %v2837, 64
        %v3037 = vpop.permute.xlu0 %3036
        %3038 = vrot.lane.b32.xlu0 %v2838, 64
        %v3039 = vpop.permute.xlu0 %3038
        %3040 = vrot.lane.b32.xlu0 %v2839, 64
        %v3041 = vpop.permute.xlu0 %3040
        %3042 = vrot.lane.b32.xlu0 %v2840, 64
        %v3043 = vpop.permute.xlu0 %3042
        %3044 = vrot.lane.b32.xlu0 %v2841, 64
        %v3045 = vpop.permute.xlu0 %3044
        %3046 = vrot.lane.b32.xlu0 %v2842, 64
        %v3047 = vpop.permute.xlu0 %3046
        %3048 = vrot.lane.b32.xlu0 %v2843, 64
        %v3049 = vpop.permute.xlu0 %3048
        %3050 = vrot.lane.b32.xlu0 %v2844, 64
        %v3051 = vpop.permute.xlu0 %3050
        %3052 = vrot.lane.b32.xlu0 %v2845, 64
        %v3053 = vpop.permute.xlu0 %3052
        %3054 = vrot.lane.b32.xlu0 %v2846, 64
        %v3055 = vpop.permute.xlu0 %3054
        %3056 = vrot.lane.b32.xlu0 %v2847, 64
        %v3057 = vpop.permute.xlu0 %3056
        %3058 = vrot.lane.b32.xlu0 %v2848, 64
        %v3059 = vpop.permute.xlu0 %3058
        %3060 = vrot.lane.b32.xlu0 %v2849, 64
        %v3061 = vpop.permute.xlu0 %3060
        %3062 = vrot.lane.b32.xlu0 %v2850, 64
        %v3063 = vpop.permute.xlu0 %3062
        %3064 = vrot.lane.b32.xlu0 %v2851, 64
        %v3065 = vpop.permute.xlu0 %3064
        %3066 = vrot.lane.b32.xlu0 %v2852, 64
        %v3067 = vpop.permute.xlu0 %3066
        %3068 = vrot.lane.b32.xlu0 %v2853, 64
        %v3069 = vpop.permute.xlu0 %3068
        %3070 = vrot.lane.b32.xlu0 %v2854, 64
        %v3071 = vpop.permute.xlu0 %3070
        %3072 = vrot.lane.b32.xlu0 %v2855, 64
        %v3073 = vpop.permute.xlu0 %3072
        %3074 = vrot.lane.b32.xlu0 %v2856, 64
        %v3075 = vpop.permute.xlu0 %3074
        %3076 = vrot.lane.b32.xlu0 %v2857, 64
        %v3077 = vpop.permute.xlu0 %3076
        %3078 = vrot.lane.b32.xlu0 %v2858, 64
        %v3079 = vpop.permute.xlu0 %3078
        %3080 = vrot.lane.b32.xlu0 %v2859, 64
        %v3081 = vpop.permute.xlu0 %3080
        %3082 = vrot.lane.b32.xlu0 %v2860, 64
        %v3083 = vpop.permute.xlu0 %3082
        %3084 = vrot.lane.b32.xlu0 %v2861, 64
        %v3085 = vpop.permute.xlu0 %3084
        %v3118 = vsel %vm277, %v2766, %v2895
        %v3119 = vsel %vm277, %v2767, %v2897
        %v3120 = vsel %vm277, %v2768, %v2899
        %v3121 = vsel %vm277, %v2769, %v2901
        %v3122 = vsel %vm277, %v2770, %v2903
        %v3123 = vsel %vm277, %v2771, %v2905
        %v3124 = vsel %vm277, %v2772, %v2907
        %v3125 = vsel %vm277, %v2773, %v2909
        %v3126 = vsel %vm277, %v2774, %v2911
        %v3127 = vsel %vm277, %v2775, %v2913
        %v3128 = vsel %vm277, %v2776, %v2915
        %v3129 = vsel %vm277, %v2777, %v2917
        %v3130 = vsel %vm277, %v2778, %v2919
        %v3131 = vsel %vm277, %v2779, %v2921
        %v3132 = vsel %vm277, %v2780, %v2923
        %v3133 = vsel %vm277, %v2781, %v2925
        %v3134 = vsel %vm277, %v2782, %v2927
        %v3135 = vsel %vm277, %v2783, %v2929
        %v3136 = vsel %vm277, %v2784, %v2931
        %v3137 = vsel %vm277, %v2785, %v2933
        %v3138 = vsel %vm277, %v2786, %v2935
        %v3139 = vsel %vm277, %v2787, %v2937
        %v3140 = vsel %vm277, %v2788, %v2939
        %v3141 = vsel %vm277, %v2789, %v2941
        %v3142 = vsel %vm277, %v2790, %v2943
        %v3143 = vsel %vm277, %v2791, %v2945
        %v3144 = vsel %vm277, %v2792, %v2947
        %v3145 = vsel %vm277, %v2793, %v2949
        %v3146 = vsel %vm277, %v2794, %v2951
        %v3147 = vsel %vm277, %v2795, %v2953
        %v3148 = vsel %vm277, %v2796, %v2955
        %v3149 = vsel %vm277, %v2797, %v2957
        %vm3150 = vcmask 523264
        %v3151 = vsel %vm3150, %v3118, %v3023
        %v3152 = vsel %vm3150, %v3119, %v3025
        %v3153 = vsel %vm3150, %v3120, %v3027
        %v3154 = vsel %vm3150, %v3121, %v3029
        %v3155 = vsel %vm3150, %v3122, %v3031
        %v3156 = vsel %vm3150, %v3123, %v3033
        %v3157 = vsel %vm3150, %v3124, %v3035
        %v3158 = vsel %vm3150, %v3125, %v3037
        %v3159 = vsel %vm3150, %v3126, %v3039
        %v3160 = vsel %vm3150, %v3127, %v3041
        %v3161 = vsel %vm3150, %v3128, %v3043
        %v3162 = vsel %vm3150, %v3129, %v3045
        %v3163 = vsel %vm3150, %v3130, %v3047
        %v3164 = vsel %vm3150, %v3131, %v3049
        %v3165 = vsel %vm3150, %v3132, %v3051
        %v3166 = vsel %vm3150, %v3133, %v3053
        %v3167 = vsel %vm3150, %v3134, %v3055
        %v3168 = vsel %vm3150, %v3135, %v3057
        %v3169 = vsel %vm3150, %v3136, %v3059
        %v3170 = vsel %vm3150, %v3137, %v3061
        %v3171 = vsel %vm3150, %v3138, %v3063
        %v3172 = vsel %vm3150, %v3139, %v3065
        %v3173 = vsel %vm3150, %v3140, %v3067
        %v3174 = vsel %vm3150, %v3141, %v3069
        %v3175 = vsel %vm3150, %v3142, %v3071
        %v3176 = vsel %vm3150, %v3143, %v3073
        %v3177 = vsel %vm3150, %v3144, %v3075
        %v3178 = vsel %vm3150, %v3145, %v3077
        %v3179 = vsel %vm3150, %v3146, %v3079
        %v3180 = vsel %vm3150, %v3147, %v3081
        %v3181 = vsel %vm3150, %v3148, %v3083
        %v3182 = vsel %vm3150, %v3149, %v3085
        %v3183 = vld [vmem:[%s3] sm:$0xff]
        %v3184 = vld [vmem:[%s3 + $0x8] sm:$0xff]
        %v3185 = vld [vmem:[%s3 + $0x10] sm:$0xff]
        %v3186 = vld [vmem:[%s3 + $0x18] sm:$0xff]
        %v3187 = vld [vmem:[%s3 + $0x20] sm:$0xff]
        %v3188 = vld [vmem:[%s3 + $0x28] sm:$0xff]
        %v3189 = vld [vmem:[%s3 + $0x30] sm:$0xff]
        %v3190 = vld [vmem:[%s3 + $0x38] sm:$0xff]
        %v3191 = vld [vmem:[%s3 + $0x40] sm:$0xff]
        %v3192 = vld [vmem:[%s3 + $0x48] sm:$0xff]
        %v3193 = vld [vmem:[%s3 + $0x50] sm:$0xff]
        %v3194 = vld [vmem:[%s3 + $0x58] sm:$0xff]
        %v3195 = vld [vmem:[%s365] sm:$0xff]
        %v3196 = vld [vmem:[%s365 + $0x8] sm:$0xff]
        %v3197 = vld [vmem:[%s365 + $0x18] sm:$0xff]
        %v3198 = vld [vmem:[%s365 + $0x20] sm:$0xff]
        %v3199 = vld [vmem:[%s365 + $0x30] sm:$0xff]
        %v3200 = vld [vmem:[%s365 + $0x38] sm:$0xff]
        %v3201 = vld [vmem:[%s365 + $0x48] sm:$0xff]
        %v3202 = vld [vmem:[%s365 + $0x50] sm:$0xff]
        %v3203 = vld [vmem:[%s365 + $0x60] sm:$0xff]
        %v3204 = vld [vmem:[%s365 + $0x68] sm:$0xff]
        %v3205 = vld [vmem:[%s365 + $0x78] sm:$0xff]
        %v3206 = vld [vmem:[%s365 + $0x80] sm:$0xff]
        %v3207 = vld [vmem:[%s365 + $0x90] sm:$0xff]
        %v3208 = vld [vmem:[%s365 + $0x98] sm:$0xff]
        %v3209 = vld [vmem:[%s365 + $0xa8] sm:$0xff]
        %v3210 = vld [vmem:[%s365 + $0xb0] sm:$0xff]
        %v3211 = vld [vmem:[%s365 + $0xc0] sm:$0xff]
        %v3212 = vld [vmem:[%s365 + $0xc8] sm:$0xff]
        %v3213 = vld [vmem:[%s365 + $0xd8] sm:$0xff]
        %v3214 = vld [vmem:[%s365 + $0xe0] sm:$0xff]
        %v3215 = vld [vmem:[%s365 + $0xf0] sm:$0xff]
        %v3216 = vld [vmem:[%s365 + $0xf8] sm:$0xff]
        %v3217 = vld [vmem:[%s365 + $0x108] sm:$0xff]
        %v3218 = vld [vmem:[%s365 + $0x110] sm:$0xff]
        %v3219 = vld [vmem:[%s365 + $0x120] sm:$0xff]
        %v3220 = vld [vmem:[%s365 + $0x128] sm:$0xff]
        %v3221 = vld [vmem:[%s365 + $0x138] sm:$0xff]
        %v3222 = vld [vmem:[%s365 + $0x140] sm:$0xff]
        %v3223 = vld [vmem:[%s365 + $0x150] sm:$0xff]
        %v3224 = vld [vmem:[%s365 + $0x158] sm:$0xff]
        %v3225 = vld [vmem:[%s365 + $0x168] sm:$0xff]
        %v3226 = vld [vmem:[%s365 + $0x170] sm:$0xff]
        %v3227 = vld [vmem:[%s365 + $0x1] sm:$0xff]
        %v3228 = vld [vmem:[%s365 + $0x9] sm:$0xff]
        %v3229 = vld [vmem:[%s365 + $0x19] sm:$0xff]
        %v3230 = vld [vmem:[%s365 + $0x21] sm:$0xff]
        %v3231 = vld [vmem:[%s365 + $0x31] sm:$0xff]
        %v3232 = vld [vmem:[%s365 + $0x39] sm:$0xff]
        %v3233 = vld [vmem:[%s365 + $0x49] sm:$0xff]
        %v3234 = vld [vmem:[%s365 + $0x51] sm:$0xff]
        %v3235 = vld [vmem:[%s365 + $0x61] sm:$0xff]
        %v3236 = vld [vmem:[%s365 + $0x69] sm:$0xff]
        %v3237 = vld [vmem:[%s365 + $0x79] sm:$0xff]
        %v3238 = vld [vmem:[%s365 + $0x81] sm:$0xff]
        %v3239 = vld [vmem:[%s365 + $0x91] sm:$0xff]
        %v3240 = vld [vmem:[%s365 + $0x99] sm:$0xff]
        %v3241 = vld [vmem:[%s365 + $0xa9] sm:$0xff]
        %v3242 = vld [vmem:[%s365 + $0xb1] sm:$0xff]
        %v3243 = vld [vmem:[%s365 + $0xc1] sm:$0xff]
        %v3244 = vld [vmem:[%s365 + $0xc9] sm:$0xff]
        %v3245 = vld [vmem:[%s365 + $0xd9] sm:$0xff]
        %v3246 = vld [vmem:[%s365 + $0xe1] sm:$0xff]
        %v3247 = vld [vmem:[%s365 + $0xf1] sm:$0xff]
        %v3248 = vld [vmem:[%s365 + $0xf9] sm:$0xff]
        %v3249 = vld [vmem:[%s365 + $0x109] sm:$0xff]
        %v3250 = vld [vmem:[%s365 + $0x111] sm:$0xff]
        %v3251 = vld [vmem:[%s365 + $0x121] sm:$0xff]
        %v3252 = vld [vmem:[%s365 + $0x129] sm:$0xff]
        %v3253 = vld [vmem:[%s365 + $0x139] sm:$0xff]
        %v3254 = vld [vmem:[%s365 + $0x141] sm:$0xff]
        %v3255 = vld [vmem:[%s365 + $0x151] sm:$0xff]
        %v3256 = vld [vmem:[%s365 + $0x159] sm:$0xff]
        %v3257 = vld [vmem:[%s365 + $0x169] sm:$0xff]
        %v3258 = vld [vmem:[%s365 + $0x171] sm:$0xff]
        %v3259 = vld [vmem:[%s365 + $0x2] sm:$0xff]
        %v3260 = vld [vmem:[%s365 + $0xa] sm:$0xff]
        %v3261 = vld [vmem:[%s365 + $0x1a] sm:$0xff]
        %v3262 = vld [vmem:[%s365 + $0x22] sm:$0xff]
        %v3263 = vld [vmem:[%s365 + $0x32] sm:$0xff]
        %v3264 = vld [vmem:[%s365 + $0x3a] sm:$0xff]
        %v3265 = vld [vmem:[%s365 + $0x4a] sm:$0xff]
        %v3266 = vld [vmem:[%s365 + $0x52] sm:$0xff]
        %v3267 = vld [vmem:[%s365 + $0x62] sm:$0xff]
        %v3268 = vld [vmem:[%s365 + $0x6a] sm:$0xff]
        %v3269 = vld [vmem:[%s365 + $0x7a] sm:$0xff]
        %v3270 = vld [vmem:[%s365 + $0x82] sm:$0xff]
        %v3271 = vld [vmem:[%s365 + $0x92] sm:$0xff]
        %v3272 = vld [vmem:[%s365 + $0x9a] sm:$0xff]
        %v3273 = vld [vmem:[%s365 + $0xaa] sm:$0xff]
        %v3274 = vld [vmem:[%s365 + $0xb2] sm:$0xff]
        %v3275 = vld [vmem:[%s365 + $0xc2] sm:$0xff]
        %v3276 = vld [vmem:[%s365 + $0xca] sm:$0xff]
        %v3277 = vld [vmem:[%s365 + $0xda] sm:$0xff]
        %v3278 = vld [vmem:[%s365 + $0xe2] sm:$0xff]
        %v3279 = vld [vmem:[%s365 + $0xf2] sm:$0xff]
        %v3280 = vld [vmem:[%s365 + $0xfa] sm:$0xff]
        %v3281 = vld [vmem:[%s365 + $0x10a] sm:$0xff]
        %v3282 = vld [vmem:[%s365 + $0x112] sm:$0xff]
        %v3283 = vld [vmem:[%s365 + $0x122] sm:$0xff]
        %v3284 = vld [vmem:[%s365 + $0x12a] sm:$0xff]
        %v3285 = vld [vmem:[%s365 + $0x13a] sm:$0xff]
        %v3286 = vld [vmem:[%s365 + $0x142] sm:$0xff]
        %v3287 = vld [vmem:[%s365 + $0x152] sm:$0xff]
        %v3288 = vld [vmem:[%s365 + $0x15a] sm:$0xff]
        %v3289 = vld [vmem:[%s365 + $0x16a] sm:$0xff]
        %v3290 = vld [vmem:[%s365 + $0x172] sm:$0xff]
        %3323 = vrot.lane.b32.xlu0 %v3227, 32
        %v3324 = vpop.permute.xlu0 %3323
        %3325 = vrot.lane.b32.xlu0 %v3228, 32
        %v3326 = vpop.permute.xlu0 %3325
        %3327 = vrot.lane.b32.xlu0 %v3229, 32
        %v3328 = vpop.permute.xlu0 %3327
        %3329 = vrot.lane.b32.xlu0 %v3230, 32
        %v3330 = vpop.permute.xlu0 %3329
        %3331 = vrot.lane.b32.xlu0 %v3231, 32
        %v3332 = vpop.permute.xlu0 %3331
        %3333 = vrot.lane.b32.xlu0 %v3232, 32
        %v3334 = vpop.permute.xlu0 %3333
        %3335 = vrot.lane.b32.xlu0 %v3233, 32
        %v3336 = vpop.permute.xlu0 %3335
        %3337 = vrot.lane.b32.xlu0 %v3234, 32
        %v3338 = vpop.permute.xlu0 %3337
        %3339 = vrot.lane.b32.xlu0 %v3235, 32
        %v3340 = vpop.permute.xlu0 %3339
        %3341 = vrot.lane.b32.xlu0 %v3236, 32
        %v3342 = vpop.permute.xlu0 %3341
        %3343 = vrot.lane.b32.xlu0 %v3237, 32
        %v3344 = vpop.permute.xlu0 %3343
        %3345 = vrot.lane.b32.xlu0 %v3238, 32
        %v3346 = vpop.permute.xlu0 %3345
        %3347 = vrot.lane.b32.xlu0 %v3239, 32
        %v3348 = vpop.permute.xlu0 %3347
        %3349 = vrot.lane.b32.xlu0 %v3240, 32
        %v3350 = vpop.permute.xlu0 %3349
        %3351 = vrot.lane.b32.xlu0 %v3241, 32
        %v3352 = vpop.permute.xlu0 %3351
        %3353 = vrot.lane.b32.xlu0 %v3242, 32
        %v3354 = vpop.permute.xlu0 %3353
        %3355 = vrot.lane.b32.xlu0 %v3243, 32
        %v3356 = vpop.permute.xlu0 %3355
        %3357 = vrot.lane.b32.xlu0 %v3244, 32
        %v3358 = vpop.permute.xlu0 %3357
        %3359 = vrot.lane.b32.xlu0 %v3245, 32
        %v3360 = vpop.permute.xlu0 %3359
        %3361 = vrot.lane.b32.xlu0 %v3246, 32
        %v3362 = vpop.permute.xlu0 %3361
        %3363 = vrot.lane.b32.xlu0 %v3247, 32
        %v3364 = vpop.permute.xlu0 %3363
        %3365 = vrot.lane.b32.xlu0 %v3248, 32
        %v3366 = vpop.permute.xlu0 %3365
        %3367 = vrot.lane.b32.xlu0 %v3249, 32
        %v3368 = vpop.permute.xlu0 %3367
        %3369 = vrot.lane.b32.xlu0 %v3250, 32
        %v3370 = vpop.permute.xlu0 %3369
        %3371 = vrot.lane.b32.xlu0 %v3251, 32
        %v3372 = vpop.permute.xlu0 %3371
        %3373 = vrot.lane.b32.xlu0 %v3252, 32
        %v3374 = vpop.permute.xlu0 %3373
        %3375 = vrot.lane.b32.xlu0 %v3253, 32
        %v3376 = vpop.permute.xlu0 %3375
        %3377 = vrot.lane.b32.xlu0 %v3254, 32
        %v3378 = vpop.permute.xlu0 %3377
        %3379 = vrot.lane.b32.xlu0 %v3255, 32
        %v3380 = vpop.permute.xlu0 %3379
        %3381 = vrot.lane.b32.xlu0 %v3256, 32
        %v3382 = vpop.permute.xlu0 %3381
        %3383 = vrot.lane.b32.xlu0 %v3257, 32
        %v3384 = vpop.permute.xlu0 %3383
        %3385 = vrot.lane.b32.xlu0 %v3258, 32
        %v3386 = vpop.permute.xlu0 %3385
        %3451 = vrot.lane.b32.xlu0 %v3259, 64
        %v3452 = vpop.permute.xlu0 %3451
        %3453 = vrot.lane.b32.xlu0 %v3260, 64
        %v3454 = vpop.permute.xlu0 %3453
        %3455 = vrot.lane.b32.xlu0 %v3261, 64
        %v3456 = vpop.permute.xlu0 %3455
        %3457 = vrot.lane.b32.xlu0 %v3262, 64
        %v3458 = vpop.permute.xlu0 %3457
        %3459 = vrot.lane.b32.xlu0 %v3263, 64
        %v3460 = vpop.permute.xlu0 %3459
        %3461 = vrot.lane.b32.xlu0 %v3264, 64
        %v3462 = vpop.permute.xlu0 %3461
        %3463 = vrot.lane.b32.xlu0 %v3265, 64
        %v3464 = vpop.permute.xlu0 %3463
        %3465 = vrot.lane.b32.xlu0 %v3266, 64
        %v3466 = vpop.permute.xlu0 %3465
        %3467 = vrot.lane.b32.xlu0 %v3267, 64
        %v3468 = vpop.permute.xlu0 %3467
        %3469 = vrot.lane.b32.xlu0 %v3268, 64
        %v3470 = vpop.permute.xlu0 %3469
        %3471 = vrot.lane.b32.xlu0 %v3269, 64
        %v3472 = vpop.permute.xlu0 %3471
        %3473 = vrot.lane.b32.xlu0 %v3270, 64
        %v3474 = vpop.permute.xlu0 %3473
        %3475 = vrot.lane.b32.xlu0 %v3271, 64
        %v3476 = vpop.permute.xlu0 %3475
        %3477 = vrot.lane.b32.xlu0 %v3272, 64
        %v3478 = vpop.permute.xlu0 %3477
        %3479 = vrot.lane.b32.xlu0 %v3273, 64
        %v3480 = vpop.permute.xlu0 %3479
        %3481 = vrot.lane.b32.xlu0 %v3274, 64
        %v3482 = vpop.permute.xlu0 %3481
        %3483 = vrot.lane.b32.xlu0 %v3275, 64
        %v3484 = vpop.permute.xlu0 %3483
        %3485 = vrot.lane.b32.xlu0 %v3276, 64
        %v3486 = vpop.permute.xlu0 %3485
        %3487 = vrot.lane.b32.xlu0 %v3277, 64
        %v3488 = vpop.permute.xlu0 %3487
        %3489 = vrot.lane.b32.xlu0 %v3278, 64
        %v3490 = vpop.permute.xlu0 %3489
        %3491 = vrot.lane.b32.xlu0 %v3279, 64
        %v3492 = vpop.permute.xlu0 %3491
        %3493 = vrot.lane.b32.xlu0 %v3280, 64
        %v3494 = vpop.permute.xlu0 %3493
        %3495 = vrot.lane.b32.xlu0 %v3281, 64
        %v3496 = vpop.permute.xlu0 %3495
        %3497 = vrot.lane.b32.xlu0 %v3282, 64
        %v3498 = vpop.permute.xlu0 %3497
        %3499 = vrot.lane.b32.xlu0 %v3283, 64
        %v3500 = vpop.permute.xlu0 %3499
        %3501 = vrot.lane.b32.xlu0 %v3284, 64
        %v3502 = vpop.permute.xlu0 %3501
        %3503 = vrot.lane.b32.xlu0 %v3285, 64
        %v3504 = vpop.permute.xlu0 %3503
        %3505 = vrot.lane.b32.xlu0 %v3286, 64
        %v3506 = vpop.permute.xlu0 %3505
        %3507 = vrot.lane.b32.xlu0 %v3287, 64
        %v3508 = vpop.permute.xlu0 %3507
        %3509 = vrot.lane.b32.xlu0 %v3288, 64
        %v3510 = vpop.permute.xlu0 %3509
        %3511 = vrot.lane.b32.xlu0 %v3289, 64
        %v3512 = vpop.permute.xlu0 %3511
        %3513 = vrot.lane.b32.xlu0 %v3290, 64
        %v3514 = vpop.permute.xlu0 %3513
        %v3547 = vsel %vm277, %v3195, %v3324
        %v3548 = vsel %vm277, %v3196, %v3326
        %v3549 = vsel %vm277, %v3197, %v3328
        %v3550 = vsel %vm277, %v3198, %v3330
        %v3551 = vsel %vm277, %v3199, %v3332
        %v3552 = vsel %vm277, %v3200, %v3334
        %v3553 = vsel %vm277, %v3201, %v3336
        %v3554 = vsel %vm277, %v3202, %v3338
        %v3555 = vsel %vm277, %v3203, %v3340
        %v3556 = vsel %vm277, %v3204, %v3342
        %v3557 = vsel %vm277, %v3205, %v3344
        %v3558 = vsel %vm277, %v3206, %v3346
        %v3559 = vsel %vm277, %v3207, %v3348
        %v3560 = vsel %vm277, %v3208, %v3350
        %v3561 = vsel %vm277, %v3209, %v3352
        %v3562 = vsel %vm277, %v3210, %v3354
        %v3563 = vsel %vm277, %v3211, %v3356
        %v3564 = vsel %vm277, %v3212, %v3358
        %v3565 = vsel %vm277, %v3213, %v3360
        %v3566 = vsel %vm277, %v3214, %v3362
        %v3567 = vsel %vm277, %v3215, %v3364
        %v3568 = vsel %vm277, %v3216, %v3366
        %v3569 = vsel %vm277, %v3217, %v3368
        %v3570 = vsel %vm277, %v3218, %v3370
        %v3571 = vsel %vm277, %v3219, %v3372
        %v3572 = vsel %vm277, %v3220, %v3374
        %v3573 = vsel %vm277, %v3221, %v3376
        %v3574 = vsel %vm277, %v3222, %v3378
        %v3575 = vsel %vm277, %v3223, %v3380
        %v3576 = vsel %vm277, %v3224, %v3382
        %v3577 = vsel %vm277, %v3225, %v3384
        %v3578 = vsel %vm277, %v3226, %v3386
        %v3579 = vsel %vm3150, %v3547, %v3452
        %v3580 = vsel %vm3150, %v3548, %v3454
        %v3581 = vsel %vm3150, %v3549, %v3456
        %v3582 = vsel %vm3150, %v3550, %v3458
        %v3583 = vsel %vm3150, %v3551, %v3460
        %v3584 = vsel %vm3150, %v3552, %v3462
        %v3585 = vsel %vm3150, %v3553, %v3464
        %v3586 = vsel %vm3150, %v3554, %v3466
        %v3587 = vsel %vm3150, %v3555, %v3468
        %v3588 = vsel %vm3150, %v3556, %v3470
        %v3589 = vsel %vm3150, %v3557, %v3472
        %v3590 = vsel %vm3150, %v3558, %v3474
        %v3591 = vsel %vm3150, %v3559, %v3476
        %v3592 = vsel %vm3150, %v3560, %v3478
        %v3593 = vsel %vm3150, %v3561, %v3480
        %v3594 = vsel %vm3150, %v3562, %v3482
        %v3595 = vsel %vm3150, %v3563, %v3484
        %v3596 = vsel %vm3150, %v3564, %v3486
        %v3597 = vsel %vm3150, %v3565, %v3488
        %v3598 = vsel %vm3150, %v3566, %v3490
        %v3599 = vsel %vm3150, %v3567, %v3492
        %v3600 = vsel %vm3150, %v3568, %v3494
        %v3601 = vsel %vm3150, %v3569, %v3496
        %v3602 = vsel %vm3150, %v3570, %v3498
        %v3603 = vsel %vm3150, %v3571, %v3500
        %v3604 = vsel %vm3150, %v3572, %v3502
        %v3605 = vsel %vm3150, %v3573, %v3504
        %v3606 = vsel %vm3150, %v3574, %v3506
        %v3607 = vsel %vm3150, %v3575, %v3508
        %v3608 = vsel %vm3150, %v3576, %v3510
        %v3609 = vsel %vm3150, %v3577, %v3512
        %v3610 = vsel %vm3150, %v3578, %v3514
        %s3611 = scalar_lea.vmem %s3, 96
        %v3612 = vld [vmem:[%s3611] sm:$0xff]
        %v3613 = vld [vmem:[%s3611 + $0x8] sm:$0xff]
        %v3614 = vld [vmem:[%s3611 + $0x10] sm:$0xff]
        %v3615 = vld [vmem:[%s3611 + $0x18] sm:$0xff]
        %v3616 = vld [vmem:[%s3611 + $0x20] sm:$0xff]
        %v3617 = vld [vmem:[%s3611 + $0x28] sm:$0xff]
        %v3618 = vld [vmem:[%s3611 + $0x30] sm:$0xff]
        %v3619 = vld [vmem:[%s3611 + $0x38] sm:$0xff]
        %v3620 = vld [vmem:[%s3611 + $0x40] sm:$0xff]
        %v3621 = vld [vmem:[%s3611 + $0x48] sm:$0xff]
        %v3622 = vld [vmem:[%s3611 + $0x50] sm:$0xff]
        %v3623 = vld [vmem:[%s3611 + $0x58] sm:$0xff]
        %vm3624 = vcmask 785408
        %v3626 = vsel %vm3624, %v3579, 0
        %v3629 = vsel %vm3624, %v3580, 0
        %v3632 = vsel %vm3624, %v3581, 0
        %v3635 = vsel %vm3624, %v3582, 0
        %v3638 = vsel %vm3624, %v3583, 0
        %v3641 = vsel %vm3624, %v3584, 0
        %v3644 = vsel %vm3624, %v3585, 0
        %v3647 = vsel %vm3624, %v3586, 0
        %v3650 = vsel %vm3624, %v3587, 0
        %v3653 = vsel %vm3624, %v3588, 0
        %v3656 = vsel %vm3624, %v3589, 0
        %v3659 = vsel %vm3624, %v3590, 0
        %v3662 = vsel %vm3624, %v3591, 0
        %v3665 = vsel %vm3624, %v3592, 0
        %v3668 = vsel %vm3624, %v3593, 0
        %v3671 = vsel %vm3624, %v3594, 0
        %v3674 = vsel %vm3624, %v3595, 0
        %v3677 = vsel %vm3624, %v3596, 0
        %v3680 = vsel %vm3624, %v3597, 0
        %v3683 = vsel %vm3624, %v3598, 0
        %v3686 = vsel %vm3624, %v3599, 0
        %v3689 = vsel %vm3624, %v3600, 0
        %v3692 = vsel %vm3624, %v3601, 0
        %v3695 = vsel %vm3624, %v3602, 0
        %v3698 = vsel %vm3624, %v3603, 0
        %v3701 = vsel %vm3624, %v3604, 0
        %v3704 = vsel %vm3624, %v3605, 0
        %v3707 = vsel %vm3624, %v3606, 0
        %v3710 = vsel %vm3624, %v3607, 0
        %v3713 = vsel %vm3624, %v3608, 0
        %v3716 = vsel %vm3624, %v3609, 0
        %v3719 = vsel %vm3624, %v3610, 0
        %3721 = vmatprep.subr.mxu0 0.0
        %3722 = vmatpush1.msra.mxu0 0.0
        %3723 = vmatprep.subr.mxu0 0.0
        %3724 = vmatpush1.msra.mxu0 0.0
        %3725 = vmatprep.subr.mxu0 0.0
        %3726 = vmatpush1.msra.mxu0 0.0
        %3727 = vmatprep.subr.mxu0 0.0
        %3728 = vmatpush1.msra.mxu0 0.0
        %3729 = vmatprep.subr.mxu0 0.0
        %3730 = vmatpush1.msra.mxu0 %v3623
        %3731 = vmatprep.subr.mxu0 0.0
        %3732 = vmatpush1.msra.mxu0 %v3622
        %3733 = vmatprep.subr.mxu0 0.0
        %3734 = vmatpush1.msra.mxu0 %v3621
        %3735 = vmatprep.subr.mxu0 0.0
        %3736 = vmatpush1.msra.mxu0 %v3620
        %3737 = vmatprep.subr.mxu0 0.0
        %3738 = vmatpush1.msra.mxu0 %v3619
        %3739 = vmatprep.subr.mxu0 0.0
        %3740 = vmatpush1.msra.mxu0 %v3618
        %3741 = vmatprep.subr.mxu0 0.0
        %3742 = vmatpush1.msra.mxu0 %v3617
        %3743 = vmatprep.subr.mxu0 0.0
        %3744 = vmatpush1.msra.mxu0 %v3616
        %3745 = vmatprep.subr.mxu0 0.0
        %3746 = vmatpush1.msra.mxu0 %v3615
        %3747 = vmatprep.subr.mxu0 0.0
        %3748 = vmatpush1.msra.mxu0 %v3614
        %3749 = vmatprep.subr.mxu0 0.0
        %3750 = vmatpush1.msra.mxu0 %v3613
        %3751 = vmatprep.subr.mxu0 0.0
        %3752 = vmatpush1.msra.mxu0 %v3612
        %3753 = vmatprep.subr.mxu0 0.0
        %3754 = vmatpush2.msra.mxu0 0.0
        %3755 = vmatprep.subr.mxu0 0.0
        %3756 = vmatpush2.msra.mxu0 0.0
        %3757 = vmatprep.subr.mxu0 0.0
        %3758 = vmatpush2.msra.mxu0 0.0
        %3759 = vmatprep.subr.mxu0 0.0
        %3760 = vmatpush2.msra.mxu0 0.0
        %3761 = vmatprep.subr.mxu0 0.0
        %3762 = vmatpush2.msra.mxu0 0.0
        %3763 = vmatprep.subr.mxu0 0.0
        %3764 = vmatpush2.msra.mxu0 0.0
        %3765 = vmatprep.subr.mxu0 0.0
        %3766 = vmatpush2.msra.mxu0 0.0
        %3767 = vmatprep.subr.mxu0 0.0
        %3768 = vmatpush2.msra.mxu0 0.0
        %3769 = vmatprep.subr.mxu0 0.0
        %3770 = vmatpush2.msra.mxu0 0.0
        %3771 = vmatprep.subr.mxu0 0.0
        %3772 = vmatpush2.msra.mxu0 0.0
        %3773 = vmatprep.subr.mxu0 0.0
        %3774 = vmatpush2.msra.mxu0 0.0
        %3775 = vmatprep.subr.mxu0 0.0
        %3776 = vmatpush2.msra.mxu0 0.0
        %3777 = vmatprep.subr.mxu0 0.0
        %3778 = vmatpush2.msra.mxu0 0.0
        %3779 = vmatprep.subr.mxu0 0.0
        %3780 = vmatpush2.msra.mxu0 0.0
        %3781 = vmatprep.subr.mxu0 0.0
        %3782 = vmatpush2.msra.mxu0 0.0
        %3783 = vmatprep.subr.mxu0 0.0
        %3784 = vmatpush2.msra.mxu0 0.0
        %3785 = vmatprep.mubr.f32.mxu0 0.0
        %3786 = vmatmul.mubr.f32.gmra.mxu0 %v3626
        %v3787 = vpop.f32.mrf.mxu0
        %v3788 = vadd.f32 0.0, %v3787
        %v3789 = vpop.f32.mrf.mxu0
        %3790 = vmatprep.mubr.f32.mxu0 0.0
        %3791 = vmatmul.mubr.f32.gmra.mxu0 %v3629
        %v3792 = vpop.f32.mrf.mxu0
        %v3793 = vadd.f32 0.0, %v3792
        %v3794 = vpop.f32.mrf.mxu0
        %3795 = vmatprep.mubr.f32.mxu0 0.0
        %3796 = vmatmul.mubr.f32.gmra.mxu0 %v3632
        %v3797 = vpop.f32.mrf.mxu0
        %v3798 = vadd.f32 0.0, %v3797
        %v3799 = vpop.f32.mrf.mxu0
        %3800 = vmatprep.mubr.f32.mxu0 0.0
        %3801 = vmatmul.mubr.f32.gmra.mxu0 %v3635
        %v3802 = vpop.f32.mrf.mxu0
        %v3803 = vadd.f32 0.0, %v3802
        %v3804 = vpop.f32.mrf.mxu0
        %3805 = vmatprep.mubr.f32.mxu0 0.0
        %3806 = vmatmul.mubr.f32.gmra.mxu0 %v3638
        %v3807 = vpop.f32.mrf.mxu0
        %v3808 = vadd.f32 0.0, %v3807
        %v3809 = vpop.f32.mrf.mxu0
        %3810 = vmatprep.mubr.f32.mxu0 0.0
        %3811 = vmatmul.mubr.f32.gmra.mxu0 %v3641
        %v3812 = vpop.f32.mrf.mxu0
        %v3813 = vadd.f32 0.0, %v3812
        %v3814 = vpop.f32.mrf.mxu0
        %3815 = vmatprep.mubr.f32.mxu0 0.0
        %3816 = vmatmul.mubr.f32.gmra.mxu0 %v3644
        %v3817 = vpop.f32.mrf.mxu0
        %v3818 = vadd.f32 0.0, %v3817
        %v3819 = vpop.f32.mrf.mxu0
        %3820 = vmatprep.mubr.f32.mxu0 0.0
        %3821 = vmatmul.mubr.f32.gmra.mxu0 %v3647
        %v3822 = vpop.f32.mrf.mxu0
        %v3823 = vadd.f32 0.0, %v3822
        %v3824 = vpop.f32.mrf.mxu0
        %3825 = vmatprep.mubr.f32.mxu0 0.0
        %3826 = vmatmul.mubr.f32.gmra.mxu0 %v3650
        %v3827 = vpop.f32.mrf.mxu0
        %v3828 = vadd.f32 0.0, %v3827
        %v3829 = vpop.f32.mrf.mxu0
        %3830 = vmatprep.mubr.f32.mxu0 0.0
        %3831 = vmatmul.mubr.f32.gmra.mxu0 %v3653
        %v3832 = vpop.f32.mrf.mxu0
        %v3833 = vadd.f32 0.0, %v3832
        %v3834 = vpop.f32.mrf.mxu0
        %3835 = vmatprep.mubr.f32.mxu0 0.0
        %3836 = vmatmul.mubr.f32.gmra.mxu0 %v3656
        %v3837 = vpop.f32.mrf.mxu0
        %v3838 = vadd.f32 0.0, %v3837
        %v3839 = vpop.f32.mrf.mxu0
        %3840 = vmatprep.mubr.f32.mxu0 0.0
        %3841 = vmatmul.mubr.f32.gmra.mxu0 %v3659
        %v3842 = vpop.f32.mrf.mxu0
        %v3843 = vadd.f32 0.0, %v3842
        %v3844 = vpop.f32.mrf.mxu0
        %3845 = vmatprep.mubr.f32.mxu0 0.0
        %3846 = vmatmul.mubr.f32.gmra.mxu0 %v3662
        %v3847 = vpop.f32.mrf.mxu0
        %v3848 = vadd.f32 0.0, %v3847
        %v3849 = vpop.f32.mrf.mxu0
        %3850 = vmatprep.mubr.f32.mxu0 0.0
        %3851 = vmatmul.mubr.f32.gmra.mxu0 %v3665
        %v3852 = vpop.f32.mrf.mxu0
        %v3853 = vadd.f32 0.0, %v3852
        %v3854 = vpop.f32.mrf.mxu0
        %3855 = vmatprep.mubr.f32.mxu0 0.0
        %3856 = vmatmul.mubr.f32.gmra.mxu0 %v3668
        %v3857 = vpop.f32.mrf.mxu0
        %v3858 = vadd.f32 0.0, %v3857
        %v3859 = vpop.f32.mrf.mxu0
        %3860 = vmatprep.mubr.f32.mxu0 0.0
        %3861 = vmatmul.mubr.f32.gmra.mxu0 %v3671
        %v3862 = vpop.f32.mrf.mxu0
        %v3863 = vadd.f32 0.0, %v3862
        %v3864 = vpop.f32.mrf.mxu0
        %3865 = vmatprep.mubr.f32.mxu0 0.0
        %3866 = vmatmul.mubr.f32.gmra.mxu0 %v3674
        %v3867 = vpop.f32.mrf.mxu0
        %v3868 = vadd.f32 0.0, %v3867
        %v3869 = vpop.f32.mrf.mxu0
        %3870 = vmatprep.mubr.f32.mxu0 0.0
        %3871 = vmatmul.mubr.f32.gmra.mxu0 %v3677
        %v3872 = vpop.f32.mrf.mxu0
        %v3873 = vadd.f32 0.0, %v3872
        %v3874 = vpop.f32.mrf.mxu0
        %3875 = vmatprep.mubr.f32.mxu0 0.0
        %3876 = vmatmul.mubr.f32.gmra.mxu0 %v3680
        %v3877 = vpop.f32.mrf.mxu0
        %v3878 = vadd.f32 0.0, %v3877
        %v3879 = vpop.f32.mrf.mxu0
        %3880 = vmatprep.mubr.f32.mxu0 0.0
        %3881 = vmatmul.mubr.f32.gmra.mxu0 %v3683
        %v3882 = vpop.f32.mrf.mxu0
        %v3883 = vadd.f32 0.0, %v3882
        %v3884 = vpop.f32.mrf.mxu0
        %3885 = vmatprep.mubr.f32.mxu0 0.0
        %3886 = vmatmul.mubr.f32.gmra.mxu0 %v3686
        %v3887 = vpop.f32.mrf.mxu0
        %v3888 = vadd.f32 0.0, %v3887
        %v3889 = vpop.f32.mrf.mxu0
        %3890 = vmatprep.mubr.f32.mxu0 0.0
        %3891 = vmatmul.mubr.f32.gmra.mxu0 %v3689
        %v3892 = vpop.f32.mrf.mxu0
        %v3893 = vadd.f32 0.0, %v3892
        %v3894 = vpop.f32.mrf.mxu0
        %3895 = vmatprep.mubr.f32.mxu0 0.0
        %3896 = vmatmul.mubr.f32.gmra.mxu0 %v3692
        %v3897 = vpop.f32.mrf.mxu0
        %v3898 = vadd.f32 0.0, %v3897
        %v3899 = vpop.f32.mrf.mxu0
        %3900 = vmatprep.mubr.f32.mxu0 0.0
        %3901 = vmatmul.mubr.f32.gmra.mxu0 %v3695
        %v3902 = vpop.f32.mrf.mxu0
        %v3903 = vadd.f32 0.0, %v3902
        %v3904 = vpop.f32.mrf.mxu0
        %3905 = vmatprep.mubr.f32.mxu0 0.0
        %3906 = vmatmul.mubr.f32.gmra.mxu0 %v3698
        %v3907 = vpop.f32.mrf.mxu0
        %v3908 = vadd.f32 0.0, %v3907
        %v3909 = vpop.f32.mrf.mxu0
        %3910 = vmatprep.mubr.f32.mxu0 0.0
        %3911 = vmatmul.mubr.f32.gmra.mxu0 %v3701
        %v3912 = vpop.f32.mrf.mxu0
        %v3913 = vadd.f32 0.0, %v3912
        %v3914 = vpop.f32.mrf.mxu0
        %3915 = vmatprep.mubr.f32.mxu0 0.0
        %3916 = vmatmul.mubr.f32.gmra.mxu0 %v3704
        %v3917 = vpop.f32.mrf.mxu0
        %v3918 = vadd.f32 0.0, %v3917
        %v3919 = vpop.f32.mrf.mxu0
        %3920 = vmatprep.mubr.f32.mxu0 0.0
        %3921 = vmatmul.mubr.f32.gmra.mxu0 %v3707
        %v3922 = vpop.f32.mrf.mxu0
        %v3923 = vadd.f32 0.0, %v3922
        %v3924 = vpop.f32.mrf.mxu0
        %3925 = vmatprep.mubr.f32.mxu0 0.0
        %3926 = vmatmul.mubr.f32.gmra.mxu0 %v3710
        %v3927 = vpop.f32.mrf.mxu0
        %v3928 = vadd.f32 0.0, %v3927
        %v3929 = vpop.f32.mrf.mxu0
        %3930 = vmatprep.mubr.f32.mxu0 0.0
        %3931 = vmatmul.mubr.f32.gmra.mxu0 %v3713
        %v3932 = vpop.f32.mrf.mxu0
        %v3933 = vadd.f32 0.0, %v3932
        %v3934 = vpop.f32.mrf.mxu0
        %3935 = vmatprep.mubr.f32.mxu0 0.0
        %3936 = vmatmul.mubr.f32.gmra.mxu0 %v3716
        %v3937 = vpop.f32.mrf.mxu0
        %v3938 = vadd.f32 0.0, %v3937
        %v3939 = vpop.f32.mrf.mxu0
        %3940 = vmatprep.mubr.f32.mxu0 0.0
        %3941 = vmatmul.mubr.f32.gmra.mxu0 %v3719
        %v3942 = vpop.f32.mrf.mxu0
        %v3943 = vadd.f32 0.0, %v3942
        %v3944 = vpop.f32.mrf.mxu0
        %3945 = vdwg.mxu0
        %v3947 = vsel %vm3624, %v3151, 0
        %v3950 = vsel %vm3624, %v3152, 0
        %v3953 = vsel %vm3624, %v3153, 0
        %v3956 = vsel %vm3624, %v3154, 0
        %v3959 = vsel %vm3624, %v3155, 0
        %v3962 = vsel %vm3624, %v3156, 0
        %v3965 = vsel %vm3624, %v3157, 0
        %v3968 = vsel %vm3624, %v3158, 0
        %v3971 = vsel %vm3624, %v3159, 0
        %v3974 = vsel %vm3624, %v3160, 0
        %v3977 = vsel %vm3624, %v3161, 0
        %v3980 = vsel %vm3624, %v3162, 0
        %v3983 = vsel %vm3624, %v3163, 0
        %v3986 = vsel %vm3624, %v3164, 0
        %v3989 = vsel %vm3624, %v3165, 0
        %v3992 = vsel %vm3624, %v3166, 0
        %v3995 = vsel %vm3624, %v3167, 0
        %v3998 = vsel %vm3624, %v3168, 0
        %v4001 = vsel %vm3624, %v3169, 0
        %v4004 = vsel %vm3624, %v3170, 0
        %v4007 = vsel %vm3624, %v3171, 0
        %v4010 = vsel %vm3624, %v3172, 0
        %v4013 = vsel %vm3624, %v3173, 0
        %v4016 = vsel %vm3624, %v3174, 0
        %v4019 = vsel %vm3624, %v3175, 0
        %v4022 = vsel %vm3624, %v3176, 0
        %v4025 = vsel %vm3624, %v3177, 0
        %v4028 = vsel %vm3624, %v3178, 0
        %v4031 = vsel %vm3624, %v3179, 0
        %v4034 = vsel %vm3624, %v3180, 0
        %v4037 = vsel %vm3624, %v3181, 0
        %v4040 = vsel %vm3624, %v3182, 0
        %4042 = vmatprep.subr.mxu0 0.0
        %4043 = vmatpush1.msra.mxu0 0.0
        %4044 = vmatprep.subr.mxu0 0.0
        %4045 = vmatpush1.msra.mxu0 0.0
        %4046 = vmatprep.subr.mxu0 0.0
        %4047 = vmatpush1.msra.mxu0 0.0
        %4048 = vmatprep.subr.mxu0 0.0
        %4049 = vmatpush1.msra.mxu0 0.0
        %4050 = vmatprep.subr.mxu0 0.0
        %4051 = vmatpush1.msra.mxu0 %v3194
        %4052 = vmatprep.subr.mxu0 0.0
        %4053 = vmatpush1.msra.mxu0 %v3193
        %4054 = vmatprep.subr.mxu0 0.0
        %4055 = vmatpush1.msra.mxu0 %v3192
        %4056 = vmatprep.subr.mxu0 0.0
        %4057 = vmatpush1.msra.mxu0 %v3191
        %4058 = vmatprep.subr.mxu0 0.0
        %4059 = vmatpush1.msra.mxu0 %v3190
        %4060 = vmatprep.subr.mxu0 0.0
        %4061 = vmatpush1.msra.mxu0 %v3189
        %4062 = vmatprep.subr.mxu0 0.0
        %4063 = vmatpush1.msra.mxu0 %v3188
        %4064 = vmatprep.subr.mxu0 0.0
        %4065 = vmatpush1.msra.mxu0 %v3187
        %4066 = vmatprep.subr.mxu0 0.0
        %4067 = vmatpush1.msra.mxu0 %v3186
        %4068 = vmatprep.subr.mxu0 0.0
        %4069 = vmatpush1.msra.mxu0 %v3185
        %4070 = vmatprep.subr.mxu0 0.0
        %4071 = vmatpush1.msra.mxu0 %v3184
        %4072 = vmatprep.subr.mxu0 0.0
        %4073 = vmatpush1.msra.mxu0 %v3183
        %4074 = vmatprep.subr.mxu0 0.0
        %4075 = vmatpush2.msra.mxu0 0.0
        %4076 = vmatprep.subr.mxu0 0.0
        %4077 = vmatpush2.msra.mxu0 0.0
        %4078 = vmatprep.subr.mxu0 0.0
        %4079 = vmatpush2.msra.mxu0 0.0
        %4080 = vmatprep.subr.mxu0 0.0
        %4081 = vmatpush2.msra.mxu0 0.0
        %4082 = vmatprep.subr.mxu0 0.0
        %4083 = vmatpush2.msra.mxu0 0.0
        %4084 = vmatprep.subr.mxu0 0.0
        %4085 = vmatpush2.msra.mxu0 0.0
        %4086 = vmatprep.subr.mxu0 0.0
        %4087 = vmatpush2.msra.mxu0 0.0
        %4088 = vmatprep.subr.mxu0 0.0
        %4089 = vmatpush2.msra.mxu0 0.0
        %4090 = vmatprep.subr.mxu0 0.0
        %4091 = vmatpush2.msra.mxu0 0.0
        %4092 = vmatprep.subr.mxu0 0.0
        %4093 = vmatpush2.msra.mxu0 0.0
        %4094 = vmatprep.subr.mxu0 0.0
        %4095 = vmatpush2.msra.mxu0 0.0
        %4096 = vmatprep.subr.mxu0 0.0
        %4097 = vmatpush2.msra.mxu0 0.0
        %4098 = vmatprep.subr.mxu0 0.0
        %4099 = vmatpush2.msra.mxu0 0.0
        %4100 = vmatprep.subr.mxu0 0.0
        %4101 = vmatpush2.msra.mxu0 0.0
        %4102 = vmatprep.subr.mxu0 0.0
        %4103 = vmatpush2.msra.mxu0 0.0
        %4104 = vmatprep.subr.mxu0 0.0
        %4105 = vmatpush2.msra.mxu0 0.0
        %4106 = vmatprep.mubr.f32.mxu0 0.0
        %4107 = vmatmul.mubr.f32.gmra.mxu0 %v3947
        %v4108 = vpop.f32.mrf.mxu0
        %v4109 = vadd.f32 %v3788, %v4108
        %v4110 = vpop.f32.mrf.mxu0
        %4111 = vmatprep.mubr.f32.mxu0 0.0
        %4112 = vmatmul.mubr.f32.gmra.mxu0 %v3950
        %v4113 = vpop.f32.mrf.mxu0
        %v4114 = vadd.f32 %v3793, %v4113
        %v4115 = vpop.f32.mrf.mxu0
        %4116 = vmatprep.mubr.f32.mxu0 0.0
        %4117 = vmatmul.mubr.f32.gmra.mxu0 %v3953
        %v4118 = vpop.f32.mrf.mxu0
        %v4119 = vadd.f32 %v3798, %v4118
        %v4120 = vpop.f32.mrf.mxu0
        %4121 = vmatprep.mubr.f32.mxu0 0.0
        %4122 = vmatmul.mubr.f32.gmra.mxu0 %v3956
        %v4123 = vpop.f32.mrf.mxu0
        %v4124 = vadd.f32 %v3803, %v4123
        %v4125 = vpop.f32.mrf.mxu0
        %4126 = vmatprep.mubr.f32.mxu0 0.0
        %4127 = vmatmul.mubr.f32.gmra.mxu0 %v3959
        %v4128 = vpop.f32.mrf.mxu0
        %v4129 = vadd.f32 %v3808, %v4128
        %v4130 = vpop.f32.mrf.mxu0
        %4131 = vmatprep.mubr.f32.mxu0 0.0
        %4132 = vmatmul.mubr.f32.gmra.mxu0 %v3962
        %v4133 = vpop.f32.mrf.mxu0
        %v4134 = vadd.f32 %v3813, %v4133
        %v4135 = vpop.f32.mrf.mxu0
        %4136 = vmatprep.mubr.f32.mxu0 0.0
        %4137 = vmatmul.mubr.f32.gmra.mxu0 %v3965
        %v4138 = vpop.f32.mrf.mxu0
        %v4139 = vadd.f32 %v3818, %v4138
        %v4140 = vpop.f32.mrf.mxu0
        %4141 = vmatprep.mubr.f32.mxu0 0.0
        %4142 = vmatmul.mubr.f32.gmra.mxu0 %v3968
        %v4143 = vpop.f32.mrf.mxu0
        %v4144 = vadd.f32 %v3823, %v4143
        %v4145 = vpop.f32.mrf.mxu0
        %4146 = vmatprep.mubr.f32.mxu0 0.0
        %4147 = vmatmul.mubr.f32.gmra.mxu0 %v3971
        %v4148 = vpop.f32.mrf.mxu0
        %v4149 = vadd.f32 %v3828, %v4148
        %v4150 = vpop.f32.mrf.mxu0
        %4151 = vmatprep.mubr.f32.mxu0 0.0
        %4152 = vmatmul.mubr.f32.gmra.mxu0 %v3974
        %v4153 = vpop.f32.mrf.mxu0
        %v4154 = vadd.f32 %v3833, %v4153
        %v4155 = vpop.f32.mrf.mxu0
        %4156 = vmatprep.mubr.f32.mxu0 0.0
        %4157 = vmatmul.mubr.f32.gmra.mxu0 %v3977
        %v4158 = vpop.f32.mrf.mxu0
        %v4159 = vadd.f32 %v3838, %v4158
        %v4160 = vpop.f32.mrf.mxu0
        %4161 = vmatprep.mubr.f32.mxu0 0.0
        %4162 = vmatmul.mubr.f32.gmra.mxu0 %v3980
        %v4163 = vpop.f32.mrf.mxu0
        %v4164 = vadd.f32 %v3843, %v4163
        %v4165 = vpop.f32.mrf.mxu0
        %4166 = vmatprep.mubr.f32.mxu0 0.0
        %4167 = vmatmul.mubr.f32.gmra.mxu0 %v3983
        %v4168 = vpop.f32.mrf.mxu0
        %v4169 = vadd.f32 %v3848, %v4168
        %v4170 = vpop.f32.mrf.mxu0
        %4171 = vmatprep.mubr.f32.mxu0 0.0
        %4172 = vmatmul.mubr.f32.gmra.mxu0 %v3986
        %v4173 = vpop.f32.mrf.mxu0
        %v4174 = vadd.f32 %v3853, %v4173
        %v4175 = vpop.f32.mrf.mxu0
        %4176 = vmatprep.mubr.f32.mxu0 0.0
        %4177 = vmatmul.mubr.f32.gmra.mxu0 %v3989
        %v4178 = vpop.f32.mrf.mxu0
        %v4179 = vadd.f32 %v3858, %v4178
        %v4180 = vpop.f32.mrf.mxu0
        %4181 = vmatprep.mubr.f32.mxu0 0.0
        %4182 = vmatmul.mubr.f32.gmra.mxu0 %v3992
        %v4183 = vpop.f32.mrf.mxu0
        %v4184 = vadd.f32 %v3863, %v4183
        %v4185 = vpop.f32.mrf.mxu0
        %4186 = vmatprep.mubr.f32.mxu0 0.0
        %4187 = vmatmul.mubr.f32.gmra.mxu0 %v3995
        %v4188 = vpop.f32.mrf.mxu0
        %v4189 = vadd.f32 %v3868, %v4188
        %v4190 = vpop.f32.mrf.mxu0
        %4191 = vmatprep.mubr.f32.mxu0 0.0
        %4192 = vmatmul.mubr.f32.gmra.mxu0 %v3998
        %v4193 = vpop.f32.mrf.mxu0
        %v4194 = vadd.f32 %v3873, %v4193
        %v4195 = vpop.f32.mrf.mxu0
        %4196 = vmatprep.mubr.f32.mxu0 0.0
        %4197 = vmatmul.mubr.f32.gmra.mxu0 %v4001
        %v4198 = vpop.f32.mrf.mxu0
        %v4199 = vadd.f32 %v3878, %v4198
        %v4200 = vpop.f32.mrf.mxu0
        %4201 = vmatprep.mubr.f32.mxu0 0.0
        %4202 = vmatmul.mubr.f32.gmra.mxu0 %v4004
        %v4203 = vpop.f32.mrf.mxu0
        %v4204 = vadd.f32 %v3883, %v4203
        %v4205 = vpop.f32.mrf.mxu0
        %4206 = vmatprep.mubr.f32.mxu0 0.0
        %4207 = vmatmul.mubr.f32.gmra.mxu0 %v4007
        %v4208 = vpop.f32.mrf.mxu0
        %v4209 = vadd.f32 %v3888, %v4208
        %v4210 = vpop.f32.mrf.mxu0
        %4211 = vmatprep.mubr.f32.mxu0 0.0
        %4212 = vmatmul.mubr.f32.gmra.mxu0 %v4010
        %v4213 = vpop.f32.mrf.mxu0
        %v4214 = vadd.f32 %v3893, %v4213
        %v4215 = vpop.f32.mrf.mxu0
        %4216 = vmatprep.mubr.f32.mxu0 0.0
        %4217 = vmatmul.mubr.f32.gmra.mxu0 %v4013
        %v4218 = vpop.f32.mrf.mxu0
        %v4219 = vadd.f32 %v3898, %v4218
        %v4220 = vpop.f32.mrf.mxu0
        %4221 = vmatprep.mubr.f32.mxu0 0.0
        %4222 = vmatmul.mubr.f32.gmra.mxu0 %v4016
        %v4223 = vpop.f32.mrf.mxu0
        %v4224 = vadd.f32 %v3903, %v4223
        %v4225 = vpop.f32.mrf.mxu0
        %4226 = vmatprep.mubr.f32.mxu0 0.0
        %4227 = vmatmul.mubr.f32.gmra.mxu0 %v4019
        %v4228 = vpop.f32.mrf.mxu0
        %v4229 = vadd.f32 %v3908, %v4228
        %v4230 = vpop.f32.mrf.mxu0
        %4231 = vmatprep.mubr.f32.mxu0 0.0
        %4232 = vmatmul.mubr.f32.gmra.mxu0 %v4022
        %v4233 = vpop.f32.mrf.mxu0
        %v4234 = vadd.f32 %v3913, %v4233
        %v4235 = vpop.f32.mrf.mxu0
        %4236 = vmatprep.mubr.f32.mxu0 0.0
        %4237 = vmatmul.mubr.f32.gmra.mxu0 %v4025
        %v4238 = vpop.f32.mrf.mxu0
        %v4239 = vadd.f32 %v3918, %v4238
        %v4240 = vpop.f32.mrf.mxu0
        %4241 = vmatprep.mubr.f32.mxu0 0.0
        %4242 = vmatmul.mubr.f32.gmra.mxu0 %v4028
        %v4243 = vpop.f32.mrf.mxu0
        %v4244 = vadd.f32 %v3923, %v4243
        %v4245 = vpop.f32.mrf.mxu0
        %4246 = vmatprep.mubr.f32.mxu0 0.0
        %4247 = vmatmul.mubr.f32.gmra.mxu0 %v4031
        %v4248 = vpop.f32.mrf.mxu0
        %v4249 = vadd.f32 %v3928, %v4248
        %v4250 = vpop.f32.mrf.mxu0
        %4251 = vmatprep.mubr.f32.mxu0 0.0
        %4252 = vmatmul.mubr.f32.gmra.mxu0 %v4034
        %v4253 = vpop.f32.mrf.mxu0
        %v4254 = vadd.f32 %v3933, %v4253
        %v4255 = vpop.f32.mrf.mxu0
        %4256 = vmatprep.mubr.f32.mxu0 0.0
        %4257 = vmatmul.mubr.f32.gmra.mxu0 %v4037
        %v4258 = vpop.f32.mrf.mxu0
        %v4259 = vadd.f32 %v3938, %v4258
        %v4260 = vpop.f32.mrf.mxu0
        %4261 = vmatprep.mubr.f32.mxu0 0.0
        %4262 = vmatmul.mubr.f32.gmra.mxu0 %v4040
        %v4263 = vpop.f32.mrf.mxu0
        %v4264 = vadd.f32 %v3943, %v4263
        %v4265 = vpop.f32.mrf.mxu0
        %4266 = vdwg.mxu0
        %v4267 = vld [vmem:[%s1887] sm:$0xff]
        %v4268 = vld [vmem:[%s1887 + $0x8] sm:$0xff]
        %v4269 = vld [vmem:[%s1887 + $0x18] sm:$0xff]
        %v4270 = vld [vmem:[%s1887 + $0x20] sm:$0xff]
        %v4271 = vld [vmem:[%s1887 + $0x30] sm:$0xff]
        %v4272 = vld [vmem:[%s1887 + $0x38] sm:$0xff]
        %v4273 = vld [vmem:[%s1887 + $0x48] sm:$0xff]
        %v4274 = vld [vmem:[%s1887 + $0x50] sm:$0xff]
        %v4275 = vld [vmem:[%s1887 + $0x60] sm:$0xff]
        %v4276 = vld [vmem:[%s1887 + $0x68] sm:$0xff]
        %v4277 = vld [vmem:[%s1887 + $0x78] sm:$0xff]
        %v4278 = vld [vmem:[%s1887 + $0x80] sm:$0xff]
        %v4279 = vld [vmem:[%s1887 + $0x90] sm:$0xff]
        %v4280 = vld [vmem:[%s1887 + $0x98] sm:$0xff]
        %v4281 = vld [vmem:[%s1887 + $0xa8] sm:$0xff]
        %v4282 = vld [vmem:[%s1887 + $0xb0] sm:$0xff]
        %v4283 = vld [vmem:[%s1887 + $0xc0] sm:$0xff]
        %v4284 = vld [vmem:[%s1887 + $0xc8] sm:$0xff]
        %v4285 = vld [vmem:[%s1887 + $0xd8] sm:$0xff]
        %v4286 = vld [vmem:[%s1887 + $0xe0] sm:$0xff]
        %v4287 = vld [vmem:[%s1887 + $0xf0] sm:$0xff]
        %v4288 = vld [vmem:[%s1887 + $0xf8] sm:$0xff]
        %v4289 = vld [vmem:[%s1887 + $0x108] sm:$0xff]
        %v4290 = vld [vmem:[%s1887 + $0x110] sm:$0xff]
        %v4291 = vld [vmem:[%s1887 + $0x120] sm:$0xff]
        %v4292 = vld [vmem:[%s1887 + $0x128] sm:$0xff]
        %v4293 = vld [vmem:[%s1887 + $0x138] sm:$0xff]
        %v4294 = vld [vmem:[%s1887 + $0x140] sm:$0xff]
        %v4295 = vld [vmem:[%s1887 + $0x150] sm:$0xff]
        %v4296 = vld [vmem:[%s1887 + $0x158] sm:$0xff]
        %v4297 = vld [vmem:[%s1887 + $0x168] sm:$0xff]
        %v4298 = vld [vmem:[%s1887 + $0x170] sm:$0xff]
        %v4299 = vld [vmem:[%s1887 + $0x1] sm:$0xff]
        %v4300 = vld [vmem:[%s1887 + $0x9] sm:$0xff]
        %v4301 = vld [vmem:[%s1887 + $0x19] sm:$0xff]
        %v4302 = vld [vmem:[%s1887 + $0x21] sm:$0xff]
        %v4303 = vld [vmem:[%s1887 + $0x31] sm:$0xff]
        %v4304 = vld [vmem:[%s1887 + $0x39] sm:$0xff]
        %v4305 = vld [vmem:[%s1887 + $0x49] sm:$0xff]
        %v4306 = vld [vmem:[%s1887 + $0x51] sm:$0xff]
        %v4307 = vld [vmem:[%s1887 + $0x61] sm:$0xff]
        %v4308 = vld [vmem:[%s1887 + $0x69] sm:$0xff]
        %v4309 = vld [vmem:[%s1887 + $0x79] sm:$0xff]
        %v4310 = vld [vmem:[%s1887 + $0x81] sm:$0xff]
        %v4311 = vld [vmem:[%s1887 + $0x91] sm:$0xff]
        %v4312 = vld [vmem:[%s1887 + $0x99] sm:$0xff]
        %v4313 = vld [vmem:[%s1887 + $0xa9] sm:$0xff]
        %v4314 = vld [vmem:[%s1887 + $0xb1] sm:$0xff]
        %v4315 = vld [vmem:[%s1887 + $0xc1] sm:$0xff]
        %v4316 = vld [vmem:[%s1887 + $0xc9] sm:$0xff]
        %v4317 = vld [vmem:[%s1887 + $0xd9] sm:$0xff]
        %v4318 = vld [vmem:[%s1887 + $0xe1] sm:$0xff]
        %v4319 = vld [vmem:[%s1887 + $0xf1] sm:$0xff]
        %v4320 = vld [vmem:[%s1887 + $0xf9] sm:$0xff]
        %v4321 = vld [vmem:[%s1887 + $0x109] sm:$0xff]
        %v4322 = vld [vmem:[%s1887 + $0x111] sm:$0xff]
        %v4323 = vld [vmem:[%s1887 + $0x121] sm:$0xff]
        %v4324 = vld [vmem:[%s1887 + $0x129] sm:$0xff]
        %v4325 = vld [vmem:[%s1887 + $0x139] sm:$0xff]
        %v4326 = vld [vmem:[%s1887 + $0x141] sm:$0xff]
        %v4327 = vld [vmem:[%s1887 + $0x151] sm:$0xff]
        %v4328 = vld [vmem:[%s1887 + $0x159] sm:$0xff]
        %v4329 = vld [vmem:[%s1887 + $0x169] sm:$0xff]
        %v4330 = vld [vmem:[%s1887 + $0x171] sm:$0xff]
        %v4331 = vld [vmem:[%s1887 + $0x2] sm:$0xff]
        %v4332 = vld [vmem:[%s1887 + $0xa] sm:$0xff]
        %v4333 = vld [vmem:[%s1887 + $0x1a] sm:$0xff]
        %v4334 = vld [vmem:[%s1887 + $0x22] sm:$0xff]
        %v4335 = vld [vmem:[%s1887 + $0x32] sm:$0xff]
        %v4336 = vld [vmem:[%s1887 + $0x3a] sm:$0xff]
        %v4337 = vld [vmem:[%s1887 + $0x4a] sm:$0xff]
        %v4338 = vld [vmem:[%s1887 + $0x52] sm:$0xff]
        %v4339 = vld [vmem:[%s1887 + $0x62] sm:$0xff]
        %v4340 = vld [vmem:[%s1887 + $0x6a] sm:$0xff]
        %v4341 = vld [vmem:[%s1887 + $0x7a] sm:$0xff]
        %v4342 = vld [vmem:[%s1887 + $0x82] sm:$0xff]
        %v4343 = vld [vmem:[%s1887 + $0x92] sm:$0xff]
        %v4344 = vld [vmem:[%s1887 + $0x9a] sm:$0xff]
        %v4345 = vld [vmem:[%s1887 + $0xaa] sm:$0xff]
        %v4346 = vld [vmem:[%s1887 + $0xb2] sm:$0xff]
        %v4347 = vld [vmem:[%s1887 + $0xc2] sm:$0xff]
        %v4348 = vld [vmem:[%s1887 + $0xca] sm:$0xff]
        %v4349 = vld [vmem:[%s1887 + $0xda] sm:$0xff]
        %v4350 = vld [vmem:[%s1887 + $0xe2] sm:$0xff]
        %v4351 = vld [vmem:[%s1887 + $0xf2] sm:$0xff]
        %v4352 = vld [vmem:[%s1887 + $0xfa] sm:$0xff]
        %v4353 = vld [vmem:[%s1887 + $0x10a] sm:$0xff]
        %v4354 = vld [vmem:[%s1887 + $0x112] sm:$0xff]
        %v4355 = vld [vmem:[%s1887 + $0x122] sm:$0xff]
        %v4356 = vld [vmem:[%s1887 + $0x12a] sm:$0xff]
        %v4357 = vld [vmem:[%s1887 + $0x13a] sm:$0xff]
        %v4358 = vld [vmem:[%s1887 + $0x142] sm:$0xff]
        %v4359 = vld [vmem:[%s1887 + $0x152] sm:$0xff]
        %v4360 = vld [vmem:[%s1887 + $0x15a] sm:$0xff]
        %v4361 = vld [vmem:[%s1887 + $0x16a] sm:$0xff]
        %v4362 = vld [vmem:[%s1887 + $0x172] sm:$0xff]
        %4395 = vrot.lane.b32.xlu0 %v4299, 32
        %v4396 = vpop.permute.xlu0 %4395
        %4397 = vrot.lane.b32.xlu0 %v4300, 32
        %v4398 = vpop.permute.xlu0 %4397
        %4399 = vrot.lane.b32.xlu0 %v4301, 32
        %v4400 = vpop.permute.xlu0 %4399
        %4401 = vrot.lane.b32.xlu0 %v4302, 32
        %v4402 = vpop.permute.xlu0 %4401
        %4403 = vrot.lane.b32.xlu0 %v4303, 32
        %v4404 = vpop.permute.xlu0 %4403
        %4405 = vrot.lane.b32.xlu0 %v4304, 32
        %v4406 = vpop.permute.xlu0 %4405
        %4407 = vrot.lane.b32.xlu0 %v4305, 32
        %v4408 = vpop.permute.xlu0 %4407
        %4409 = vrot.lane.b32.xlu0 %v4306, 32
        %v4410 = vpop.permute.xlu0 %4409
        %4411 = vrot.lane.b32.xlu0 %v4307, 32
        %v4412 = vpop.permute.xlu0 %4411
        %4413 = vrot.lane.b32.xlu0 %v4308, 32
        %v4414 = vpop.permute.xlu0 %4413
        %4415 = vrot.lane.b32.xlu0 %v4309, 32
        %v4416 = vpop.permute.xlu0 %4415
        %4417 = vrot.lane.b32.xlu0 %v4310, 32
        %v4418 = vpop.permute.xlu0 %4417
        %4419 = vrot.lane.b32.xlu0 %v4311, 32
        %v4420 = vpop.permute.xlu0 %4419
        %4421 = vrot.lane.b32.xlu0 %v4312, 32
        %v4422 = vpop.permute.xlu0 %4421
        %4423 = vrot.lane.b32.xlu0 %v4313, 32
        %v4424 = vpop.permute.xlu0 %4423
        %4425 = vrot.lane.b32.xlu0 %v4314, 32
        %v4426 = vpop.permute.xlu0 %4425
        %4427 = vrot.lane.b32.xlu0 %v4315, 32
        %v4428 = vpop.permute.xlu0 %4427
        %4429 = vrot.lane.b32.xlu0 %v4316, 32
        %v4430 = vpop.permute.xlu0 %4429
        %4431 = vrot.lane.b32.xlu0 %v4317, 32
        %v4432 = vpop.permute.xlu0 %4431
        %4433 = vrot.lane.b32.xlu0 %v4318, 32
        %v4434 = vpop.permute.xlu0 %4433
        %4435 = vrot.lane.b32.xlu0 %v4319, 32
        %v4436 = vpop.permute.xlu0 %4435
        %4437 = vrot.lane.b32.xlu0 %v4320, 32
        %v4438 = vpop.permute.xlu0 %4437
        %4439 = vrot.lane.b32.xlu0 %v4321, 32
        %v4440 = vpop.permute.xlu0 %4439
        %4441 = vrot.lane.b32.xlu0 %v4322, 32
        %v4442 = vpop.permute.xlu0 %4441
        %4443 = vrot.lane.b32.xlu0 %v4323, 32
        %v4444 = vpop.permute.xlu0 %4443
        %4445 = vrot.lane.b32.xlu0 %v4324, 32
        %v4446 = vpop.permute.xlu0 %4445
        %4447 = vrot.lane.b32.xlu0 %v4325, 32
        %v4448 = vpop.permute.xlu0 %4447
        %4449 = vrot.lane.b32.xlu0 %v4326, 32
        %v4450 = vpop.permute.xlu0 %4449
        %4451 = vrot.lane.b32.xlu0 %v4327, 32
        %v4452 = vpop.permute.xlu0 %4451
        %4453 = vrot.lane.b32.xlu0 %v4328, 32
        %v4454 = vpop.permute.xlu0 %4453
        %4455 = vrot.lane.b32.xlu0 %v4329, 32
        %v4456 = vpop.permute.xlu0 %4455
        %4457 = vrot.lane.b32.xlu0 %v4330, 32
        %v4458 = vpop.permute.xlu0 %4457
        %4523 = vrot.lane.b32.xlu0 %v4331, 64
        %v4524 = vpop.permute.xlu0 %4523
        %4525 = vrot.lane.b32.xlu0 %v4332, 64
        %v4526 = vpop.permute.xlu0 %4525
        %4527 = vrot.lane.b32.xlu0 %v4333, 64
        %v4528 = vpop.permute.xlu0 %4527
        %4529 = vrot.lane.b32.xlu0 %v4334, 64
        %v4530 = vpop.permute.xlu0 %4529
        %4531 = vrot.lane.b32.xlu0 %v4335, 64
        %v4532 = vpop.permute.xlu0 %4531
        %4533 = vrot.lane.b32.xlu0 %v4336, 64
        %v4534 = vpop.permute.xlu0 %4533
        %4535 = vrot.lane.b32.xlu0 %v4337, 64
        %v4536 = vpop.permute.xlu0 %4535
        %4537 = vrot.lane.b32.xlu0 %v4338, 64
        %v4538 = vpop.permute.xlu0 %4537
        %4539 = vrot.lane.b32.xlu0 %v4339, 64
        %v4540 = vpop.permute.xlu0 %4539
        %4541 = vrot.lane.b32.xlu0 %v4340, 64
        %v4542 = vpop.permute.xlu0 %4541
        %4543 = vrot.lane.b32.xlu0 %v4341, 64
        %v4544 = vpop.permute.xlu0 %4543
        %4545 = vrot.lane.b32.xlu0 %v4342, 64
        %v4546 = vpop.permute.xlu0 %4545
        %4547 = vrot.lane.b32.xlu0 %v4343, 64
        %v4548 = vpop.permute.xlu0 %4547
        %4549 = vrot.lane.b32.xlu0 %v4344, 64
        %v4550 = vpop.permute.xlu0 %4549
        %4551 = vrot.lane.b32.xlu0 %v4345, 64
        %v4552 = vpop.permute.xlu0 %4551
        %4553 = vrot.lane.b32.xlu0 %v4346, 64
        %v4554 = vpop.permute.xlu0 %4553
        %4555 = vrot.lane.b32.xlu0 %v4347, 64
        %v4556 = vpop.permute.xlu0 %4555
        %4557 = vrot.lane.b32.xlu0 %v4348, 64
        %v4558 = vpop.permute.xlu0 %4557
        %4559 = vrot.lane.b32.xlu0 %v4349, 64
        %v4560 = vpop.permute.xlu0 %4559
        %4561 = vrot.lane.b32.xlu0 %v4350, 64
        %v4562 = vpop.permute.xlu0 %4561
        %4563 = vrot.lane.b32.xlu0 %v4351, 64
        %v4564 = vpop.permute.xlu0 %4563
        %4565 = vrot.lane.b32.xlu0 %v4352, 64
        %v4566 = vpop.permute.xlu0 %4565
        %4567 = vrot.lane.b32.xlu0 %v4353, 64
        %v4568 = vpop.permute.xlu0 %4567
        %4569 = vrot.lane.b32.xlu0 %v4354, 64
        %v4570 = vpop.permute.xlu0 %4569
        %4571 = vrot.lane.b32.xlu0 %v4355, 64
        %v4572 = vpop.permute.xlu0 %4571
        %4573 = vrot.lane.b32.xlu0 %v4356, 64
        %v4574 = vpop.permute.xlu0 %4573
        %4575 = vrot.lane.b32.xlu0 %v4357, 64
        %v4576 = vpop.permute.xlu0 %4575
        %4577 = vrot.lane.b32.xlu0 %v4358, 64
        %v4578 = vpop.permute.xlu0 %4577
        %4579 = vrot.lane.b32.xlu0 %v4359, 64
        %v4580 = vpop.permute.xlu0 %4579
        %4581 = vrot.lane.b32.xlu0 %v4360, 64
        %v4582 = vpop.permute.xlu0 %4581
        %4583 = vrot.lane.b32.xlu0 %v4361, 64
        %v4584 = vpop.permute.xlu0 %4583
        %4585 = vrot.lane.b32.xlu0 %v4362, 64
        %v4586 = vpop.permute.xlu0 %4585
        %v4619 = vsel %vm277, %v4267, %v4396
        %v4620 = vsel %vm277, %v4268, %v4398
        %v4621 = vsel %vm277, %v4269, %v4400
        %v4622 = vsel %vm277, %v4270, %v4402
        %v4623 = vsel %vm277, %v4271, %v4404
        %v4624 = vsel %vm277, %v4272, %v4406
        %v4625 = vsel %vm277, %v4273, %v4408
        %v4626 = vsel %vm277, %v4274, %v4410
        %v4627 = vsel %vm277, %v4275, %v4412
        %v4628 = vsel %vm277, %v4276, %v4414
        %v4629 = vsel %vm277, %v4277, %v4416
        %v4630 = vsel %vm277, %v4278, %v4418
        %v4631 = vsel %vm277, %v4279, %v4420
        %v4632 = vsel %vm277, %v4280, %v4422
        %v4633 = vsel %vm277, %v4281, %v4424
        %v4634 = vsel %vm277, %v4282, %v4426
        %v4635 = vsel %vm277, %v4283, %v4428
        %v4636 = vsel %vm277, %v4284, %v4430
        %v4637 = vsel %vm277, %v4285, %v4432
        %v4638 = vsel %vm277, %v4286, %v4434
        %v4639 = vsel %vm277, %v4287, %v4436
        %v4640 = vsel %vm277, %v4288, %v4438
        %v4641 = vsel %vm277, %v4289, %v4440
        %v4642 = vsel %vm277, %v4290, %v4442
        %v4643 = vsel %vm277, %v4291, %v4444
        %v4644 = vsel %vm277, %v4292, %v4446
        %v4645 = vsel %vm277, %v4293, %v4448
        %v4646 = vsel %vm277, %v4294, %v4450
        %v4647 = vsel %vm277, %v4295, %v4452
        %v4648 = vsel %vm277, %v4296, %v4454
        %v4649 = vsel %vm277, %v4297, %v4456
        %v4650 = vsel %vm277, %v4298, %v4458
        %v4651 = vsel %vm3150, %v4619, %v4524
        %v4652 = vsel %vm3150, %v4620, %v4526
        %v4653 = vsel %vm3150, %v4621, %v4528
        %v4654 = vsel %vm3150, %v4622, %v4530
        %v4655 = vsel %vm3150, %v4623, %v4532
        %v4656 = vsel %vm3150, %v4624, %v4534
        %v4657 = vsel %vm3150, %v4625, %v4536
        %v4658 = vsel %vm3150, %v4626, %v4538
        %v4659 = vsel %vm3150, %v4627, %v4540
        %v4660 = vsel %vm3150, %v4628, %v4542
        %v4661 = vsel %vm3150, %v4629, %v4544
        %v4662 = vsel %vm3150, %v4630, %v4546
        %v4663 = vsel %vm3150, %v4631, %v4548
        %v4664 = vsel %vm3150, %v4632, %v4550
        %v4665 = vsel %vm3150, %v4633, %v4552
        %v4666 = vsel %vm3150, %v4634, %v4554
        %v4667 = vsel %vm3150, %v4635, %v4556
        %v4668 = vsel %vm3150, %v4636, %v4558
        %v4669 = vsel %vm3150, %v4637, %v4560
        %v4670 = vsel %vm3150, %v4638, %v4562
        %v4671 = vsel %vm3150, %v4639, %v4564
        %v4672 = vsel %vm3150, %v4640, %v4566
        %v4673 = vsel %vm3150, %v4641, %v4568
        %v4674 = vsel %vm3150, %v4642, %v4570
        %v4675 = vsel %vm3150, %v4643, %v4572
        %v4676 = vsel %vm3150, %v4644, %v4574
        %v4677 = vsel %vm3150, %v4645, %v4576
        %v4678 = vsel %vm3150, %v4646, %v4578
        %v4679 = vsel %vm3150, %v4647, %v4580
        %v4680 = vsel %vm3150, %v4648, %v4582
        %v4681 = vsel %vm3150, %v4649, %v4584
        %v4682 = vsel %vm3150, %v4650, %v4586
        %s4683 = scalar_lea.vmem %s3, 192
        %v4684 = vld [vmem:[%s4683] sm:$0xff]
        %v4685 = vld [vmem:[%s4683 + $0x8] sm:$0xff]
        %v4686 = vld [vmem:[%s4683 + $0x10] sm:$0xff]
        %v4687 = vld [vmem:[%s4683 + $0x18] sm:$0xff]
        %v4688 = vld [vmem:[%s4683 + $0x20] sm:$0xff]
        %v4689 = vld [vmem:[%s4683 + $0x28] sm:$0xff]
        %v4690 = vld [vmem:[%s4683 + $0x30] sm:$0xff]
        %v4691 = vld [vmem:[%s4683 + $0x38] sm:$0xff]
        %v4692 = vld [vmem:[%s4683 + $0x40] sm:$0xff]
        %v4693 = vld [vmem:[%s4683 + $0x48] sm:$0xff]
        %v4694 = vld [vmem:[%s4683 + $0x50] sm:$0xff]
        %v4695 = vld [vmem:[%s4683 + $0x58] sm:$0xff]
        %v4697 = vsel %vm3624, %v4651, 0
        %v4700 = vsel %vm3624, %v4652, 0
        %v4703 = vsel %vm3624, %v4653, 0
        %v4706 = vsel %vm3624, %v4654, 0
        %v4709 = vsel %vm3624, %v4655, 0
        %v4712 = vsel %vm3624, %v4656, 0
        %v4715 = vsel %vm3624, %v4657, 0
        %v4718 = vsel %vm3624, %v4658, 0
        %v4721 = vsel %vm3624, %v4659, 0
        %v4724 = vsel %vm3624, %v4660, 0
        %v4727 = vsel %vm3624, %v4661, 0
        %v4730 = vsel %vm3624, %v4662, 0
        %v4733 = vsel %vm3624, %v4663, 0
        %v4736 = vsel %vm3624, %v4664, 0
        %v4739 = vsel %vm3624, %v4665, 0
        %v4742 = vsel %vm3624, %v4666, 0
        %v4745 = vsel %vm3624, %v4667, 0
        %v4748 = vsel %vm3624, %v4668, 0
        %v4751 = vsel %vm3624, %v4669, 0
        %v4754 = vsel %vm3624, %v4670, 0
        %v4757 = vsel %vm3624, %v4671, 0
        %v4760 = vsel %vm3624, %v4672, 0
        %v4763 = vsel %vm3624, %v4673, 0
        %v4766 = vsel %vm3624, %v4674, 0
        %v4769 = vsel %vm3624, %v4675, 0
        %v4772 = vsel %vm3624, %v4676, 0
        %v4775 = vsel %vm3624, %v4677, 0
        %v4778 = vsel %vm3624, %v4678, 0
        %v4781 = vsel %vm3624, %v4679, 0
        %v4784 = vsel %vm3624, %v4680, 0
        %v4787 = vsel %vm3624, %v4681, 0
        %v4790 = vsel %vm3624, %v4682, 0
        %4792 = vmatprep.subr.mxu0 0.0
        %4793 = vmatpush1.msra.mxu0 0.0
        %4794 = vmatprep.subr.mxu0 0.0
        %4795 = vmatpush1.msra.mxu0 0.0
        %4796 = vmatprep.subr.mxu0 0.0
        %4797 = vmatpush1.msra.mxu0 0.0
        %4798 = vmatprep.subr.mxu0 0.0
        %4799 = vmatpush1.msra.mxu0 0.0
        %4800 = vmatprep.subr.mxu0 0.0
        %4801 = vmatpush1.msra.mxu0 %v4695
        %4802 = vmatprep.subr.mxu0 0.0
        %4803 = vmatpush1.msra.mxu0 %v4694
        %4804 = vmatprep.subr.mxu0 0.0
        %4805 = vmatpush1.msra.mxu0 %v4693
        %4806 = vmatprep.subr.mxu0 0.0
        %4807 = vmatpush1.msra.mxu0 %v4692
        %4808 = vmatprep.subr.mxu0 0.0
        %4809 = vmatpush1.msra.mxu0 %v4691
        %4810 = vmatprep.subr.mxu0 0.0
        %4811 = vmatpush1.msra.mxu0 %v4690
        %4812 = vmatprep.subr.mxu0 0.0
        %4813 = vmatpush1.msra.mxu0 %v4689
        %4814 = vmatprep.subr.mxu0 0.0
        %4815 = vmatpush1.msra.mxu0 %v4688
        %4816 = vmatprep.subr.mxu0 0.0
        %4817 = vmatpush1.msra.mxu0 %v4687
        %4818 = vmatprep.subr.mxu0 0.0
        %4819 = vmatpush1.msra.mxu0 %v4686
        %4820 = vmatprep.subr.mxu0 0.0
        %4821 = vmatpush1.msra.mxu0 %v4685
        %4822 = vmatprep.subr.mxu0 0.0
        %4823 = vmatpush1.msra.mxu0 %v4684
        %4824 = vmatprep.subr.mxu0 0.0
        %4825 = vmatpush2.msra.mxu0 0.0
        %4826 = vmatprep.subr.mxu0 0.0
        %4827 = vmatpush2.msra.mxu0 0.0
        %4828 = vmatprep.subr.mxu0 0.0
        %4829 = vmatpush2.msra.mxu0 0.0
        %4830 = vmatprep.subr.mxu0 0.0
        %4831 = vmatpush2.msra.mxu0 0.0
        %4832 = vmatprep.subr.mxu0 0.0
        %4833 = vmatpush2.msra.mxu0 0.0
        %4834 = vmatprep.subr.mxu0 0.0
        %4835 = vmatpush2.msra.mxu0 0.0
        %4836 = vmatprep.subr.mxu0 0.0
        %4837 = vmatpush2.msra.mxu0 0.0
        %4838 = vmatprep.subr.mxu0 0.0
        %4839 = vmatpush2.msra.mxu0 0.0
        %4840 = vmatprep.subr.mxu0 0.0
        %4841 = vmatpush2.msra.mxu0 0.0
        %4842 = vmatprep.subr.mxu0 0.0
        %4843 = vmatpush2.msra.mxu0 0.0
        %4844 = vmatprep.subr.mxu0 0.0
        %4845 = vmatpush2.msra.mxu0 0.0
        %4846 = vmatprep.subr.mxu0 0.0
        %4847 = vmatpush2.msra.mxu0 0.0
        %4848 = vmatprep.subr.mxu0 0.0
        %4849 = vmatpush2.msra.mxu0 0.0
        %4850 = vmatprep.subr.mxu0 0.0
        %4851 = vmatpush2.msra.mxu0 0.0
        %4852 = vmatprep.subr.mxu0 0.0
        %4853 = vmatpush2.msra.mxu0 0.0
        %4854 = vmatprep.subr.mxu0 0.0
        %4855 = vmatpush2.msra.mxu0 0.0
        %4856 = vmatprep.mubr.f32.mxu0 0.0
        %4857 = vmatmul.mubr.f32.gmra.mxu0 %v4697
        %v4858 = vpop.f32.mrf.mxu0
        %v4859 = vadd.f32 0.0, %v4858
        %v4860 = vpop.f32.mrf.mxu0
        %4861 = vmatprep.mubr.f32.mxu0 0.0
        %4862 = vmatmul.mubr.f32.gmra.mxu0 %v4700
        %v4863 = vpop.f32.mrf.mxu0
        %v4864 = vadd.f32 0.0, %v4863
        %v4865 = vpop.f32.mrf.mxu0
        %4866 = vmatprep.mubr.f32.mxu0 0.0
        %4867 = vmatmul.mubr.f32.gmra.mxu0 %v4703
        %v4868 = vpop.f32.mrf.mxu0
        %v4869 = vadd.f32 0.0, %v4868
        %v4870 = vpop.f32.mrf.mxu0
        %4871 = vmatprep.mubr.f32.mxu0 0.0
        %4872 = vmatmul.mubr.f32.gmra.mxu0 %v4706
        %v4873 = vpop.f32.mrf.mxu0
        %v4874 = vadd.f32 0.0, %v4873
        %v4875 = vpop.f32.mrf.mxu0
        %4876 = vmatprep.mubr.f32.mxu0 0.0
        %4877 = vmatmul.mubr.f32.gmra.mxu0 %v4709
        %v4878 = vpop.f32.mrf.mxu0
        %v4879 = vadd.f32 0.0, %v4878
        %v4880 = vpop.f32.mrf.mxu0
        %4881 = vmatprep.mubr.f32.mxu0 0.0
        %4882 = vmatmul.mubr.f32.gmra.mxu0 %v4712
        %v4883 = vpop.f32.mrf.mxu0
        %v4884 = vadd.f32 0.0, %v4883
        %v4885 = vpop.f32.mrf.mxu0
        %4886 = vmatprep.mubr.f32.mxu0 0.0
        %4887 = vmatmul.mubr.f32.gmra.mxu0 %v4715
        %v4888 = vpop.f32.mrf.mxu0
        %v4889 = vadd.f32 0.0, %v4888
        %v4890 = vpop.f32.mrf.mxu0
        %4891 = vmatprep.mubr.f32.mxu0 0.0
        %4892 = vmatmul.mubr.f32.gmra.mxu0 %v4718
        %v4893 = vpop.f32.mrf.mxu0
        %v4894 = vadd.f32 0.0, %v4893
        %v4895 = vpop.f32.mrf.mxu0
        %4896 = vmatprep.mubr.f32.mxu0 0.0
        %4897 = vmatmul.mubr.f32.gmra.mxu0 %v4721
        %v4898 = vpop.f32.mrf.mxu0
        %v4899 = vadd.f32 0.0, %v4898
        %v4900 = vpop.f32.mrf.mxu0
        %4901 = vmatprep.mubr.f32.mxu0 0.0
        %4902 = vmatmul.mubr.f32.gmra.mxu0 %v4724
        %v4903 = vpop.f32.mrf.mxu0
        %v4904 = vadd.f32 0.0, %v4903
        %v4905 = vpop.f32.mrf.mxu0
        %4906 = vmatprep.mubr.f32.mxu0 0.0
        %4907 = vmatmul.mubr.f32.gmra.mxu0 %v4727
        %v4908 = vpop.f32.mrf.mxu0
        %v4909 = vadd.f32 0.0, %v4908
        %v4910 = vpop.f32.mrf.mxu0
        %4911 = vmatprep.mubr.f32.mxu0 0.0
        %4912 = vmatmul.mubr.f32.gmra.mxu0 %v4730
        %v4913 = vpop.f32.mrf.mxu0
        %v4914 = vadd.f32 0.0, %v4913
        %v4915 = vpop.f32.mrf.mxu0
        %4916 = vmatprep.mubr.f32.mxu0 0.0
        %4917 = vmatmul.mubr.f32.gmra.mxu0 %v4733
        %v4918 = vpop.f32.mrf.mxu0
        %v4919 = vadd.f32 0.0, %v4918
        %v4920 = vpop.f32.mrf.mxu0
        %4921 = vmatprep.mubr.f32.mxu0 0.0
        %4922 = vmatmul.mubr.f32.gmra.mxu0 %v4736
        %v4923 = vpop.f32.mrf.mxu0
        %v4924 = vadd.f32 0.0, %v4923
        %v4925 = vpop.f32.mrf.mxu0
        %4926 = vmatprep.mubr.f32.mxu0 0.0
        %4927 = vmatmul.mubr.f32.gmra.mxu0 %v4739
        %v4928 = vpop.f32.mrf.mxu0
        %v4929 = vadd.f32 0.0, %v4928
        %v4930 = vpop.f32.mrf.mxu0
        %4931 = vmatprep.mubr.f32.mxu0 0.0
        %4932 = vmatmul.mubr.f32.gmra.mxu0 %v4742
        %v4933 = vpop.f32.mrf.mxu0
        %v4934 = vadd.f32 0.0, %v4933
        %v4935 = vpop.f32.mrf.mxu0
        %4936 = vmatprep.mubr.f32.mxu0 0.0
        %4937 = vmatmul.mubr.f32.gmra.mxu0 %v4745
        %v4938 = vpop.f32.mrf.mxu0
        %v4939 = vadd.f32 0.0, %v4938
        %v4940 = vpop.f32.mrf.mxu0
        %4941 = vmatprep.mubr.f32.mxu0 0.0
        %4942 = vmatmul.mubr.f32.gmra.mxu0 %v4748
        %v4943 = vpop.f32.mrf.mxu0
        %v4944 = vadd.f32 0.0, %v4943
        %v4945 = vpop.f32.mrf.mxu0
        %4946 = vmatprep.mubr.f32.mxu0 0.0
        %4947 = vmatmul.mubr.f32.gmra.mxu0 %v4751
        %v4948 = vpop.f32.mrf.mxu0
        %v4949 = vadd.f32 0.0, %v4948
        %v4950 = vpop.f32.mrf.mxu0
        %4951 = vmatprep.mubr.f32.mxu0 0.0
        %4952 = vmatmul.mubr.f32.gmra.mxu0 %v4754
        %v4953 = vpop.f32.mrf.mxu0
        %v4954 = vadd.f32 0.0, %v4953
        %v4955 = vpop.f32.mrf.mxu0
        %4956 = vmatprep.mubr.f32.mxu0 0.0
        %4957 = vmatmul.mubr.f32.gmra.mxu0 %v4757
        %v4958 = vpop.f32.mrf.mxu0
        %v4959 = vadd.f32 0.0, %v4958
        %v4960 = vpop.f32.mrf.mxu0
        %4961 = vmatprep.mubr.f32.mxu0 0.0
        %4962 = vmatmul.mubr.f32.gmra.mxu0 %v4760
        %v4963 = vpop.f32.mrf.mxu0
        %v4964 = vadd.f32 0.0, %v4963
        %v4965 = vpop.f32.mrf.mxu0
        %4966 = vmatprep.mubr.f32.mxu0 0.0
        %4967 = vmatmul.mubr.f32.gmra.mxu0 %v4763
        %v4968 = vpop.f32.mrf.mxu0
        %v4969 = vadd.f32 0.0, %v4968
        %v4970 = vpop.f32.mrf.mxu0
        %4971 = vmatprep.mubr.f32.mxu0 0.0
        %4972 = vmatmul.mubr.f32.gmra.mxu0 %v4766
        %v4973 = vpop.f32.mrf.mxu0
        %v4974 = vadd.f32 0.0, %v4973
        %v4975 = vpop.f32.mrf.mxu0
        %4976 = vmatprep.mubr.f32.mxu0 0.0
        %4977 = vmatmul.mubr.f32.gmra.mxu0 %v4769
        %v4978 = vpop.f32.mrf.mxu0
        %v4979 = vadd.f32 0.0, %v4978
        %v4980 = vpop.f32.mrf.mxu0
        %4981 = vmatprep.mubr.f32.mxu0 0.0
        %4982 = vmatmul.mubr.f32.gmra.mxu0 %v4772
        %v4983 = vpop.f32.mrf.mxu0
        %v4984 = vadd.f32 0.0, %v4983
        %v4985 = vpop.f32.mrf.mxu0
        %4986 = vmatprep.mubr.f32.mxu0 0.0
        %4987 = vmatmul.mubr.f32.gmra.mxu0 %v4775
        %v4988 = vpop.f32.mrf.mxu0
        %v4989 = vadd.f32 0.0, %v4988
        %v4990 = vpop.f32.mrf.mxu0
        %4991 = vmatprep.mubr.f32.mxu0 0.0
        %4992 = vmatmul.mubr.f32.gmra.mxu0 %v4778
        %v4993 = vpop.f32.mrf.mxu0
        %v4994 = vadd.f32 0.0, %v4993
        %v4995 = vpop.f32.mrf.mxu0
        %4996 = vmatprep.mubr.f32.mxu0 0.0
        %4997 = vmatmul.mubr.f32.gmra.mxu0 %v4781
        %v4998 = vpop.f32.mrf.mxu0
        %v4999 = vadd.f32 0.0, %v4998
        %v5000 = vpop.f32.mrf.mxu0
        %5001 = vmatprep.mubr.f32.mxu0 0.0
        %5002 = vmatmul.mubr.f32.gmra.mxu0 %v4784
        %v5003 = vpop.f32.mrf.mxu0
        %v5004 = vadd.f32 0.0, %v5003
        %v5005 = vpop.f32.mrf.mxu0
        %5006 = vmatprep.mubr.f32.mxu0 0.0
        %5007 = vmatmul.mubr.f32.gmra.mxu0 %v4787
        %v5008 = vpop.f32.mrf.mxu0
        %v5009 = vadd.f32 0.0, %v5008
        %v5010 = vpop.f32.mrf.mxu0
        %5011 = vmatprep.mubr.f32.mxu0 0.0
        %5012 = vmatmul.mubr.f32.gmra.mxu0 %v4790
        %v5013 = vpop.f32.mrf.mxu0
        %v5014 = vadd.f32 0.0, %v5013
        %v5015 = vpop.f32.mrf.mxu0
        %5016 = vdwg.mxu0
        %v5017 = vadd.f32 %v4109, %v4859
        %v5018 = vadd.f32 %v4114, %v4864
        %v5019 = vadd.f32 %v4119, %v4869
        %v5020 = vadd.f32 %v4124, %v4874
        %v5021 = vadd.f32 %v4129, %v4879
        %v5022 = vadd.f32 %v4134, %v4884
        %v5023 = vadd.f32 %v4139, %v4889
        %v5024 = vadd.f32 %v4144, %v4894
        %v5025 = vadd.f32 %v4149, %v4899
        %v5026 = vadd.f32 %v4154, %v4904
        %v5027 = vadd.f32 %v4159, %v4909
        %v5028 = vadd.f32 %v4164, %v4914
        %v5029 = vadd.f32 %v4169, %v4919
        %v5030 = vadd.f32 %v4174, %v4924
        %v5031 = vadd.f32 %v4179, %v4929
        %v5032 = vadd.f32 %v4184, %v4934
        %v5033 = vadd.f32 %v4189, %v4939
        %v5034 = vadd.f32 %v4194, %v4944
        %v5035 = vadd.f32 %v4199, %v4949
        %v5036 = vadd.f32 %v4204, %v4954
        %v5037 = vadd.f32 %v4209, %v4959
        %v5038 = vadd.f32 %v4214, %v4964
        %v5039 = vadd.f32 %v4219, %v4969
        %v5040 = vadd.f32 %v4224, %v4974
        %v5041 = vadd.f32 %v4229, %v4979
        %v5042 = vadd.f32 %v4234, %v4984
        %v5043 = vadd.f32 %v4239, %v4989
        %v5044 = vadd.f32 %v4244, %v4994
        %v5045 = vadd.f32 %v4249, %v4999
        %v5046 = vadd.f32 %v4254, %v5004
        %v5047 = vadd.f32 %v4259, %v5009
        %v5048 = vadd.f32 %v4264, %v5014
        %v5049 = vld [vmem:[%s4] sm:$0x1]
        %v5051 = vlaneseq
        %v5052 = vshrl.u32 %v5051, 7
        %v5053 = vsub.s32 0, %v5052
        %v5054 = vrot.slane %v5049, %v5053
        %v5056 = vadd.f32 %v5017, %v5054
        %v5057 = vadd.f32 %v5018, %v5054
        %v5058 = vadd.f32 %v5019, %v5054
        %v5059 = vadd.f32 %v5020, %v5054
        %v5060 = vadd.f32 %v5021, %v5054
        %v5061 = vadd.f32 %v5022, %v5054
        %v5062 = vadd.f32 %v5023, %v5054
        %v5063 = vadd.f32 %v5024, %v5054
        %v5064 = vadd.f32 %v5025, %v5054
        %v5065 = vadd.f32 %v5026, %v5054
        %v5066 = vadd.f32 %v5027, %v5054
        %v5067 = vadd.f32 %v5028, %v5054
        %v5068 = vadd.f32 %v5029, %v5054
        %v5069 = vadd.f32 %v5030, %v5054
        %v5070 = vadd.f32 %v5031, %v5054
        %v5071 = vadd.f32 %v5032, %v5054
        %v5072 = vadd.f32 %v5033, %v5054
        %v5073 = vadd.f32 %v5034, %v5054
        %v5074 = vadd.f32 %v5035, %v5054
        %v5075 = vadd.f32 %v5036, %v5054
        %v5076 = vadd.f32 %v5037, %v5054
        %v5077 = vadd.f32 %v5038, %v5054
        %v5078 = vadd.f32 %v5039, %v5054
        %v5079 = vadd.f32 %v5040, %v5054
        %v5080 = vadd.f32 %v5041, %v5054
        %v5081 = vadd.f32 %v5042, %v5054
        %v5082 = vadd.f32 %v5043, %v5054
        %v5083 = vadd.f32 %v5044, %v5054
        %v5084 = vadd.f32 %v5045, %v5054
        %v5085 = vadd.f32 %v5046, %v5054
        %v5086 = vadd.f32 %v5047, %v5054
        %v5087 = vadd.f32 %v5048, %v5054
        %v5088 = vmax.f32 %v5056, 0.0
        %v5089 = vmax.f32 %v5057, 0.0
        %v5090 = vmax.f32 %v5058, 0.0
        %v5091 = vmax.f32 %v5059, 0.0
        %v5092 = vmax.f32 %v5060, 0.0
        %v5093 = vmax.f32 %v5061, 0.0
        %v5094 = vmax.f32 %v5062, 0.0
        %v5095 = vmax.f32 %v5063, 0.0
        %v5096 = vmax.f32 %v5064, 0.0
        %v5097 = vmax.f32 %v5065, 0.0
        %v5098 = vmax.f32 %v5066, 0.0
        %v5099 = vmax.f32 %v5067, 0.0
        %v5100 = vmax.f32 %v5068, 0.0
        %v5101 = vmax.f32 %v5069, 0.0
        %v5102 = vmax.f32 %v5070, 0.0
        %v5103 = vmax.f32 %v5071, 0.0
        %v5104 = vmax.f32 %v5072, 0.0
        %v5105 = vmax.f32 %v5073, 0.0
        %v5106 = vmax.f32 %v5074, 0.0
        %v5107 = vmax.f32 %v5075, 0.0
        %v5108 = vmax.f32 %v5076, 0.0
        %v5109 = vmax.f32 %v5077, 0.0
        %v5110 = vmax.f32 %v5078, 0.0
        %v5111 = vmax.f32 %v5079, 0.0
        %v5112 = vmax.f32 %v5080, 0.0
        %v5113 = vmax.f32 %v5081, 0.0
        %v5114 = vmax.f32 %v5082, 0.0
        %v5115 = vmax.f32 %v5083, 0.0
        %v5116 = vmax.f32 %v5084, 0.0
        %v5117 = vmax.f32 %v5085, 0.0
        %v5118 = vmax.f32 %v5086, 0.0
        %v5119 = vmax.f32 %v5087, 0.0
        %v5120 = vld [vmem:[%s5] sm:$0xff]
        %v5121 = vld [vmem:[%s5 + $0x8] sm:$0xff]
        %v5122 = vld [vmem:[%s5 + $0x10] sm:$0xff]
        %v5123 = vld [vmem:[%s5 + $0x18] sm:$0xff]
        %v5124 = vld [vmem:[%s6] sm:$0xff]
        %v5125 = vld [vmem:[%s6 + $0x8] sm:$0xff]
        %v5126 = vld [vmem:[%s6 + $0x10] sm:$0xff]
        %v5127 = vld [vmem:[%s6 + $0x18] sm:$0xff]
        %5129 = vset.pattern.permute.xlu0 0
        %5130 = vperm.xlu0 %5129, %v5124
        %v5131 = vpop.permute.xlu0 %5130
        %5134 = vset.pattern.permute.xlu0 0
        %5135 = vperm.xlu0 %5134, %v5125
        %v5136 = vpop.permute.xlu0 %5135
        %5139 = vset.pattern.permute.xlu0 0
        %5140 = vperm.xlu0 %5139, %v5126
        %v5141 = vpop.permute.xlu0 %5140
        %5144 = vset.pattern.permute.xlu0 0
        %5145 = vperm.xlu0 %5144, %v5127
        %v5146 = vpop.permute.xlu0 %5145
        %v5149 = vsel %vm277, %v5120, 0
        %v5152 = vsel %vm277, %v5121, 0
        %v5155 = vsel %vm277, %v5122, 0
        %v5158 = vsel %vm277, %v5123, 0
        %v5161 = vsel %vm277, %v5088, 0
        %v5164 = vsel %vm277, %v5089, 0
        %v5167 = vsel %vm277, %v5090, 0
        %v5170 = vsel %vm277, %v5091, 0
        %v5173 = vsel %vm277, %v5092, 0
        %v5176 = vsel %vm277, %v5093, 0
        %v5179 = vsel %vm277, %v5094, 0
        %v5182 = vsel %vm277, %v5095, 0
        %v5185 = vsel %vm277, %v5096, 0
        %v5188 = vsel %vm277, %v5097, 0
        %v5191 = vsel %vm277, %v5098, 0
        %v5194 = vsel %vm277, %v5099, 0
        %v5197 = vsel %vm277, %v5100, 0
        %v5200 = vsel %vm277, %v5101, 0
        %v5203 = vsel %vm277, %v5102, 0
        %v5206 = vsel %vm277, %v5103, 0
        %v5209 = vsel %vm277, %v5104, 0
        %v5212 = vsel %vm277, %v5105, 0
        %v5215 = vsel %vm277, %v5106, 0
        %v5218 = vsel %vm277, %v5107, 0
        %v5221 = vsel %vm277, %v5108, 0
        %v5224 = vsel %vm277, %v5109, 0
        %v5227 = vsel %vm277, %v5110, 0
        %v5230 = vsel %vm277, %v5111, 0
        %v5233 = vsel %vm277, %v5112, 0
        %v5236 = vsel %vm277, %v5113, 0
        %v5239 = vsel %vm277, %v5114, 0
        %v5242 = vsel %vm277, %v5115, 0
        %v5245 = vsel %vm277, %v5116, 0
        %v5248 = vsel %vm277, %v5117, 0
        %v5251 = vsel %vm277, %v5118, 0
        %v5254 = vsel %vm277, %v5119, 0
        %5256 = vmatprep.subr.mxu0 0.0
        %5257 = vmatpush1.xpose.msra.mxu0 %v5206
        %5258 = vmatprep.subr.mxu0 0.0
        %5259 = vmatpush1.xpose.msra.mxu0 %v5203
        %5260 = vmatprep.subr.mxu0 0.0
        %5261 = vmatpush1.xpose.msra.mxu0 %v5200
        %5262 = vmatprep.subr.mxu0 0.0
        %5263 = vmatpush1.xpose.msra.mxu0 %v5197
        %5264 = vmatprep.subr.mxu0 0.0
        %5265 = vmatpush1.xpose.msra.mxu0 %v5194
        %5266 = vmatprep.subr.mxu0 0.0
        %5267 = vmatpush1.xpose.msra.mxu0 %v5191
        %5268 = vmatprep.subr.mxu0 0.0
        %5269 = vmatpush1.xpose.msra.mxu0 %v5188
        %5270 = vmatprep.subr.mxu0 0.0
        %5271 = vmatpush1.xpose.msra.mxu0 %v5185
        %5272 = vmatprep.subr.mxu0 0.0
        %5273 = vmatpush1.xpose.msra.mxu0 %v5182
        %5274 = vmatprep.subr.mxu0 0.0
        %5275 = vmatpush1.xpose.msra.mxu0 %v5179
        %5276 = vmatprep.subr.mxu0 0.0
        %5277 = vmatpush1.xpose.msra.mxu0 %v5176
        %5278 = vmatprep.subr.mxu0 0.0
        %5279 = vmatpush1.xpose.msra.mxu0 %v5173
        %5280 = vmatprep.subr.mxu0 0.0
        %5281 = vmatpush1.xpose.msra.mxu0 %v5170
        %5282 = vmatprep.subr.mxu0 0.0
        %5283 = vmatpush1.xpose.msra.mxu0 %v5167
        %5284 = vmatprep.subr.mxu0 0.0
        %5285 = vmatpush1.xpose.msra.mxu0 %v5164
        %5286 = vmatprep.subr.mxu0 0.0
        %5287 = vmatpush1.xpose.msra.mxu0 %v5161
        %5288 = vmatprep.subr.mxu0 0.0
        %5289 = vmatpush2.xpose.msra.mxu0 %v5254
        %5290 = vmatprep.subr.mxu0 0.0
        %5291 = vmatpush2.xpose.msra.mxu0 %v5251
        %5292 = vmatprep.subr.mxu0 0.0
        %5293 = vmatpush2.xpose.msra.mxu0 %v5248
        %5294 = vmatprep.subr.mxu0 0.0
        %5295 = vmatpush2.xpose.msra.mxu0 %v5245
        %5296 = vmatprep.subr.mxu0 0.0
        %5297 = vmatpush2.xpose.msra.mxu0 %v5242
        %5298 = vmatprep.subr.mxu0 0.0
        %5299 = vmatpush2.xpose.msra.mxu0 %v5239
        %5300 = vmatprep.subr.mxu0 0.0
        %5301 = vmatpush2.xpose.msra.mxu0 %v5236
        %5302 = vmatprep.subr.mxu0 0.0
        %5303 = vmatpush2.xpose.msra.mxu0 %v5233
        %5304 = vmatprep.subr.mxu0 0.0
        %5305 = vmatpush2.xpose.msra.mxu0 %v5230
        %5306 = vmatprep.subr.mxu0 0.0
        %5307 = vmatpush2.xpose.msra.mxu0 %v5227
        %5308 = vmatprep.subr.mxu0 0.0
        %5309 = vmatpush2.xpose.msra.mxu0 %v5224
        %5310 = vmatprep.subr.mxu0 0.0
        %5311 = vmatpush2.xpose.msra.mxu0 %v5221
        %5312 = vmatprep.subr.mxu0 0.0
        %5313 = vmatpush2.xpose.msra.mxu0 %v5218
        %5314 = vmatprep.subr.mxu0 0.0
        %5315 = vmatpush2.xpose.msra.mxu0 %v5215
        %5316 = vmatprep.subr.mxu0 0.0
        %5317 = vmatpush2.xpose.msra.mxu0 %v5212
        %5318 = vmatprep.subr.mxu0 0.0
        %5319 = vmatpush2.xpose.msra.mxu0 %v5209
        %5320 = vmatprep.mubr.f32.mxu0 0.0
        %5321 = vmatmul.mubr.f32.gmra.mxu0 %v5149
        %v5322 = vpop.f32.mrf.mxu0
        %v5323 = vadd.f32 %v5131, %v5322
        %v5324 = vpop.f32.mrf.mxu0
        %v5325 = vadd.f32 %v5131, %v5324
        %5326 = vmatprep.mubr.f32.mxu0 0.0
        %5327 = vmatmul.mubr.f32.gmra.mxu0 %v5152
        %v5328 = vpop.f32.mrf.mxu0
        %v5329 = vadd.f32 %v5136, %v5328
        %v5330 = vpop.f32.mrf.mxu0
        %v5331 = vadd.f32 %v5136, %v5330
        %5332 = vmatprep.mubr.f32.mxu0 0.0
        %5333 = vmatmul.mubr.f32.gmra.mxu0 %v5155
        %v5334 = vpop.f32.mrf.mxu0
        %v5335 = vadd.f32 %v5141, %v5334
        %v5336 = vpop.f32.mrf.mxu0
        %v5337 = vadd.f32 %v5141, %v5336
        %5338 = vmatprep.mubr.f32.mxu0 0.0
        %5339 = vmatmul.mubr.f32.gmra.mxu0 %v5158
        %v5340 = vpop.f32.mrf.mxu0
        %v5341 = vadd.f32 %v5146, %v5340
        %v5342 = vpop.f32.mrf.mxu0
        %v5343 = vadd.f32 %v5146, %v5342
        %5344 = vdwg.mxu0
        %5345 = vst [vmem:[%s271] sm:$0xff] %v5323
        %5346 = vst [vmem:[%s271 + $0x8] sm:$0xff] %v5325
        %5347 = vst [vmem:[%s271 + $0x10] sm:$0xff] %v5329
        %5348 = vst [vmem:[%s271 + $0x18] sm:$0xff] %v5331
        %5349 = vst [vmem:[%s271 + $0x20] sm:$0xff] %v5335
        %5350 = vst [vmem:[%s271 + $0x28] sm:$0xff] %v5337
        %5351 = vst [vmem:[%s271 + $0x30] sm:$0xff] %v5341
        %5352 = vst [vmem:[%s271 + $0x38] sm:$0xff] %v5343
        %s5353 = sand.u32 %s181, 1
        %s5354 = scalar_lea.sflag [#allocation4], %s5353
        %s5355 = sand.u32 %s181, 1
        %s5356 = smul.addr %s5355, 64
        %s5357 = scalar_lea.vmem [#allocation3], %s5356
        // Predicated region
        $region49: #{tpu_custom_call.1} parent=47 // pred_check
          %p5358 = pneg %p191
        $region50: #{tpu_custom_call.1} parent=47 // pred_check_branch
          %5360 = sbr.rel (%p5358) target = $region52
        $region51: #{tpu_custom_call.1} parent=47 // pred_region
          %s5362 = ssub.s32 1024, 1024
          %5363 = vsyncadd %s5354, %s5362
          %s5364 = smul.addr %s21, 8
          %s5365 = smul.addr %s5364, 128
          %s5366 = scalar_lea.hbm %s7, %s5365
          %s5367 = sshll.u32 %s5357, 4
          %s5368 = int_to_ptr.vmem [resolvable:$true] %s5367
          %5373 = dma.vmem_to_hbm [thread:$0]  %s5368, 1024, %s5366, %s5354, 256, 256, 16
        $region52: #{tpu_custom_call.1} parent=47 // pred_fallthru
          _
      $region48: #{tpu_custom_call.1} parent=5 // pred_fallthru
        _
      %p5374 = scmp.le.s32.totalorder 2, %s16
      // Predicated region
      $region53: #{tpu_custom_call.1} parent=5 // pred_check
        %p5375 = pneg %p5374
      $region54: #{tpu_custom_call.1} parent=5 // pred_check_branch
        %5377 = sbr.rel (%p5375) target = $region56
      $region55: #{tpu_custom_call.1} parent=5 // pred_region
        %s5378 = ssub.s32 %s16, 2
        // Predicated region
        $region57: #{tpu_custom_call.1} parent=55 // pred_check
          %p5379 = pneg %p197
        $region58: #{tpu_custom_call.1} parent=55 // pred_check_branch
          %5381 = sbr.rel (%p5379) target = $region60
        $region59: #{tpu_custom_call.1} parent=55 // pred_region
          %s5382 = sand.u32 %s182, 1
          %s5383 = scalar_lea.sflag [#allocation4], %s5382
          %s5384 = sand.u32 %s182, 1
          %s5385 = smul.addr %s5384, 64
          %s5386 = scalar_lea.vmem [#allocation3], %s5385
          %5387 = dma.done %s5383, 1024
        $region60: #{tpu_custom_call.1} parent=55 // pred_fallthru
          _
      $region56: #{tpu_custom_call.1} parent=5 // pred_fallthru
        _
    $region6: #{tpu_custom_call.1} parent=1 // loop_footer
      %s20 = sadd.s32 1, %s16
    $region7: #{tpu_custom_call.1} parent=1 // loop_footer_branch
      %15 = sbr.rel target = $region3
    $region8: #{tpu_custom_call.1} parent=1 // loop_exit
      _
    %5388 = vsyncpa [#allocation4], 1
    %s5389 = scalar_lea.sflag [#allocation4], 1
    %5390 = vsyncpa %s5389, 1

</llo_original>
